<compile_context>
chip_gen: v7x
topology: tpu7x:2x2x1
jax: 0.10.0
libtpu: 0.0.40
codegen_flags: <defaults>
</compile_context>

<pallas_src>
import jax
import jax.numpy as jnp
from jax.experimental import pallas as pl
from jax.experimental.pallas import tpu as pltpu

EPS = 1e-5


def _mlp_fused_kernel(x_ref, wh_ref, bh_ref, g_ref, be_ref, wl_ref, bl_ref, o_ref):
    """Fused: (Linear -> ReLU -> BatchNorm1d) x (L-1), then Linear -> ReLU."""
    num_hidden = wh_ref.shape[0]            # L - 1 hidden layers
    n_rows = x_ref.shape[0]
    inv_n = 1.0 / float(n_rows)             # static scalar

    h = x_ref[...]                           # (N, d_in) f32, stays VMEM/vreg resident

    # Hidden layers (statically unrolled; L is tiny).
    for i in range(num_hidden):
        w = wh_ref[i]                        # (d_in, d_in) f32
        b = bh_ref[i]                        # (1, d_in)
        z = jnp.dot(h, w, preferred_element_type=jnp.float32) + b
        h = jnp.maximum(z, 0.0)

        # BatchNorm1d, training-mode batch statistics, one pass over h.
        s = jnp.sum(h, axis=0, keepdims=True)          # (1, d_in)
        ss = jnp.sum(h * h, axis=0, keepdims=True)     # (1, d_in)
        mean = s * inv_n
        var = ss * inv_n - mean * mean                 # E[x^2] - E[x]^2 (biased)
        inv_std = jax.lax.rsqrt(var + EPS)             # EUP slot
        scale = g_ref[i] * inv_std                     # (1, d_in)
        shift = be_ref[i] - mean * scale               # (1, d_in)
        h = h * scale + shift                          # one mul + one add per elem

    # Final layer: Linear -> ReLU (no BN on the last layer).
    z = jnp.dot(h, wl_ref[...], preferred_element_type=jnp.float32) + bl_ref[...]
    o_ref[...] = jnp.maximum(z, 0.0).astype(o_ref.dtype)


def _vmem_spec():
    # Whole-array-resident blocks; total working set is well under 1 MiB even
    # at thousands of rows x 32 features, so this fits every generation's
    # default scoped VMEM (incl. v7x's smaller 64 MiB physical VMEM).
    return pl.BlockSpec(memory_space=pltpu.MemorySpace.VMEM)


def init_mlp_params(key, dim_in=32, dim_out=32, num_gc_layers=5):
    """Stacked parameters (shapes match torch Linear / BatchNorm1d defaults).

    Returns (w_hidden[L-1,d_in,d_in], b_hidden[L-1,1,d_in], gamma[L-1,1,d_in],
             beta[L-1,1,d_in], w_last[d_in,d_out], b_last[1,d_out]).
    torch Linear stores W as (out, in); we keep (in, out) so the kernel computes
    x @ W directly.
    """
    n_hidden = num_gc_layers - 1
    ws, bs = [], []
    bound = 1.0 / jnp.sqrt(jnp.float32(dim_in))
    for _ in range(n_hidden):
        key, kw, kb = jax.random.split(key, 3)
        ws.append(jax.random.uniform(kw, (dim_in, dim_in), jnp.float32, -bound, bound))
        bs.append(jax.random.uniform(kb, (1, dim_in), jnp.float32, -bound, bound))
    w_hidden = jnp.stack(ws, axis=0)                       # (L-1, d_in, d_in)
    b_hidden = jnp.stack(bs, axis=0)                       # (L-1, 1, d_in)
    gamma = jnp.ones((n_hidden, 1, dim_in), jnp.float32)   # BN weight default
    beta = jnp.zeros((n_hidden, 1, dim_in), jnp.float32)   # BN bias default

    key, kw, kb = jax.random.split(key, 3)
    w_last = jax.random.uniform(kw, (dim_in, dim_out), jnp.float32, -bound, bound)
    b_last = jax.random.uniform(kb, (1, dim_out), jnp.float32, -bound, bound)
    return (w_hidden, b_hidden, gamma, beta, w_last, b_last)


@jax.jit
def mlp_forward(x, params, edge_index=None, batch=None):
    # edge_index / batch are unused by the reference forward (kept for parity).
    # torch.squeeze(x) is a no-op for N > 1, F > 1 (assumed here).
    w_hidden, b_hidden, gamma, beta, w_last, b_last = params
    n = x.shape[0]
    d_out = w_last.shape[1]
    return pl.pallas_call(
        _mlp_fused_kernel,
        out_shape=jax.ShapeDtypeStruct((n, d_out), jnp.float32),
        in_specs=[_vmem_spec()] * 7,
        out_specs=_vmem_spec(),
    )(x, w_hidden, b_hidden, gamma, beta, w_last, b_last)


def _mlp_reference(x, params):
    """Pure-JAX fp32 reference (matches the torch training-mode forward)."""
    w_hidden, b_hidden, gamma, beta, w_last, b_last = params
    h = x
    for i in range(w_hidden.shape[0]):
        h = jnp.maximum(jnp.dot(h, w_hidden[i]) + b_hidden[i], 0.0)
        mean = jnp.mean(h, axis=0, keepdims=True)
        var = jnp.mean((h - mean) ** 2, axis=0, keepdims=True)
        h = gamma[i] * (h - mean) * jax.lax.rsqrt(var + EPS) + beta[i]
    return jnp.maximum(jnp.dot(h, w_last) + b_last, 0.0)


if __name__ == "__main__":
    key = jax.random.PRNGKey(0)
    key, kx = jax.random.split(key)

    # PyG-style stacked node features: many graphs' nodes batched into one
    # [total_nodes, F] matrix (this is also exactly what torch BatchNorm1d sees).
    N_NODES, DIM_IN, DIM_OUT, NUM_LAYERS = 512, 32, 32, 5
    x = jax.random.normal(kx, (N_NODES, DIM_IN), jnp.float32)
    # Dummy graph inputs (unused by the forward pass, kept for signature parity).
    edge_index = jnp.zeros((2, 4), jnp.int32)
    batch = jnp.zeros((N_NODES,), jnp.int32)

    params = init_mlp_params(key, DIM_IN, DIM_OUT, NUM_LAYERS)

    out = mlp_forward(x, params, edge_index, batch)
    jax.block_until_ready(out)

    assert out.shape == (N_NODES, DIM_OUT)
    assert bool(jnp.all(out >= 0.0))  # final ReLU

    ref = _mlp_reference(x, params)
    assert bool(jnp.allclose(out, ref, rtol=1e-4, atol=1e-4)), "mismatch vs reference"

    print("KERNEL_OK")
</pallas_src>

<mosaic_0001>
module attributes {stable_mosaic.version = 11 : i64} {
  func.func @_mlp_fused_kernel(%arg0: memref<512x32xf32, #tpu.memory_space<vmem>>, %arg1: memref<4x32x32xf32, #tpu.memory_space<vmem>>, %arg2: memref<4x1x32xf32, #tpu.memory_space<vmem>>, %arg3: memref<4x1x32xf32, #tpu.memory_space<vmem>>, %arg4: memref<4x1x32xf32, #tpu.memory_space<vmem>>, %arg5: memref<32x32xf32, #tpu.memory_space<vmem>>, %arg6: memref<1x32xf32, #tpu.memory_space<vmem>>, %arg7: memref<512x32xf32, #tpu.memory_space<vmem>>) attributes {dimension_semantics = [], scalar_prefetch = 0 : i64, scratch_operands = 0 : i64, tpu.core_type = #tpu.core_type<tc>} {
    %c0 = arith.constant 0 : index
    %c0_0 = arith.constant 0 : index
    %0 = vector.load %arg0[%c0, %c0_0] : memref<512x32xf32, #tpu.memory_space<vmem>>, vector<512x32xf32>
    %c0_1 = arith.constant 0 : index
    %c0_2 = arith.constant 0 : index
    %c0_3 = arith.constant 0 : index
    %1 = vector.load %arg1[%c0_1, %c0_2, %c0_3] : memref<4x32x32xf32, #tpu.memory_space<vmem>>, vector<1x32x32xf32>
    %2 = vector.shape_cast %1 : vector<1x32x32xf32> to vector<32x32xf32>
    %c0_4 = arith.constant 0 : index
    %c0_5 = arith.constant 0 : index
    %c0_6 = arith.constant 0 : index
    %3 = vector.load %arg2[%c0_4, %c0_5, %c0_6] : memref<4x1x32xf32, #tpu.memory_space<vmem>>, vector<1x1x32xf32>
    %4 = vector.shape_cast %3 : vector<1x1x32xf32> to vector<1x32xf32>
    %cst = arith.constant dense<0.000000e+00> : vector<512x32xf32>
    %5 = tpu.matmul %0, %2, %cst {dimension_numbers = #tpu.dot_dimension_numbers<[1], [0], [0], [1], [0, 0, 1, 1], [], []>} : vector<512x32xf32>, vector<32x32xf32>, vector<512x32xf32> -> vector<512x32xf32>
    %6 = vector.broadcast %4 : vector<1x32xf32> to vector<512x32xf32>
    %7 = arith.addf %5, %6 : vector<512x32xf32>
    %cst_7 = arith.constant 0.000000e+00 : f32
    %8 = vector.broadcast %cst_7 : f32 to vector<512x32xf32>
    %9 = arith.maximumf %7, %8 : vector<512x32xf32>
    %cst_8 = arith.constant dense<0.000000e+00> : vector<32xf32>
    %10 = vector.multi_reduction <add>, %9, %cst_8 [0] : vector<512x32xf32> to vector<32xf32>
    %11 = vector.shape_cast %10 : vector<32xf32> to vector<1x32xf32>
    %12 = arith.mulf %9, %9 : vector<512x32xf32>
    %cst_9 = arith.constant dense<0.000000e+00> : vector<32xf32>
    %13 = vector.multi_reduction <add>, %12, %cst_9 [0] : vector<512x32xf32> to vector<32xf32>
    %14 = vector.shape_cast %13 : vector<32xf32> to vector<1x32xf32>
    %cst_10 = arith.constant 0.001953125 : f32
    %15 = vector.broadcast %cst_10 : f32 to vector<1x32xf32>
    %16 = arith.mulf %11, %15 : vector<1x32xf32>
    %cst_11 = arith.constant 0.001953125 : f32
    %17 = vector.broadcast %cst_11 : f32 to vector<1x32xf32>
    %18 = arith.mulf %14, %17 : vector<1x32xf32>
    %19 = arith.mulf %16, %16 : vector<1x32xf32>
    %20 = arith.subf %18, %19 : vector<1x32xf32>
    %cst_12 = arith.constant 9.99999974E-6 : f32
    %21 = vector.broadcast %cst_12 : f32 to vector<1x32xf32>
    %22 = arith.addf %20, %21 : vector<1x32xf32>
    %23 = math.rsqrt %22 : vector<1x32xf32>
    %c0_13 = arith.constant 0 : index
    %c0_14 = arith.constant 0 : index
    %c0_15 = arith.constant 0 : index
    %24 = vector.load %arg3[%c0_13, %c0_14, %c0_15] : memref<4x1x32xf32, #tpu.memory_space<vmem>>, vector<1x1x32xf32>
    %25 = vector.shape_cast %24 : vector<1x1x32xf32> to vector<1x32xf32>
    %26 = arith.mulf %25, %23 : vector<1x32xf32>
    %c0_16 = arith.constant 0 : index
    %c0_17 = arith.constant 0 : index
    %c0_18 = arith.constant 0 : index
    %27 = vector.load %arg4[%c0_16, %c0_17, %c0_18] : memref<4x1x32xf32, #tpu.memory_space<vmem>>, vector<1x1x32xf32>
    %28 = vector.shape_cast %27 : vector<1x1x32xf32> to vector<1x32xf32>
    %29 = arith.mulf %16, %26 : vector<1x32xf32>
    %30 = arith.subf %28, %29 : vector<1x32xf32>
    %31 = vector.broadcast %26 : vector<1x32xf32> to vector<512x32xf32>
    %32 = arith.mulf %9, %31 : vector<512x32xf32>
    %33 = vector.broadcast %30 : vector<1x32xf32> to vector<512x32xf32>
    %34 = arith.addf %32, %33 : vector<512x32xf32>
    %c1 = arith.constant 1 : index
    %c0_19 = arith.constant 0 : index
    %c0_20 = arith.constant 0 : index
    %35 = vector.load %arg1[%c1, %c0_19, %c0_20] : memref<4x32x32xf32, #tpu.memory_space<vmem>>, vector<1x32x32xf32>
    %36 = vector.shape_cast %35 : vector<1x32x32xf32> to vector<32x32xf32>
    %c1_21 = arith.constant 1 : index
    %c0_22 = arith.constant 0 : index
    %c0_23 = arith.constant 0 : index
    %37 = vector.load %arg2[%c1_21, %c0_22, %c0_23] : memref<4x1x32xf32, #tpu.memory_space<vmem>>, vector<1x1x32xf32>
    %38 = vector.shape_cast %37 : vector<1x1x32xf32> to vector<1x32xf32>
    %cst_24 = arith.constant dense<0.000000e+00> : vector<512x32xf32>
    %39 = tpu.matmul %34, %36, %cst_24 {dimension_numbers = #tpu.dot_dimension_numbers<[1], [0], [0], [1], [0, 0, 1, 1], [], []>} : vector<512x32xf32>, vector<32x32xf32>, vector<512x32xf32> -> vector<512x32xf32>
    %40 = vector.broadcast %38 : vector<1x32xf32> to vector<512x32xf32>
    %41 = arith.addf %39, %40 : vector<512x32xf32>
    %cst_25 = arith.constant 0.000000e+00 : f32
    %42 = vector.broadcast %cst_25 : f32 to vector<512x32xf32>
    %43 = arith.maximumf %41, %42 : vector<512x32xf32>
    %cst_26 = arith.constant dense<0.000000e+00> : vector<32xf32>
    %44 = vector.multi_reduction <add>, %43, %cst_26 [0] : vector<512x32xf32> to vector<32xf32>
    %45 = vector.shape_cast %44 : vector<32xf32> to vector<1x32xf32>
    %46 = arith.mulf %43, %43 : vector<512x32xf32>
    %cst_27 = arith.constant dense<0.000000e+00> : vector<32xf32>
    %47 = vector.multi_reduction <add>, %46, %cst_27 [0] : vector<512x32xf32> to vector<32xf32>
    %48 = vector.shape_cast %47 : vector<32xf32> to vector<1x32xf32>
    %cst_28 = arith.constant 0.001953125 : f32
    %49 = vector.broadcast %cst_28 : f32 to vector<1x32xf32>
    %50 = arith.mulf %45, %49 : vector<1x32xf32>
    %cst_29 = arith.constant 0.001953125 : f32
    %51 = vector.broadcast %cst_29 : f32 to vector<1x32xf32>
    %52 = arith.mulf %48, %51 : vector<1x32xf32>
    %53 = arith.mulf %50, %50 : vector<1x32xf32>
    %54 = arith.subf %52, %53 : vector<1x32xf32>
    %cst_30 = arith.constant 9.99999974E-6 : f32
    %55 = vector.broadcast %cst_30 : f32 to vector<1x32xf32>
    %56 = arith.addf %54, %55 : vector<1x32xf32>
    %57 = math.rsqrt %56 : vector<1x32xf32>
    %c1_31 = arith.constant 1 : index
    %c0_32 = arith.constant 0 : index
    %c0_33 = arith.constant 0 : index
    %58 = vector.load %arg3[%c1_31, %c0_32, %c0_33] : memref<4x1x32xf32, #tpu.memory_space<vmem>>, vector<1x1x32xf32>
    %59 = vector.shape_cast %58 : vector<1x1x32xf32> to vector<1x32xf32>
    %60 = arith.mulf %59, %57 : vector<1x32xf32>
    %c1_34 = arith.constant 1 : index
    %c0_35 = arith.constant 0 : index
    %c0_36 = arith.constant 0 : index
    %61 = vector.load %arg4[%c1_34, %c0_35, %c0_36] : memref<4x1x32xf32, #tpu.memory_space<vmem>>, vector<1x1x32xf32>
    %62 = vector.shape_cast %61 : vector<1x1x32xf32> to vector<1x32xf32>
    %63 = arith.mulf %50, %60 : vector<1x32xf32>
    %64 = arith.subf %62, %63 : vector<1x32xf32>
    %65 = vector.broadcast %60 : vector<1x32xf32> to vector<512x32xf32>
    %66 = arith.mulf %43, %65 : vector<512x32xf32>
    %67 = vector.broadcast %64 : vector<1x32xf32> to vector<512x32xf32>
    %68 = arith.addf %66, %67 : vector<512x32xf32>
    %c2 = arith.constant 2 : index
    %c0_37 = arith.constant 0 : index
    %c0_38 = arith.constant 0 : index
    %69 = vector.load %arg1[%c2, %c0_37, %c0_38] : memref<4x32x32xf32, #tpu.memory_space<vmem>>, vector<1x32x32xf32>
    %70 = vector.shape_cast %69 : vector<1x32x32xf32> to vector<32x32xf32>
    %c2_39 = arith.constant 2 : index
    %c0_40 = arith.constant 0 : index
    %c0_41 = arith.constant 0 : index
    %71 = vector.load %arg2[%c2_39, %c0_40, %c0_41] : memref<4x1x32xf32, #tpu.memory_space<vmem>>, vector<1x1x32xf32>
    %72 = vector.shape_cast %71 : vector<1x1x32xf32> to vector<1x32xf32>
    %cst_42 = arith.constant dense<0.000000e+00> : vector<512x32xf32>
    %73 = tpu.matmul %68, %70, %cst_42 {dimension_numbers = #tpu.dot_dimension_numbers<[1], [0], [0], [1], [0, 0, 1, 1], [], []>} : vector<512x32xf32>, vector<32x32xf32>, vector<512x32xf32> -> vector<512x32xf32>
    %74 = vector.broadcast %72 : vector<1x32xf32> to vector<512x32xf32>
    %75 = arith.addf %73, %74 : vector<512x32xf32>
    %cst_43 = arith.constant 0.000000e+00 : f32
    %76 = vector.broadcast %cst_43 : f32 to vector<512x32xf32>
    %77 = arith.maximumf %75, %76 : vector<512x32xf32>
    %cst_44 = arith.constant dense<0.000000e+00> : vector<32xf32>
    %78 = vector.multi_reduction <add>, %77, %cst_44 [0] : vector<512x32xf32> to vector<32xf32>
    %79 = vector.shape_cast %78 : vector<32xf32> to vector<1x32xf32>
    %80 = arith.mulf %77, %77 : vector<512x32xf32>
    %cst_45 = arith.constant dense<0.000000e+00> : vector<32xf32>
    %81 = vector.multi_reduction <add>, %80, %cst_45 [0] : vector<512x32xf32> to vector<32xf32>
    %82 = vector.shape_cast %81 : vector<32xf32> to vector<1x32xf32>
    %cst_46 = arith.constant 0.001953125 : f32
    %83 = vector.broadcast %cst_46 : f32 to vector<1x32xf32>
    %84 = arith.mulf %79, %83 : vector<1x32xf32>
    %cst_47 = arith.constant 0.001953125 : f32
    %85 = vector.broadcast %cst_47 : f32 to vector<1x32xf32>
    %86 = arith.mulf %82, %85 : vector<1x32xf32>
    %87 = arith.mulf %84, %84 : vector<1x32xf32>
    %88 = arith.subf %86, %87 : vector<1x32xf32>
    %cst_48 = arith.constant 9.99999974E-6 : f32
    %89 = vector.broadcast %cst_48 : f32 to vector<1x32xf32>
    %90 = arith.addf %88, %89 : vector<1x32xf32>
    %91 = math.rsqrt %90 : vector<1x32xf32>
    %c2_49 = arith.constant 2 : index
    %c0_50 = arith.constant 0 : index
    %c0_51 = arith.constant 0 : index
    %92 = vector.load %arg3[%c2_49, %c0_50, %c0_51] : memref<4x1x32xf32, #tpu.memory_space<vmem>>, vector<1x1x32xf32>
    %93 = vector.shape_cast %92 : vector<1x1x32xf32> to vector<1x32xf32>
    %94 = arith.mulf %93, %91 : vector<1x32xf32>
    %c2_52 = arith.constant 2 : index
    %c0_53 = arith.constant 0 : index
    %c0_54 = arith.constant 0 : index
    %95 = vector.load %arg4[%c2_52, %c0_53, %c0_54] : memref<4x1x32xf32, #tpu.memory_space<vmem>>, vector<1x1x32xf32>
    %96 = vector.shape_cast %95 : vector<1x1x32xf32> to vector<1x32xf32>
    %97 = arith.mulf %84, %94 : vector<1x32xf32>
    %98 = arith.subf %96, %97 : vector<1x32xf32>
    %99 = vector.broadcast %94 : vector<1x32xf32> to vector<512x32xf32>
    %100 = arith.mulf %77, %99 : vector<512x32xf32>
    %101 = vector.broadcast %98 : vector<1x32xf32> to vector<512x32xf32>
    %102 = arith.addf %100, %101 : vector<512x32xf32>
    %c3 = arith.constant 3 : index
    %c0_55 = arith.constant 0 : index
    %c0_56 = arith.constant 0 : index
    %103 = vector.load %arg1[%c3, %c0_55, %c0_56] : memref<4x32x32xf32, #tpu.memory_space<vmem>>, vector<1x32x32xf32>
    %104 = vector.shape_cast %103 : vector<1x32x32xf32> to vector<32x32xf32>
    %c3_57 = arith.constant 3 : index
    %c0_58 = arith.constant 0 : index
    %c0_59 = arith.constant 0 : index
    %105 = vector.load %arg2[%c3_57, %c0_58, %c0_59] : memref<4x1x32xf32, #tpu.memory_space<vmem>>, vector<1x1x32xf32>
    %106 = vector.shape_cast %105 : vector<1x1x32xf32> to vector<1x32xf32>
    %cst_60 = arith.constant dense<0.000000e+00> : vector<512x32xf32>
    %107 = tpu.matmul %102, %104, %cst_60 {dimension_numbers = #tpu.dot_dimension_numbers<[1], [0], [0], [1], [0, 0, 1, 1], [], []>} : vector<512x32xf32>, vector<32x32xf32>, vector<512x32xf32> -> vector<512x32xf32>
    %108 = vector.broadcast %106 : vector<1x32xf32> to vector<512x32xf32>
    %109 = arith.addf %107, %108 : vector<512x32xf32>
    %cst_61 = arith.constant 0.000000e+00 : f32
    %110 = vector.broadcast %cst_61 : f32 to vector<512x32xf32>
    %111 = arith.maximumf %109, %110 : vector<512x32xf32>
    %cst_62 = arith.constant dense<0.000000e+00> : vector<32xf32>
    %112 = vector.multi_reduction <add>, %111, %cst_62 [0] : vector<512x32xf32> to vector<32xf32>
    %113 = vector.shape_cast %112 : vector<32xf32> to vector<1x32xf32>
    %114 = arith.mulf %111, %111 : vector<512x32xf32>
    %cst_63 = arith.constant dense<0.000000e+00> : vector<32xf32>
    %115 = vector.multi_reduction <add>, %114, %cst_63 [0] : vector<512x32xf32> to vector<32xf32>
    %116 = vector.shape_cast %115 : vector<32xf32> to vector<1x32xf32>
    %cst_64 = arith.constant 0.001953125 : f32
    %117 = vector.broadcast %cst_64 : f32 to vector<1x32xf32>
    %118 = arith.mulf %113, %117 : vector<1x32xf32>
    %cst_65 = arith.constant 0.001953125 : f32
    %119 = vector.broadcast %cst_65 : f32 to vector<1x32xf32>
    %120 = arith.mulf %116, %119 : vector<1x32xf32>
    %121 = arith.mulf %118, %118 : vector<1x32xf32>
    %122 = arith.subf %120, %121 : vector<1x32xf32>
    %cst_66 = arith.constant 9.99999974E-6 : f32
    %123 = vector.broadcast %cst_66 : f32 to vector<1x32xf32>
    %124 = arith.addf %122, %123 : vector<1x32xf32>
    %125 = math.rsqrt %124 : vector<1x32xf32>
    %c3_67 = arith.constant 3 : index
    %c0_68 = arith.constant 0 : index
    %c0_69 = arith.constant 0 : index
    %126 = vector.load %arg3[%c3_67, %c0_68, %c0_69] : memref<4x1x32xf32, #tpu.memory_space<vmem>>, vector<1x1x32xf32>
    %127 = vector.shape_cast %126 : vector<1x1x32xf32> to vector<1x32xf32>
    %128 = arith.mulf %127, %125 : vector<1x32xf32>
    %c3_70 = arith.constant 3 : index
    %c0_71 = arith.constant 0 : index
    %c0_72 = arith.constant 0 : index
    %129 = vector.load %arg4[%c3_70, %c0_71, %c0_72] : memref<4x1x32xf32, #tpu.memory_space<vmem>>, vector<1x1x32xf32>
    %130 = vector.shape_cast %129 : vector<1x1x32xf32> to vector<1x32xf32>
    %131 = arith.mulf %118, %128 : vector<1x32xf32>
    %132 = arith.subf %130, %131 : vector<1x32xf32>
    %133 = vector.broadcast %128 : vector<1x32xf32> to vector<512x32xf32>
    %134 = arith.mulf %111, %133 : vector<512x32xf32>
    %135 = vector.broadcast %132 : vector<1x32xf32> to vector<512x32xf32>
    %136 = arith.addf %134, %135 : vector<512x32xf32>
    %c0_73 = arith.constant 0 : index
    %c0_74 = arith.constant 0 : index
    %137 = vector.load %arg5[%c0_73, %c0_74] : memref<32x32xf32, #tpu.memory_space<vmem>>, vector<32x32xf32>
    %cst_75 = arith.constant dense<0.000000e+00> : vector<512x32xf32>
    %138 = tpu.matmul %136, %137, %cst_75 {dimension_numbers = #tpu.dot_dimension_numbers<[1], [0], [0], [1], [0, 0, 1, 1], [], []>} : vector<512x32xf32>, vector<32x32xf32>, vector<512x32xf32> -> vector<512x32xf32>
    %c0_76 = arith.constant 0 : index
    %c0_77 = arith.constant 0 : index
    %139 = vector.load %arg6[%c0_76, %c0_77] : memref<1x32xf32, #tpu.memory_space<vmem>>, vector<1x32xf32>
    %140 = vector.broadcast %139 : vector<1x32xf32> to vector<512x32xf32>
    %141 = arith.addf %138, %140 : vector<512x32xf32>
    %cst_78 = arith.constant 0.000000e+00 : f32
    %142 = vector.broadcast %cst_78 : f32 to vector<512x32xf32>
    %143 = arith.maximumf %141, %142 : vector<512x32xf32>
    %c0_79 = arith.constant 0 : index
    %c0_80 = arith.constant 0 : index
    %144 = vector.load %arg7[%c0_79, %c0_80] : memref<512x32xf32, #tpu.memory_space<vmem>>, vector<512x32xf32>
    tpu.vector_store %arg7[%c0_79, %c0_80], %143 {strides = array<i32>} : memref<512x32xf32, #tpu.memory_space<vmem>>, vector<512x32xf32>,
    return
  }
}

</mosaic_0001>

<llo_original>
// kernel: mlp_forward.1
$region0: #{mlp_forward.1}
  #allocation0 [shape = 'u32[]', space=smem, size = 0x4, offset = 0x4, fixed_abs, tag = 'smem constant byte address 0x4 - core index']
  #allocation1 [shape = 'u32[144,128]{1,0:T(1,128)}', space=vmem, size = 0x12000, scoped, tag = 'internal scratch']
  %s0 = inlined_call_operand.vmem [shape: f32[512,32], index: 0, kind: input, shape index: {}]
  %s1 = inlined_call_operand.vmem [shape: f32[4,32,32], index: 1, kind: input, shape index: {}]
  %s2 = inlined_call_operand.vmem [shape: f32[4,1,32], index: 2, kind: input, shape index: {}]
  %s3 = inlined_call_operand.vmem [shape: f32[4,1,32], index: 3, kind: input, shape index: {}]
  %s4 = inlined_call_operand.vmem [shape: f32[4,1,32], index: 4, kind: input, shape index: {}]
  %s5 = inlined_call_operand.vmem [shape: f32[32,32], index: 5, kind: input, shape index: {}]
  %s6 = inlined_call_operand.vmem [shape: f32[1,32], index: 6, kind: input, shape index: {}]
  %s7 = inlined_call_operand.vmem [shape: f32[512,32], index: 7, kind: output, shape index: {}]
  %s8 = sld [smem:[#allocation0]]
  $region38: #{mlp_forward.1} parent=0
    _
  %s10 = ssub.s32 1, %s8
  %s11 = scalar_select 0, %s10, %s8
  // Predicated region
  $region2: #{mlp_forward.1} parent=0 // pred_check
    _
  $region3: #{mlp_forward.1} parent=0 // pred_check_branch
    %13 = sbr.rel (0) target = $region5
  $region4: #{mlp_forward.1} parent=0 // pred_region
    _
  $region5: #{mlp_forward.1} parent=0 // pred_fallthru
    _
  // Predicated region
  $region6: #{mlp_forward.1} parent=0 // pred_check
    _
  $region7: #{mlp_forward.1} parent=0 // pred_check_branch
    %15 = sbr.rel (0) target = $region9
  $region8: #{mlp_forward.1} parent=0 // pred_region
    _
  $region9: #{mlp_forward.1} parent=0 // pred_fallthru
    _
  // Predicated region
  $region10: #{mlp_forward.1} parent=0 // pred_check
    _
  $region11: #{mlp_forward.1} parent=0 // pred_check_branch
    %17 = sbr.rel (0) target = $region13
  $region12: #{mlp_forward.1} parent=0 // pred_region
    _
  $region13: #{mlp_forward.1} parent=0 // pred_fallthru
    _
  // Predicated region
  $region14: #{mlp_forward.1} parent=0 // pred_check
    _
  $region15: #{mlp_forward.1} parent=0 // pred_check_branch
    %19 = sbr.rel (0) target = $region17
  $region16: #{mlp_forward.1} parent=0 // pred_region
    _
  $region17: #{mlp_forward.1} parent=0 // pred_fallthru
    _
  // Predicated region
  $region18: #{mlp_forward.1} parent=0 // pred_check
    _
  $region19: #{mlp_forward.1} parent=0 // pred_check_branch
    %21 = sbr.rel (0) target = $region21
  $region20: #{mlp_forward.1} parent=0 // pred_region
    _
  $region21: #{mlp_forward.1} parent=0 // pred_fallthru
    _
  // Predicated region
  $region22: #{mlp_forward.1} parent=0 // pred_check
    _
  $region23: #{mlp_forward.1} parent=0 // pred_check_branch
    %23 = sbr.rel (0) target = $region25
  $region24: #{mlp_forward.1} parent=0 // pred_region
    _
  $region25: #{mlp_forward.1} parent=0 // pred_fallthru
    _
  // Predicated region
  $region26: #{mlp_forward.1} parent=0 // pred_check
    _
  $region27: #{mlp_forward.1} parent=0 // pred_check_branch
    %25 = sbr.rel (0) target = $region29
  $region28: #{mlp_forward.1} parent=0 // pred_region
    _
  $region29: #{mlp_forward.1} parent=0 // pred_fallthru
    _
  %v26 = vld [vmem:[%s0] sm:$0xff]
  %v27 = vld [vmem:[%s0 + $0x8] sm:$0xff]
  %v28 = vld [vmem:[%s0 + $0x10] sm:$0xff]
  %v29 = vld [vmem:[%s0 + $0x18] sm:$0xff]
  %v30 = vld [vmem:[%s0 + $0x20] sm:$0xff]
  %v31 = vld [vmem:[%s0 + $0x28] sm:$0xff]
  %v32 = vld [vmem:[%s0 + $0x30] sm:$0xff]
  %v33 = vld [vmem:[%s0 + $0x38] sm:$0xff]
  %v34 = vld [vmem:[%s0 + $0x40] sm:$0xff]
  %v35 = vld [vmem:[%s0 + $0x48] sm:$0xff]
  %v36 = vld [vmem:[%s0 + $0x50] sm:$0xff]
  %v37 = vld [vmem:[%s0 + $0x58] sm:$0xff]
  %v38 = vld [vmem:[%s0 + $0x60] sm:$0xff]
  %v39 = vld [vmem:[%s0 + $0x68] sm:$0xff]
  %v40 = vld [vmem:[%s0 + $0x70] sm:$0xff]
  %v41 = vld [vmem:[%s0 + $0x78] sm:$0xff]
  %v42 = vld [vmem:[%s0 + $0x80] sm:$0xff]
  %v43 = vld [vmem:[%s0 + $0x88] sm:$0xff]
  %v44 = vld [vmem:[%s0 + $0x90] sm:$0xff]
  %v45 = vld [vmem:[%s0 + $0x98] sm:$0xff]
  %v46 = vld [vmem:[%s0 + $0xa0] sm:$0xff]
  %v47 = vld [vmem:[%s0 + $0xa8] sm:$0xff]
  %v48 = vld [vmem:[%s0 + $0xb0] sm:$0xff]
  %v49 = vld [vmem:[%s0 + $0xb8] sm:$0xff]
  %v50 = vld [vmem:[%s0 + $0xc0] sm:$0xff]
  %v51 = vld [vmem:[%s0 + $0xc8] sm:$0xff]
  %v52 = vld [vmem:[%s0 + $0xd0] sm:$0xff]
  %v53 = vld [vmem:[%s0 + $0xd8] sm:$0xff]
  %v54 = vld [vmem:[%s0 + $0xe0] sm:$0xff]
  %v55 = vld [vmem:[%s0 + $0xe8] sm:$0xff]
  %v56 = vld [vmem:[%s0 + $0xf0] sm:$0xff]
  %v57 = vld [vmem:[%s0 + $0xf8] sm:$0xff]
  %v58 = vld [vmem:[%s0 + $0x100] sm:$0xff]
  %v59 = vld [vmem:[%s0 + $0x108] sm:$0xff]
  %v60 = vld [vmem:[%s0 + $0x110] sm:$0xff]
  %v61 = vld [vmem:[%s0 + $0x118] sm:$0xff]
  %v62 = vld [vmem:[%s0 + $0x120] sm:$0xff]
  %v63 = vld [vmem:[%s0 + $0x128] sm:$0xff]
  %v64 = vld [vmem:[%s0 + $0x130] sm:$0xff]
  %v65 = vld [vmem:[%s0 + $0x138] sm:$0xff]
  %v66 = vld [vmem:[%s0 + $0x140] sm:$0xff]
  %v67 = vld [vmem:[%s0 + $0x148] sm:$0xff]
  %v68 = vld [vmem:[%s0 + $0x150] sm:$0xff]
  %v69 = vld [vmem:[%s0 + $0x158] sm:$0xff]
  %v70 = vld [vmem:[%s0 + $0x160] sm:$0xff]
  %v71 = vld [vmem:[%s0 + $0x168] sm:$0xff]
  %v72 = vld [vmem:[%s0 + $0x170] sm:$0xff]
  %v73 = vld [vmem:[%s0 + $0x178] sm:$0xff]
  %v74 = vld [vmem:[%s0 + $0x180] sm:$0xff]
  %v75 = vld [vmem:[%s0 + $0x188] sm:$0xff]
  %v76 = vld [vmem:[%s0 + $0x190] sm:$0xff]
  %v77 = vld [vmem:[%s0 + $0x198] sm:$0xff]
  %v78 = vld [vmem:[%s0 + $0x1a0] sm:$0xff]
  %v79 = vld [vmem:[%s0 + $0x1a8] sm:$0xff]
  %v80 = vld [vmem:[%s0 + $0x1b0] sm:$0xff]
  %v81 = vld [vmem:[%s0 + $0x1b8] sm:$0xff]
  %v82 = vld [vmem:[%s0 + $0x1c0] sm:$0xff]
  %v83 = vld [vmem:[%s0 + $0x1c8] sm:$0xff]
  %v84 = vld [vmem:[%s0 + $0x1d0] sm:$0xff]
  %v85 = vld [vmem:[%s0 + $0x1d8] sm:$0xff]
  %v86 = vld [vmem:[%s0 + $0x1e0] sm:$0xff]
  %v87 = vld [vmem:[%s0 + $0x1e8] sm:$0xff]
  %v88 = vld [vmem:[%s0 + $0x1f0] sm:$0xff]
  %v89 = vld [vmem:[%s0 + $0x1f8] sm:$0xff]
  %v90 = vld [vmem:[%s1] sm:$0xff]
  %v91 = vld [vmem:[%s1 + $0x8] sm:$0xff]
  %v92 = vld [vmem:[%s1 + $0x10] sm:$0xff]
  %v93 = vld [vmem:[%s1 + $0x18] sm:$0xff]
  %v94 = vld [vmem:[%s2] sm:$0x1]
  %v96 = vlaneseq
  %v97 = vshrl.u32 %v96, 7
  %v98 = vsub.s32 0, %v97
  %v99 = vrot.slane %v94, %v98
  %vm101 = vcmask 261120
  %v103 = vsel %vm101, %v26, 0
  %v106 = vsel %vm101, %v27, 0
  %v109 = vsel %vm101, %v28, 0
  %v112 = vsel %vm101, %v29, 0
  %v115 = vsel %vm101, %v30, 0
  %v118 = vsel %vm101, %v31, 0
  %v121 = vsel %vm101, %v32, 0
  %v124 = vsel %vm101, %v33, 0
  %v127 = vsel %vm101, %v34, 0
  %v130 = vsel %vm101, %v35, 0
  %v133 = vsel %vm101, %v36, 0
  %v136 = vsel %vm101, %v37, 0
  %v139 = vsel %vm101, %v38, 0
  %v142 = vsel %vm101, %v39, 0
  %v145 = vsel %vm101, %v40, 0
  %v148 = vsel %vm101, %v41, 0
  %v151 = vsel %vm101, %v42, 0
  %v154 = vsel %vm101, %v43, 0
  %v157 = vsel %vm101, %v44, 0
  %v160 = vsel %vm101, %v45, 0
  %v163 = vsel %vm101, %v46, 0
  %v166 = vsel %vm101, %v47, 0
  %v169 = vsel %vm101, %v48, 0
  %v172 = vsel %vm101, %v49, 0
  %v175 = vsel %vm101, %v50, 0
  %v178 = vsel %vm101, %v51, 0
  %v181 = vsel %vm101, %v52, 0
  %v184 = vsel %vm101, %v53, 0
  %v187 = vsel %vm101, %v54, 0
  %v190 = vsel %vm101, %v55, 0
  %v193 = vsel %vm101, %v56, 0
  %v196 = vsel %vm101, %v57, 0
  %v199 = vsel %vm101, %v58, 0
  %v202 = vsel %vm101, %v59, 0
  %v205 = vsel %vm101, %v60, 0
  %v208 = vsel %vm101, %v61, 0
  %v211 = vsel %vm101, %v62, 0
  %v214 = vsel %vm101, %v63, 0
  %v217 = vsel %vm101, %v64, 0
  %v220 = vsel %vm101, %v65, 0
  %v223 = vsel %vm101, %v66, 0
  %v226 = vsel %vm101, %v67, 0
  %v229 = vsel %vm101, %v68, 0
  %v232 = vsel %vm101, %v69, 0
  %v235 = vsel %vm101, %v70, 0
  %v238 = vsel %vm101, %v71, 0
  %v241 = vsel %vm101, %v72, 0
  %v244 = vsel %vm101, %v73, 0
  %v247 = vsel %vm101, %v74, 0
  %v250 = vsel %vm101, %v75, 0
  %v253 = vsel %vm101, %v76, 0
  %v256 = vsel %vm101, %v77, 0
  %v259 = vsel %vm101, %v78, 0
  %v262 = vsel %vm101, %v79, 0
  %v265 = vsel %vm101, %v80, 0
  %v268 = vsel %vm101, %v81, 0
  %v271 = vsel %vm101, %v82, 0
  %v274 = vsel %vm101, %v83, 0
  %v277 = vsel %vm101, %v84, 0
  %v280 = vsel %vm101, %v85, 0
  %v283 = vsel %vm101, %v86, 0
  %v286 = vsel %vm101, %v87, 0
  %v289 = vsel %vm101, %v88, 0
  %v292 = vsel %vm101, %v89, 0
  %294 = vmatprep.subr.mxu0 0.0
  %295 = vmatpush1.msra.mxu0 %v90
  %296 = vmatprep.subr.mxu0 0.0
  %297 = vmatpush1.msra.mxu0 %v91
  %298 = vmatprep.subr.mxu0 0.0
  %299 = vmatpush1.msra.mxu0 %v92
  %300 = vmatprep.subr.mxu0 0.0
  %301 = vmatpush1.msra.mxu0 %v93
  %302 = vmatprep.subr.mxu0 0.0
  %303 = vmatpush1.msra.mxu0 0.0
  %304 = vmatprep.subr.mxu0 0.0
  %305 = vmatpush1.msra.mxu0 0.0
  %306 = vmatprep.subr.mxu0 0.0
  %307 = vmatpush1.msra.mxu0 0.0
  %308 = vmatprep.subr.mxu0 0.0
  %309 = vmatpush1.msra.mxu0 0.0
  %310 = vmatprep.subr.mxu0 0.0
  %311 = vmatpush1.msra.mxu0 0.0
  %312 = vmatprep.subr.mxu0 0.0
  %313 = vmatpush1.msra.mxu0 0.0
  %314 = vmatprep.subr.mxu0 0.0
  %315 = vmatpush1.msra.mxu0 0.0
  %316 = vmatprep.subr.mxu0 0.0
  %317 = vmatpush1.msra.mxu0 0.0
  %318 = vmatprep.subr.mxu0 0.0
  %319 = vmatpush1.msra.mxu0 0.0
  %320 = vmatprep.subr.mxu0 0.0
  %321 = vmatpush1.msra.mxu0 0.0
  %322 = vmatprep.subr.mxu0 0.0
  %323 = vmatpush1.msra.mxu0 0.0
  %324 = vmatprep.subr.mxu0 0.0
  %325 = vmatpush1.msra.mxu0 0.0
  %326 = vmatprep.subr.mxu0 0.0
  %327 = vmatpush1.msra.mxu0 0.0
  %328 = vmatprep.subr.mxu0 0.0
  %329 = vmatpush1.msra.mxu0 0.0
  %330 = vmatprep.subr.mxu0 0.0
  %331 = vmatpush1.msra.mxu0 0.0
  %332 = vmatprep.subr.mxu0 0.0
  %333 = vmatpush1.msra.mxu0 0.0
  %334 = vmatprep.subr.mxu0 0.0
  %335 = vmatpush1.msra.mxu0 0.0
  %336 = vmatprep.subr.mxu0 0.0
  %337 = vmatpush1.msra.mxu0 0.0
  %338 = vmatprep.subr.mxu0 0.0
  %339 = vmatpush1.msra.mxu0 0.0
  %340 = vmatprep.subr.mxu0 0.0
  %341 = vmatpush1.msra.mxu0 0.0
  %342 = vmatprep.subr.mxu0 0.0
  %343 = vmatpush1.msra.mxu0 0.0
  %344 = vmatprep.subr.mxu0 0.0
  %345 = vmatpush1.msra.mxu0 0.0
  %346 = vmatprep.subr.mxu0 0.0
  %347 = vmatpush1.msra.mxu0 0.0
  %348 = vmatprep.subr.mxu0 0.0
  %349 = vmatpush1.msra.mxu0 0.0
  %350 = vmatprep.subr.mxu0 0.0
  %351 = vmatpush1.msra.mxu0 0.0
  %352 = vmatprep.subr.mxu0 0.0
  %353 = vmatpush1.msra.mxu0 0.0
  %354 = vmatprep.subr.mxu0 0.0
  %355 = vmatpush1.msra.mxu0 0.0
  %356 = vmatprep.subr.mxu0 0.0
  %357 = vmatpush1.msra.mxu0 0.0
  %358 = vmatprep.mubr.f32.mxu0 0.0
  %359 = vmatmul.mubr.f32.gmra.mrb[0].mxu0 %v103
  %v360 = vpop.f32.mrb[0].mxu0
  %v361 = vadd.f32 %v99, %v360
  %v362 = vpop.f32.mrb[0].mxu0
  %363 = vmatprep.mubr.f32.mxu0 0.0
  %364 = vmatmul.mubr.f32.gmra.mrb[0].mxu0 %v106
  %v365 = vpop.f32.mrb[0].mxu0
  %v366 = vadd.f32 %v99, %v365
  %v367 = vpop.f32.mrb[0].mxu0
  %368 = vmatprep.mubr.f32.mxu0 0.0
  %369 = vmatmul.mubr.f32.gmra.mrb[0].mxu0 %v109
  %v370 = vpop.f32.mrb[0].mxu0
  %v371 = vadd.f32 %v99, %v370
  %v372 = vpop.f32.mrb[0].mxu0
  %373 = vmatprep.mubr.f32.mxu0 0.0
  %374 = vmatmul.mubr.f32.gmra.mrb[0].mxu0 %v112
  %v375 = vpop.f32.mrb[0].mxu0
  %v376 = vadd.f32 %v99, %v375
  %v377 = vpop.f32.mrb[0].mxu0
  %378 = vmatprep.mubr.f32.mxu0 0.0
  %379 = vmatmul.mubr.f32.gmra.mrb[0].mxu0 %v115
  %v380 = vpop.f32.mrb[0].mxu0
  %v381 = vadd.f32 %v99, %v380
  %v382 = vpop.f32.mrb[0].mxu0
  %383 = vmatprep.mubr.f32.mxu0 0.0
  %384 = vmatmul.mubr.f32.gmra.mrb[0].mxu0 %v118
  %v385 = vpop.f32.mrb[0].mxu0
  %v386 = vadd.f32 %v99, %v385
  %v387 = vpop.f32.mrb[0].mxu0
  %388 = vmatprep.mubr.f32.mxu0 0.0
  %389 = vmatmul.mubr.f32.gmra.mrb[0].mxu0 %v121
  %v390 = vpop.f32.mrb[0].mxu0
  %v391 = vadd.f32 %v99, %v390
  %v392 = vpop.f32.mrb[0].mxu0
  %393 = vmatprep.mubr.f32.mxu0 0.0
  %394 = vmatmul.mubr.f32.gmra.mrb[0].mxu0 %v124
  %v395 = vpop.f32.mrb[0].mxu0
  %v396 = vadd.f32 %v99, %v395
  %v397 = vpop.f32.mrb[0].mxu0
  %398 = vmatprep.mubr.f32.mxu0 0.0
  %399 = vmatmul.mubr.f32.gmra.mrb[0].mxu0 %v127
  %v400 = vpop.f32.mrb[0].mxu0
  %v401 = vadd.f32 %v99, %v400
  %v402 = vpop.f32.mrb[0].mxu0
  %403 = vmatprep.mubr.f32.mxu0 0.0
  %404 = vmatmul.mubr.f32.gmra.mrb[0].mxu0 %v130
  %v405 = vpop.f32.mrb[0].mxu0
  %v406 = vadd.f32 %v99, %v405
  %v407 = vpop.f32.mrb[0].mxu0
  %408 = vmatprep.mubr.f32.mxu0 0.0
  %409 = vmatmul.mubr.f32.gmra.mrb[0].mxu0 %v133
  %v410 = vpop.f32.mrb[0].mxu0
  %v411 = vadd.f32 %v99, %v410
  %v412 = vpop.f32.mrb[0].mxu0
  %413 = vmatprep.mubr.f32.mxu0 0.0
  %414 = vmatmul.mubr.f32.gmra.mrb[0].mxu0 %v136
  %v415 = vpop.f32.mrb[0].mxu0
  %v416 = vadd.f32 %v99, %v415
  %v417 = vpop.f32.mrb[0].mxu0
  %418 = vmatprep.mubr.f32.mxu0 0.0
  %419 = vmatmul.mubr.f32.gmra.mrb[0].mxu0 %v139
  %v420 = vpop.f32.mrb[0].mxu0
  %v421 = vadd.f32 %v99, %v420
  %v422 = vpop.f32.mrb[0].mxu0
  %423 = vmatprep.mubr.f32.mxu0 0.0
  %424 = vmatmul.mubr.f32.gmra.mrb[0].mxu0 %v142
  %v425 = vpop.f32.mrb[0].mxu0
  %v426 = vadd.f32 %v99, %v425
  %v427 = vpop.f32.mrb[0].mxu0
  %428 = vmatprep.mubr.f32.mxu0 0.0
  %429 = vmatmul.mubr.f32.gmra.mrb[0].mxu0 %v145
  %v430 = vpop.f32.mrb[0].mxu0
  %v431 = vadd.f32 %v99, %v430
  %v432 = vpop.f32.mrb[0].mxu0
  %433 = vmatprep.mubr.f32.mxu0 0.0
  %434 = vmatmul.mubr.f32.gmra.mrb[0].mxu0 %v148
  %v435 = vpop.f32.mrb[0].mxu0
  %v436 = vadd.f32 %v99, %v435
  %v437 = vpop.f32.mrb[0].mxu0
  %438 = vmatprep.mubr.f32.mxu0 0.0
  %439 = vmatmul.mubr.f32.gmra.mrb[0].mxu0 %v151
  %v440 = vpop.f32.mrb[0].mxu0
  %v441 = vadd.f32 %v99, %v440
  %v442 = vpop.f32.mrb[0].mxu0
  %443 = vmatprep.mubr.f32.mxu0 0.0
  %444 = vmatmul.mubr.f32.gmra.mrb[0].mxu0 %v154
  %v445 = vpop.f32.mrb[0].mxu0
  %v446 = vadd.f32 %v99, %v445
  %v447 = vpop.f32.mrb[0].mxu0
  %448 = vmatprep.mubr.f32.mxu0 0.0
  %449 = vmatmul.mubr.f32.gmra.mrb[0].mxu0 %v157
  %v450 = vpop.f32.mrb[0].mxu0
  %v451 = vadd.f32 %v99, %v450
  %v452 = vpop.f32.mrb[0].mxu0
  %453 = vmatprep.mubr.f32.mxu0 0.0
  %454 = vmatmul.mubr.f32.gmra.mrb[0].mxu0 %v160
  %v455 = vpop.f32.mrb[0].mxu0
  %v456 = vadd.f32 %v99, %v455
  %v457 = vpop.f32.mrb[0].mxu0
  %458 = vmatprep.mubr.f32.mxu0 0.0
  %459 = vmatmul.mubr.f32.gmra.mrb[0].mxu0 %v163
  %v460 = vpop.f32.mrb[0].mxu0
  %v461 = vadd.f32 %v99, %v460
  %v462 = vpop.f32.mrb[0].mxu0
  %463 = vmatprep.mubr.f32.mxu0 0.0
  %464 = vmatmul.mubr.f32.gmra.mrb[0].mxu0 %v166
  %v465 = vpop.f32.mrb[0].mxu0
  %v466 = vadd.f32 %v99, %v465
  %v467 = vpop.f32.mrb[0].mxu0
  %468 = vmatprep.mubr.f32.mxu0 0.0
  %469 = vmatmul.mubr.f32.gmra.mrb[0].mxu0 %v169
  %v470 = vpop.f32.mrb[0].mxu0
  %v471 = vadd.f32 %v99, %v470
  %v472 = vpop.f32.mrb[0].mxu0
  %473 = vmatprep.mubr.f32.mxu0 0.0
  %474 = vmatmul.mubr.f32.gmra.mrb[0].mxu0 %v172
  %v475 = vpop.f32.mrb[0].mxu0
  %v476 = vadd.f32 %v99, %v475
  %v477 = vpop.f32.mrb[0].mxu0
  %478 = vmatprep.mubr.f32.mxu0 0.0
  %479 = vmatmul.mubr.f32.gmra.mrb[0].mxu0 %v175
  %v480 = vpop.f32.mrb[0].mxu0
  %v481 = vadd.f32 %v99, %v480
  %v482 = vpop.f32.mrb[0].mxu0
  %483 = vmatprep.mubr.f32.mxu0 0.0
  %484 = vmatmul.mubr.f32.gmra.mrb[0].mxu0 %v178
  %v485 = vpop.f32.mrb[0].mxu0
  %v486 = vadd.f32 %v99, %v485
  %v487 = vpop.f32.mrb[0].mxu0
  %488 = vmatprep.mubr.f32.mxu0 0.0
  %489 = vmatmul.mubr.f32.gmra.mrb[0].mxu0 %v181
  %v490 = vpop.f32.mrb[0].mxu0
  %v491 = vadd.f32 %v99, %v490
  %v492 = vpop.f32.mrb[0].mxu0
  %493 = vmatprep.mubr.f32.mxu0 0.0
  %494 = vmatmul.mubr.f32.gmra.mrb[0].mxu0 %v184
  %v495 = vpop.f32.mrb[0].mxu0
  %v496 = vadd.f32 %v99, %v495
  %v497 = vpop.f32.mrb[0].mxu0
  %498 = vmatprep.mubr.f32.mxu0 0.0
  %499 = vmatmul.mubr.f32.gmra.mrb[0].mxu0 %v187
  %v500 = vpop.f32.mrb[0].mxu0
  %v501 = vadd.f32 %v99, %v500
  %v502 = vpop.f32.mrb[0].mxu0
  %503 = vmatprep.mubr.f32.mxu0 0.0
  %504 = vmatmul.mubr.f32.gmra.mrb[0].mxu0 %v190
  %v505 = vpop.f32.mrb[0].mxu0
  %v506 = vadd.f32 %v99, %v505
  %v507 = vpop.f32.mrb[0].mxu0
  %508 = vmatprep.mubr.f32.mxu0 0.0
  %509 = vmatmul.mubr.f32.gmra.mrb[0].mxu0 %v193
  %v510 = vpop.f32.mrb[0].mxu0
  %v511 = vadd.f32 %v99, %v510
  %v512 = vpop.f32.mrb[0].mxu0
  %513 = vmatprep.mubr.f32.mxu0 0.0
  %514 = vmatmul.mubr.f32.gmra.mrb[0].mxu0 %v196
  %v515 = vpop.f32.mrb[0].mxu0
  %v516 = vadd.f32 %v99, %v515
  %v517 = vpop.f32.mrb[0].mxu0
  %518 = vmatprep.mubr.f32.mxu0 0.0
  %519 = vmatmul.mubr.f32.gmra.mrb[0].mxu0 %v199
  %v520 = vpop.f32.mrb[0].mxu0
  %v521 = vadd.f32 %v99, %v520
  %v522 = vpop.f32.mrb[0].mxu0
  %523 = vmatprep.mubr.f32.mxu0 0.0
  %524 = vmatmul.mubr.f32.gmra.mrb[0].mxu0 %v202
  %v525 = vpop.f32.mrb[0].mxu0
  %v526 = vadd.f32 %v99, %v525
  %v527 = vpop.f32.mrb[0].mxu0
  %528 = vmatprep.mubr.f32.mxu0 0.0
  %529 = vmatmul.mubr.f32.gmra.mrb[0].mxu0 %v205
  %v530 = vpop.f32.mrb[0].mxu0
  %v531 = vadd.f32 %v99, %v530
  %v532 = vpop.f32.mrb[0].mxu0
  %533 = vmatprep.mubr.f32.mxu0 0.0
  %534 = vmatmul.mubr.f32.gmra.mrb[0].mxu0 %v208
  %v535 = vpop.f32.mrb[0].mxu0
  %v536 = vadd.f32 %v99, %v535
  %v537 = vpop.f32.mrb[0].mxu0
  %538 = vmatprep.mubr.f32.mxu0 0.0
  %539 = vmatmul.mubr.f32.gmra.mrb[0].mxu0 %v211
  %v540 = vpop.f32.mrb[0].mxu0
  %v541 = vadd.f32 %v99, %v540
  %v542 = vpop.f32.mrb[0].mxu0
  %543 = vmatprep.mubr.f32.mxu0 0.0
  %544 = vmatmul.mubr.f32.gmra.mrb[0].mxu0 %v214
  %v545 = vpop.f32.mrb[0].mxu0
  %v546 = vadd.f32 %v99, %v545
  %v547 = vpop.f32.mrb[0].mxu0
  %548 = vmatprep.mubr.f32.mxu0 0.0
  %549 = vmatmul.mubr.f32.gmra.mrb[0].mxu0 %v217
  %v550 = vpop.f32.mrb[0].mxu0
  %v551 = vadd.f32 %v99, %v550
  %v552 = vpop.f32.mrb[0].mxu0
  %553 = vmatprep.mubr.f32.mxu0 0.0
  %554 = vmatmul.mubr.f32.gmra.mrb[0].mxu0 %v220
  %v555 = vpop.f32.mrb[0].mxu0
  %v556 = vadd.f32 %v99, %v555
  %v557 = vpop.f32.mrb[0].mxu0
  %558 = vmatprep.mubr.f32.mxu0 0.0
  %559 = vmatmul.mubr.f32.gmra.mrb[0].mxu0 %v223
  %v560 = vpop.f32.mrb[0].mxu0
  %v561 = vadd.f32 %v99, %v560
  %v562 = vpop.f32.mrb[0].mxu0
  %563 = vmatprep.mubr.f32.mxu0 0.0
  %564 = vmatmul.mubr.f32.gmra.mrb[0].mxu0 %v226
  %v565 = vpop.f32.mrb[0].mxu0
  %v566 = vadd.f32 %v99, %v565
  %v567 = vpop.f32.mrb[0].mxu0
  %568 = vmatprep.mubr.f32.mxu0 0.0
  %569 = vmatmul.mubr.f32.gmra.mrb[0].mxu0 %v229
  %v570 = vpop.f32.mrb[0].mxu0
  %v571 = vadd.f32 %v99, %v570
  %v572 = vpop.f32.mrb[0].mxu0
  %573 = vmatprep.mubr.f32.mxu0 0.0
  %574 = vmatmul.mubr.f32.gmra.mrb[0].mxu0 %v232
  %v575 = vpop.f32.mrb[0].mxu0
  %v576 = vadd.f32 %v99, %v575
  %v577 = vpop.f32.mrb[0].mxu0
  %578 = vmatprep.mubr.f32.mxu0 0.0
  %579 = vmatmul.mubr.f32.gmra.mrb[0].mxu0 %v235
  %v580 = vpop.f32.mrb[0].mxu0
  %v581 = vadd.f32 %v99, %v580
  %v582 = vpop.f32.mrb[0].mxu0
  %583 = vmatprep.mubr.f32.mxu0 0.0
  %584 = vmatmul.mubr.f32.gmra.mrb[0].mxu0 %v238
  %v585 = vpop.f32.mrb[0].mxu0
  %v586 = vadd.f32 %v99, %v585
  %v587 = vpop.f32.mrb[0].mxu0
  %588 = vmatprep.mubr.f32.mxu0 0.0
  %589 = vmatmul.mubr.f32.gmra.mrb[0].mxu0 %v241
  %v590 = vpop.f32.mrb[0].mxu0
  %v591 = vadd.f32 %v99, %v590
  %v592 = vpop.f32.mrb[0].mxu0
  %593 = vmatprep.mubr.f32.mxu0 0.0
  %594 = vmatmul.mubr.f32.gmra.mrb[0].mxu0 %v244
  %v595 = vpop.f32.mrb[0].mxu0
  %v596 = vadd.f32 %v99, %v595
  %v597 = vpop.f32.mrb[0].mxu0
  %598 = vmatprep.mubr.f32.mxu0 0.0
  %599 = vmatmul.mubr.f32.gmra.mrb[0].mxu0 %v247
  %v600 = vpop.f32.mrb[0].mxu0
  %v601 = vadd.f32 %v99, %v600
  %v602 = vpop.f32.mrb[0].mxu0
  %603 = vmatprep.mubr.f32.mxu0 0.0
  %604 = vmatmul.mubr.f32.gmra.mrb[0].mxu0 %v250
  %v605 = vpop.f32.mrb[0].mxu0
  %v606 = vadd.f32 %v99, %v605
  %v607 = vpop.f32.mrb[0].mxu0
  %608 = vmatprep.mubr.f32.mxu0 0.0
  %609 = vmatmul.mubr.f32.gmra.mrb[0].mxu0 %v253
  %v610 = vpop.f32.mrb[0].mxu0
  %v611 = vadd.f32 %v99, %v610
  %v612 = vpop.f32.mrb[0].mxu0
  %613 = vmatprep.mubr.f32.mxu0 0.0
  %614 = vmatmul.mubr.f32.gmra.mrb[0].mxu0 %v256
  %v615 = vpop.f32.mrb[0].mxu0
  %v616 = vadd.f32 %v99, %v615
  %v617 = vpop.f32.mrb[0].mxu0
  %618 = vmatprep.mubr.f32.mxu0 0.0
  %619 = vmatmul.mubr.f32.gmra.mrb[0].mxu0 %v259
  %v620 = vpop.f32.mrb[0].mxu0
  %v621 = vadd.f32 %v99, %v620
  %v622 = vpop.f32.mrb[0].mxu0
  %623 = vmatprep.mubr.f32.mxu0 0.0
  %624 = vmatmul.mubr.f32.gmra.mrb[0].mxu0 %v262
  %v625 = vpop.f32.mrb[0].mxu0
  %v626 = vadd.f32 %v99, %v625
  %v627 = vpop.f32.mrb[0].mxu0
  %628 = vmatprep.mubr.f32.mxu0 0.0
  %629 = vmatmul.mubr.f32.gmra.mrb[0].mxu0 %v265
  %v630 = vpop.f32.mrb[0].mxu0
  %v631 = vadd.f32 %v99, %v630
  %v632 = vpop.f32.mrb[0].mxu0
  %633 = vmatprep.mubr.f32.mxu0 0.0
  %634 = vmatmul.mubr.f32.gmra.mrb[0].mxu0 %v268
  %v635 = vpop.f32.mrb[0].mxu0
  %v636 = vadd.f32 %v99, %v635
  %v637 = vpop.f32.mrb[0].mxu0
  %638 = vmatprep.mubr.f32.mxu0 0.0
  %639 = vmatmul.mubr.f32.gmra.mrb[0].mxu0 %v271
  %v640 = vpop.f32.mrb[0].mxu0
  %v641 = vadd.f32 %v99, %v640
  %v642 = vpop.f32.mrb[0].mxu0
  %643 = vmatprep.mubr.f32.mxu0 0.0
  %644 = vmatmul.mubr.f32.gmra.mrb[0].mxu0 %v274
  %v645 = vpop.f32.mrb[0].mxu0
  %v646 = vadd.f32 %v99, %v645
  %v647 = vpop.f32.mrb[0].mxu0
  %648 = vmatprep.mubr.f32.mxu0 0.0
  %649 = vmatmul.mubr.f32.gmra.mrb[0].mxu0 %v277
  %v650 = vpop.f32.mrb[0].mxu0
  %v651 = vadd.f32 %v99, %v650
  %v652 = vpop.f32.mrb[0].mxu0
  %653 = vmatprep.mubr.f32.mxu0 0.0
  %654 = vmatmul.mubr.f32.gmra.mrb[0].mxu0 %v280
  %v655 = vpop.f32.mrb[0].mxu0
  %v656 = vadd.f32 %v99, %v655
  %v657 = vpop.f32.mrb[0].mxu0
  %658 = vmatprep.mubr.f32.mxu0 0.0
  %659 = vmatmul.mubr.f32.gmra.mrb[0].mxu0 %v283
  %v660 = vpop.f32.mrb[0].mxu0
  %v661 = vadd.f32 %v99, %v660
  %v662 = vpop.f32.mrb[0].mxu0
  %663 = vmatprep.mubr.f32.mxu0 0.0
  %664 = vmatmul.mubr.f32.gmra.mrb[0].mxu0 %v286
  %v665 = vpop.f32.mrb[0].mxu0
  %v666 = vadd.f32 %v99, %v665
  %v667 = vpop.f32.mrb[0].mxu0
  %668 = vmatprep.mubr.f32.mxu0 0.0
  %669 = vmatmul.mubr.f32.gmra.mrb[0].mxu0 %v289
  %v670 = vpop.f32.mrb[0].mxu0
  %v671 = vadd.f32 %v99, %v670
  %v672 = vpop.f32.mrb[0].mxu0
  %673 = vmatprep.mubr.f32.mxu0 0.0
  %674 = vmatmul.mubr.f32.gmra.mrb[0].mxu0 %v292
  %v675 = vpop.f32.mrb[0].mxu0
  %v676 = vadd.f32 %v99, %v675
  %v677 = vpop.f32.mrb[0].mxu0
  %678 = vdwg.mxu0
  %v679 = vmax.f32 %v361, 0.0
  %v680 = vmax.f32 %v366, 0.0
  %v681 = vmax.f32 %v371, 0.0
  %v682 = vmax.f32 %v376, 0.0
  %v683 = vmax.f32 %v381, 0.0
  %v684 = vmax.f32 %v386, 0.0
  %v685 = vmax.f32 %v391, 0.0
  %v686 = vmax.f32 %v396, 0.0
  %v687 = vmax.f32 %v401, 0.0
  %v688 = vmax.f32 %v406, 0.0
  %v689 = vmax.f32 %v411, 0.0
  %v690 = vmax.f32 %v416, 0.0
  %v691 = vmax.f32 %v421, 0.0
  %v692 = vmax.f32 %v426, 0.0
  %v693 = vmax.f32 %v431, 0.0
  %v694 = vmax.f32 %v436, 0.0
  %v695 = vmax.f32 %v441, 0.0
  %v696 = vmax.f32 %v446, 0.0
  %v697 = vmax.f32 %v451, 0.0
  %v698 = vmax.f32 %v456, 0.0
  %v699 = vmax.f32 %v461, 0.0
  %v700 = vmax.f32 %v466, 0.0
  %v701 = vmax.f32 %v471, 0.0
  %v702 = vmax.f32 %v476, 0.0
  %v703 = vmax.f32 %v481, 0.0
  %v704 = vmax.f32 %v486, 0.0
  %v705 = vmax.f32 %v491, 0.0
  %v706 = vmax.f32 %v496, 0.0
  %v707 = vmax.f32 %v501, 0.0
  %v708 = vmax.f32 %v506, 0.0
  %v709 = vmax.f32 %v511, 0.0
  %v710 = vmax.f32 %v516, 0.0
  %v711 = vmax.f32 %v521, 0.0
  %v712 = vmax.f32 %v526, 0.0
  %v713 = vmax.f32 %v531, 0.0
  %v714 = vmax.f32 %v536, 0.0
  %v715 = vmax.f32 %v541, 0.0
  %v716 = vmax.f32 %v546, 0.0
  %v717 = vmax.f32 %v551, 0.0
  %v718 = vmax.f32 %v556, 0.0
  %v719 = vmax.f32 %v561, 0.0
  %v720 = vmax.f32 %v566, 0.0
  %v721 = vmax.f32 %v571, 0.0
  %v722 = vmax.f32 %v576, 0.0
  %v723 = vmax.f32 %v581, 0.0
  %v724 = vmax.f32 %v586, 0.0
  %v725 = vmax.f32 %v591, 0.0
  %v726 = vmax.f32 %v596, 0.0
  %v727 = vmax.f32 %v601, 0.0
  %v728 = vmax.f32 %v606, 0.0
  %v729 = vmax.f32 %v611, 0.0
  %v730 = vmax.f32 %v616, 0.0
  %v731 = vmax.f32 %v621, 0.0
  %v732 = vmax.f32 %v626, 0.0
  %v733 = vmax.f32 %v631, 0.0
  %v734 = vmax.f32 %v636, 0.0
  %v735 = vmax.f32 %v641, 0.0
  %v736 = vmax.f32 %v646, 0.0
  %v737 = vmax.f32 %v651, 0.0
  %v738 = vmax.f32 %v656, 0.0
  %v739 = vmax.f32 %v661, 0.0
  %v740 = vmax.f32 %v666, 0.0
  %v741 = vmax.f32 %v671, 0.0
  %v742 = vmax.f32 %v676, 0.0
  %v743 = vsel %vm101, %v679, 0.0
  %v744 = vsel %vm101, %v680, 0.0
  %v745 = vadd.f32 %v743, %v744
  %v746 = vsel %vm101, %v681, 0.0
  %v747 = vadd.f32 %v745, %v746
  %v748 = vsel %vm101, %v682, 0.0
  %v749 = vadd.f32 %v747, %v748
  %v750 = vsel %vm101, %v683, 0.0
  %v751 = vadd.f32 %v749, %v750
  %v752 = vsel %vm101, %v684, 0.0
  %v753 = vadd.f32 %v751, %v752
  %v754 = vsel %vm101, %v685, 0.0
  %v755 = vadd.f32 %v753, %v754
  %v756 = vsel %vm101, %v686, 0.0
  %v757 = vadd.f32 %v755, %v756
  %v758 = vsel %vm101, %v687, 0.0
  %v759 = vadd.f32 %v757, %v758
  %v760 = vsel %vm101, %v688, 0.0
  %v761 = vadd.f32 %v759, %v760
  %v762 = vsel %vm101, %v689, 0.0
  %v763 = vadd.f32 %v761, %v762
  %v764 = vsel %vm101, %v690, 0.0
  %v765 = vadd.f32 %v763, %v764
  %v766 = vsel %vm101, %v691, 0.0
  %v767 = vadd.f32 %v765, %v766
  %v768 = vsel %vm101, %v692, 0.0
  %v769 = vadd.f32 %v767, %v768
  %v770 = vsel %vm101, %v693, 0.0
  %v771 = vadd.f32 %v769, %v770
  %v772 = vsel %vm101, %v694, 0.0
  %v773 = vadd.f32 %v771, %v772
  %v774 = vsel %vm101, %v695, 0.0
  %v775 = vadd.f32 %v773, %v774
  %v776 = vsel %vm101, %v696, 0.0
  %v777 = vadd.f32 %v775, %v776
  %v778 = vsel %vm101, %v697, 0.0
  %v779 = vadd.f32 %v777, %v778
  %v780 = vsel %vm101, %v698, 0.0
  %v781 = vadd.f32 %v779, %v780
  %v782 = vsel %vm101, %v699, 0.0
  %v783 = vadd.f32 %v781, %v782
  %v784 = vsel %vm101, %v700, 0.0
  %v785 = vadd.f32 %v783, %v784
  %v786 = vsel %vm101, %v701, 0.0
  %v787 = vadd.f32 %v785, %v786
  %v788 = vsel %vm101, %v702, 0.0
  %v789 = vadd.f32 %v787, %v788
  %v790 = vsel %vm101, %v703, 0.0
  %v791 = vadd.f32 %v789, %v790
  %v792 = vsel %vm101, %v704, 0.0
  %v793 = vadd.f32 %v791, %v792
  %v794 = vsel %vm101, %v705, 0.0
  %v795 = vadd.f32 %v793, %v794
  %v796 = vsel %vm101, %v706, 0.0
  %v797 = vadd.f32 %v795, %v796
  %v798 = vsel %vm101, %v707, 0.0
  %v799 = vadd.f32 %v797, %v798
  %v800 = vsel %vm101, %v708, 0.0
  %v801 = vadd.f32 %v799, %v800
  %v802 = vsel %vm101, %v709, 0.0
  %v803 = vadd.f32 %v801, %v802
  %v804 = vsel %vm101, %v710, 0.0
  %v805 = vadd.f32 %v803, %v804
  %v806 = vsel %vm101, %v711, 0.0
  %v807 = vadd.f32 %v805, %v806
  %v808 = vsel %vm101, %v712, 0.0
  %v809 = vadd.f32 %v807, %v808
  %v810 = vsel %vm101, %v713, 0.0
  %v811 = vadd.f32 %v809, %v810
  %v812 = vsel %vm101, %v714, 0.0
  %v813 = vadd.f32 %v811, %v812
  %v814 = vsel %vm101, %v715, 0.0
  %v815 = vadd.f32 %v813, %v814
  %v816 = vsel %vm101, %v716, 0.0
  %v817 = vadd.f32 %v815, %v816
  %v818 = vsel %vm101, %v717, 0.0
  %v819 = vadd.f32 %v817, %v818
  %v820 = vsel %vm101, %v718, 0.0
  %v821 = vadd.f32 %v819, %v820
  %v822 = vsel %vm101, %v719, 0.0
  %v823 = vadd.f32 %v821, %v822
  %v824 = vsel %vm101, %v720, 0.0
  %v825 = vadd.f32 %v823, %v824
  %v826 = vsel %vm101, %v721, 0.0
  %v827 = vadd.f32 %v825, %v826
  %v828 = vsel %vm101, %v722, 0.0
  %v829 = vadd.f32 %v827, %v828
  %v830 = vsel %vm101, %v723, 0.0
  %v831 = vadd.f32 %v829, %v830
  %v832 = vsel %vm101, %v724, 0.0
  %v833 = vadd.f32 %v831, %v832
  %v834 = vsel %vm101, %v725, 0.0
  %v835 = vadd.f32 %v833, %v834
  %v836 = vsel %vm101, %v726, 0.0
  %v837 = vadd.f32 %v835, %v836
  %v838 = vsel %vm101, %v727, 0.0
  %v839 = vadd.f32 %v837, %v838
  %v840 = vsel %vm101, %v728, 0.0
  %v841 = vadd.f32 %v839, %v840
  %v842 = vsel %vm101, %v729, 0.0
  %v843 = vadd.f32 %v841, %v842
  %v844 = vsel %vm101, %v730, 0.0
  %v845 = vadd.f32 %v843, %v844
  %v846 = vsel %vm101, %v731, 0.0
  %v847 = vadd.f32 %v845, %v846
  %v848 = vsel %vm101, %v732, 0.0
  %v849 = vadd.f32 %v847, %v848
  %v850 = vsel %vm101, %v733, 0.0
  %v851 = vadd.f32 %v849, %v850
  %v852 = vsel %vm101, %v734, 0.0
  %v853 = vadd.f32 %v851, %v852
  %v854 = vsel %vm101, %v735, 0.0
  %v855 = vadd.f32 %v853, %v854
  %v856 = vsel %vm101, %v736, 0.0
  %v857 = vadd.f32 %v855, %v856
  %v858 = vsel %vm101, %v737, 0.0
  %v859 = vadd.f32 %v857, %v858
  %v860 = vsel %vm101, %v738, 0.0
  %v861 = vadd.f32 %v859, %v860
  %v862 = vsel %vm101, %v739, 0.0
  %v863 = vadd.f32 %v861, %v862
  %v864 = vsel %vm101, %v740, 0.0
  %v865 = vadd.f32 %v863, %v864
  %v866 = vsel %vm101, %v741, 0.0
  %v867 = vadd.f32 %v865, %v866
  %v868 = vsel %vm101, %v742, 0.0
  %v869 = vadd.f32 %v867, %v868
  %v870 = vrot.slane %v869, 4
  %v871 = vadd.f32 %v869, %v870
  %v872 = vrot.slane %v871, 2
  %v873 = vadd.f32 %v871, %v872
  %v874 = vrot.slane %v873, 1
  %v875 = vadd.f32 %v873, %v874
  %v876 = vmul.f32 %v679, %v679
  %v877 = vmul.f32 %v680, %v680
  %v878 = vmul.f32 %v681, %v681
  %v879 = vmul.f32 %v682, %v682
  %v880 = vmul.f32 %v683, %v683
  %v881 = vmul.f32 %v684, %v684
  %v882 = vmul.f32 %v685, %v685
  %v883 = vmul.f32 %v686, %v686
  %v884 = vmul.f32 %v687, %v687
  %v885 = vmul.f32 %v688, %v688
  %v886 = vmul.f32 %v689, %v689
  %v887 = vmul.f32 %v690, %v690
  %v888 = vmul.f32 %v691, %v691
  %v889 = vmul.f32 %v692, %v692
  %v890 = vmul.f32 %v693, %v693
  %v891 = vmul.f32 %v694, %v694
  %v892 = vmul.f32 %v695, %v695
  %v893 = vmul.f32 %v696, %v696
  %v894 = vmul.f32 %v697, %v697
  %v895 = vmul.f32 %v698, %v698
  %v896 = vmul.f32 %v699, %v699
  %v897 = vmul.f32 %v700, %v700
  %v898 = vmul.f32 %v701, %v701
  %v899 = vmul.f32 %v702, %v702
  %v900 = vmul.f32 %v703, %v703
  %v901 = vmul.f32 %v704, %v704
  %v902 = vmul.f32 %v705, %v705
  %v903 = vmul.f32 %v706, %v706
  %v904 = vmul.f32 %v707, %v707
  %v905 = vmul.f32 %v708, %v708
  %v906 = vmul.f32 %v709, %v709
  %v907 = vmul.f32 %v710, %v710
  %v908 = vmul.f32 %v711, %v711
  %v909 = vmul.f32 %v712, %v712
  %v910 = vmul.f32 %v713, %v713
  %v911 = vmul.f32 %v714, %v714
  %v912 = vmul.f32 %v715, %v715
  %v913 = vmul.f32 %v716, %v716
  %v914 = vmul.f32 %v717, %v717
  %v915 = vmul.f32 %v718, %v718
  %v916 = vmul.f32 %v719, %v719
  %v917 = vmul.f32 %v720, %v720
  %v918 = vmul.f32 %v721, %v721
  %v919 = vmul.f32 %v722, %v722
  %v920 = vmul.f32 %v723, %v723
  %v921 = vmul.f32 %v724, %v724
  %v922 = vmul.f32 %v725, %v725
  %v923 = vmul.f32 %v726, %v726
  %v924 = vmul.f32 %v727, %v727
  %v925 = vmul.f32 %v728, %v728
  %v926 = vmul.f32 %v729, %v729
  %v927 = vmul.f32 %v730, %v730
  %v928 = vmul.f32 %v731, %v731
  %v929 = vmul.f32 %v732, %v732
  %v930 = vmul.f32 %v733, %v733
  %v931 = vmul.f32 %v734, %v734
  %v932 = vmul.f32 %v735, %v735
  %v933 = vmul.f32 %v736, %v736
  %v934 = vmul.f32 %v737, %v737
  %v935 = vmul.f32 %v738, %v738
  %v936 = vmul.f32 %v739, %v739
  %v937 = vmul.f32 %v740, %v740
  %v938 = vmul.f32 %v741, %v741
  %v939 = vmul.f32 %v742, %v742
  %v940 = vsel %vm101, %v876, 0.0
  %v941 = vsel %vm101, %v877, 0.0
  %v942 = vadd.f32 %v940, %v941
  %v943 = vsel %vm101, %v878, 0.0
  %v944 = vadd.f32 %v942, %v943
  %v945 = vsel %vm101, %v879, 0.0
  %v946 = vadd.f32 %v944, %v945
  %v947 = vsel %vm101, %v880, 0.0
  %v948 = vadd.f32 %v946, %v947
  %v949 = vsel %vm101, %v881, 0.0
  %v950 = vadd.f32 %v948, %v949
  %v951 = vsel %vm101, %v882, 0.0
  %v952 = vadd.f32 %v950, %v951
  %v953 = vsel %vm101, %v883, 0.0
  %v954 = vadd.f32 %v952, %v953
  %v955 = vsel %vm101, %v884, 0.0
  %v956 = vadd.f32 %v954, %v955
  %v957 = vsel %vm101, %v885, 0.0
  %v958 = vadd.f32 %v956, %v957
  %v959 = vsel %vm101, %v886, 0.0
  %v960 = vadd.f32 %v958, %v959
  %v961 = vsel %vm101, %v887, 0.0
  %v962 = vadd.f32 %v960, %v961
  %v963 = vsel %vm101, %v888, 0.0
  %v964 = vadd.f32 %v962, %v963
  %v965 = vsel %vm101, %v889, 0.0
  %v966 = vadd.f32 %v964, %v965
  %v967 = vsel %vm101, %v890, 0.0
  %v968 = vadd.f32 %v966, %v967
  %v969 = vsel %vm101, %v891, 0.0
  %v970 = vadd.f32 %v968, %v969
  %v971 = vsel %vm101, %v892, 0.0
  %v972 = vadd.f32 %v970, %v971
  %v973 = vsel %vm101, %v893, 0.0
  %v974 = vadd.f32 %v972, %v973
  %v975 = vsel %vm101, %v894, 0.0
  %v976 = vadd.f32 %v974, %v975
  %v977 = vsel %vm101, %v895, 0.0
  %v978 = vadd.f32 %v976, %v977
  %v979 = vsel %vm101, %v896, 0.0
  %v980 = vadd.f32 %v978, %v979
  %v981 = vsel %vm101, %v897, 0.0
  %v982 = vadd.f32 %v980, %v981
  %v983 = vsel %vm101, %v898, 0.0
  %v984 = vadd.f32 %v982, %v983
  %v985 = vsel %vm101, %v899, 0.0
  %v986 = vadd.f32 %v984, %v985
  %v987 = vsel %vm101, %v900, 0.0
  %v988 = vadd.f32 %v986, %v987
  %v989 = vsel %vm101, %v901, 0.0
  %v990 = vadd.f32 %v988, %v989
  %v991 = vsel %vm101, %v902, 0.0
  %v992 = vadd.f32 %v990, %v991
  %v993 = vsel %vm101, %v903, 0.0
  %v994 = vadd.f32 %v992, %v993
  %v995 = vsel %vm101, %v904, 0.0
  %v996 = vadd.f32 %v994, %v995
  %v997 = vsel %vm101, %v905, 0.0
  %v998 = vadd.f32 %v996, %v997
  %v999 = vsel %vm101, %v906, 0.0
  %v1000 = vadd.f32 %v998, %v999
  %v1001 = vsel %vm101, %v907, 0.0
  %v1002 = vadd.f32 %v1000, %v1001
  %v1003 = vsel %vm101, %v908, 0.0
  %v1004 = vadd.f32 %v1002, %v1003
  %v1005 = vsel %vm101, %v909, 0.0
  %v1006 = vadd.f32 %v1004, %v1005
  %v1007 = vsel %vm101, %v910, 0.0
  %v1008 = vadd.f32 %v1006, %v1007
  %v1009 = vsel %vm101, %v911, 0.0
  %v1010 = vadd.f32 %v1008, %v1009
  %v1011 = vsel %vm101, %v912, 0.0
  %v1012 = vadd.f32 %v1010, %v1011
  %v1013 = vsel %vm101, %v913, 0.0
  %v1014 = vadd.f32 %v1012, %v1013
  %v1015 = vsel %vm101, %v914, 0.0
  %v1016 = vadd.f32 %v1014, %v1015
  %v1017 = vsel %vm101, %v915, 0.0
  %v1018 = vadd.f32 %v1016, %v1017
  %v1019 = vsel %vm101, %v916, 0.0
  %v1020 = vadd.f32 %v1018, %v1019
  %v1021 = vsel %vm101, %v917, 0.0
  %v1022 = vadd.f32 %v1020, %v1021
  %v1023 = vsel %vm101, %v918, 0.0
  %v1024 = vadd.f32 %v1022, %v1023
  %v1025 = vsel %vm101, %v919, 0.0
  %v1026 = vadd.f32 %v1024, %v1025
  %v1027 = vsel %vm101, %v920, 0.0
  %v1028 = vadd.f32 %v1026, %v1027
  %v1029 = vsel %vm101, %v921, 0.0
  %v1030 = vadd.f32 %v1028, %v1029
  %v1031 = vsel %vm101, %v922, 0.0
  %v1032 = vadd.f32 %v1030, %v1031
  %v1033 = vsel %vm101, %v923, 0.0
  %v1034 = vadd.f32 %v1032, %v1033
  %v1035 = vsel %vm101, %v924, 0.0
  %v1036 = vadd.f32 %v1034, %v1035
  %v1037 = vsel %vm101, %v925, 0.0
  %v1038 = vadd.f32 %v1036, %v1037
  %v1039 = vsel %vm101, %v926, 0.0
  %v1040 = vadd.f32 %v1038, %v1039
  %v1041 = vsel %vm101, %v927, 0.0
  %v1042 = vadd.f32 %v1040, %v1041
  %v1043 = vsel %vm101, %v928, 0.0
  %v1044 = vadd.f32 %v1042, %v1043
  %v1045 = vsel %vm101, %v929, 0.0
  %v1046 = vadd.f32 %v1044, %v1045
  %v1047 = vsel %vm101, %v930, 0.0
  %v1048 = vadd.f32 %v1046, %v1047
  %v1049 = vsel %vm101, %v931, 0.0
  %v1050 = vadd.f32 %v1048, %v1049
  %v1051 = vsel %vm101, %v932, 0.0
  %v1052 = vadd.f32 %v1050, %v1051
  %v1053 = vsel %vm101, %v933, 0.0
  %v1054 = vadd.f32 %v1052, %v1053
  %v1055 = vsel %vm101, %v934, 0.0
  %v1056 = vadd.f32 %v1054, %v1055
  %v1057 = vsel %vm101, %v935, 0.0
  %v1058 = vadd.f32 %v1056, %v1057
  %v1059 = vsel %vm101, %v936, 0.0
  %v1060 = vadd.f32 %v1058, %v1059
  %v1061 = vsel %vm101, %v937, 0.0
  %v1062 = vadd.f32 %v1060, %v1061
  %v1063 = vsel %vm101, %v938, 0.0
  %v1064 = vadd.f32 %v1062, %v1063
  %v1065 = vsel %vm101, %v939, 0.0
  %v1066 = vadd.f32 %v1064, %v1065
  %v1067 = vrot.slane %v1066, 4
  %v1068 = vadd.f32 %v1066, %v1067
  %v1069 = vrot.slane %v1068, 2
  %v1070 = vadd.f32 %v1068, %v1069
  %v1071 = vrot.slane %v1070, 1
  %v1072 = vadd.f32 %v1070, %v1071
  %v1073 = vmul.f32 %v875, 0.001953125
  %v1074 = vmul.f32 %v1072, 0.001953125
  %v1075 = vmul.f32 %v1073, %v1073
  %v1076 = vsub.f32 %v1074, %v1075
  %v1077 = vadd.f32 %v1076, 1e-05
  %v1078 = vrsqrt.pop %v1077
  %v1079 = vld [vmem:[%s3] sm:$0x1]
  %v1080 = vmul.f32 %v1079, %v1078
  %v1081 = vld [vmem:[%s4] sm:$0x1]
  %v1082 = vmul.f32 %v1073, %v1080
  %v1083 = vsub.f32 %v1081, %v1082
  %v1085 = vlaneseq
  %v1086 = vshrl.u32 %v1085, 7
  %v1087 = vsub.s32 0, %v1086
  %v1088 = vrot.slane %v1080, %v1087
  %v1090 = vmul.f32 %v679, %v1088
  %v1091 = vmul.f32 %v680, %v1088
  %v1092 = vmul.f32 %v681, %v1088
  %v1093 = vmul.f32 %v682, %v1088
  %v1094 = vmul.f32 %v683, %v1088
  %v1095 = vmul.f32 %v684, %v1088
  %v1096 = vmul.f32 %v685, %v1088
  %v1097 = vmul.f32 %v686, %v1088
  %v1098 = vmul.f32 %v687, %v1088
  %v1099 = vmul.f32 %v688, %v1088
  %v1100 = vmul.f32 %v689, %v1088
  %v1101 = vmul.f32 %v690, %v1088
  %v1102 = vmul.f32 %v691, %v1088
  %v1103 = vmul.f32 %v692, %v1088
  %v1104 = vmul.f32 %v693, %v1088
  %v1105 = vmul.f32 %v694, %v1088
  %v1106 = vmul.f32 %v695, %v1088
  %v1107 = vmul.f32 %v696, %v1088
  %v1108 = vmul.f32 %v697, %v1088
  %v1109 = vmul.f32 %v698, %v1088
  %v1110 = vmul.f32 %v699, %v1088
  %v1111 = vmul.f32 %v700, %v1088
  %v1112 = vmul.f32 %v701, %v1088
  %v1113 = vmul.f32 %v702, %v1088
  %v1114 = vmul.f32 %v703, %v1088
  %v1115 = vmul.f32 %v704, %v1088
  %v1116 = vmul.f32 %v705, %v1088
  %v1117 = vmul.f32 %v706, %v1088
  %v1118 = vmul.f32 %v707, %v1088
  %v1119 = vmul.f32 %v708, %v1088
  %v1120 = vmul.f32 %v709, %v1088
  %v1121 = vmul.f32 %v710, %v1088
  %v1122 = vmul.f32 %v711, %v1088
  %v1123 = vmul.f32 %v712, %v1088
  %v1124 = vmul.f32 %v713, %v1088
  %v1125 = vmul.f32 %v714, %v1088
  %v1126 = vmul.f32 %v715, %v1088
  %v1127 = vmul.f32 %v716, %v1088
  %v1128 = vmul.f32 %v717, %v1088
  %v1129 = vmul.f32 %v718, %v1088
  %v1130 = vmul.f32 %v719, %v1088
  %v1131 = vmul.f32 %v720, %v1088
  %v1132 = vmul.f32 %v721, %v1088
  %v1133 = vmul.f32 %v722, %v1088
  %v1134 = vmul.f32 %v723, %v1088
  %v1135 = vmul.f32 %v724, %v1088
  %v1136 = vmul.f32 %v725, %v1088
  %v1137 = vmul.f32 %v726, %v1088
  %v1138 = vmul.f32 %v727, %v1088
  %v1139 = vmul.f32 %v728, %v1088
  %v1140 = vmul.f32 %v729, %v1088
  %v1141 = vmul.f32 %v730, %v1088
  %v1142 = vmul.f32 %v731, %v1088
  %v1143 = vmul.f32 %v732, %v1088
  %v1144 = vmul.f32 %v733, %v1088
  %v1145 = vmul.f32 %v734, %v1088
  %v1146 = vmul.f32 %v735, %v1088
  %v1147 = vmul.f32 %v736, %v1088
  %v1148 = vmul.f32 %v737, %v1088
  %v1149 = vmul.f32 %v738, %v1088
  %v1150 = vmul.f32 %v739, %v1088
  %v1151 = vmul.f32 %v740, %v1088
  %v1152 = vmul.f32 %v741, %v1088
  %v1153 = vmul.f32 %v742, %v1088
  %v1155 = vlaneseq
  %v1156 = vshrl.u32 %v1155, 7
  %v1157 = vsub.s32 0, %v1156
  %v1158 = vrot.slane %v1083, %v1157
  %v1160 = vadd.f32 %v1090, %v1158
  %v1161 = vadd.f32 %v1091, %v1158
  %v1162 = vadd.f32 %v1092, %v1158
  %v1163 = vadd.f32 %v1093, %v1158
  %v1164 = vadd.f32 %v1094, %v1158
  %v1165 = vadd.f32 %v1095, %v1158
  %v1166 = vadd.f32 %v1096, %v1158
  %v1167 = vadd.f32 %v1097, %v1158
  %v1168 = vadd.f32 %v1098, %v1158
  %v1169 = vadd.f32 %v1099, %v1158
  %v1170 = vadd.f32 %v1100, %v1158
  %v1171 = vadd.f32 %v1101, %v1158
  %v1172 = vadd.f32 %v1102, %v1158
  %v1173 = vadd.f32 %v1103, %v1158
  %v1174 = vadd.f32 %v1104, %v1158
  %v1175 = vadd.f32 %v1105, %v1158
  %v1176 = vadd.f32 %v1106, %v1158
  %v1177 = vadd.f32 %v1107, %v1158
  %v1178 = vadd.f32 %v1108, %v1158
  %v1179 = vadd.f32 %v1109, %v1158
  %v1180 = vadd.f32 %v1110, %v1158
  %v1181 = vadd.f32 %v1111, %v1158
  %v1182 = vadd.f32 %v1112, %v1158
  %v1183 = vadd.f32 %v1113, %v1158
  %v1184 = vadd.f32 %v1114, %v1158
  %v1185 = vadd.f32 %v1115, %v1158
  %v1186 = vadd.f32 %v1116, %v1158
  %v1187 = vadd.f32 %v1117, %v1158
  %v1188 = vadd.f32 %v1118, %v1158
  %v1189 = vadd.f32 %v1119, %v1158
  %v1190 = vadd.f32 %v1120, %v1158
  %v1191 = vadd.f32 %v1121, %v1158
  %v1192 = vadd.f32 %v1122, %v1158
  %v1193 = vadd.f32 %v1123, %v1158
  %v1194 = vadd.f32 %v1124, %v1158
  %v1195 = vadd.f32 %v1125, %v1158
  %v1196 = vadd.f32 %v1126, %v1158
  %v1197 = vadd.f32 %v1127, %v1158
  %v1198 = vadd.f32 %v1128, %v1158
  %v1199 = vadd.f32 %v1129, %v1158
  %v1200 = vadd.f32 %v1130, %v1158
  %v1201 = vadd.f32 %v1131, %v1158
  %v1202 = vadd.f32 %v1132, %v1158
  %v1203 = vadd.f32 %v1133, %v1158
  %v1204 = vadd.f32 %v1134, %v1158
  %v1205 = vadd.f32 %v1135, %v1158
  %v1206 = vadd.f32 %v1136, %v1158
  %v1207 = vadd.f32 %v1137, %v1158
  %v1208 = vadd.f32 %v1138, %v1158
  %v1209 = vadd.f32 %v1139, %v1158
  %v1210 = vadd.f32 %v1140, %v1158
  %v1211 = vadd.f32 %v1141, %v1158
  %v1212 = vadd.f32 %v1142, %v1158
  %v1213 = vadd.f32 %v1143, %v1158
  %v1214 = vadd.f32 %v1144, %v1158
  %v1215 = vadd.f32 %v1145, %v1158
  %v1216 = vadd.f32 %v1146, %v1158
  %v1217 = vadd.f32 %v1147, %v1158
  %v1218 = vadd.f32 %v1148, %v1158
  %v1219 = vadd.f32 %v1149, %v1158
  %v1220 = vadd.f32 %v1150, %v1158
  %v1221 = vadd.f32 %v1151, %v1158
  %v1222 = vadd.f32 %v1152, %v1158
  %v1223 = vadd.f32 %v1153, %v1158
  %s1224 = scalar_lea.vmem %s1, 32
  %v1225 = vld [vmem:[%s1224] sm:$0xff]
  %v1226 = vld [vmem:[%s1224 + $0x8] sm:$0xff]
  %v1227 = vld [vmem:[%s1224 + $0x10] sm:$0xff]
  %v1228 = vld [vmem:[%s1224 + $0x18] sm:$0xff]
  %s1229 = scalar_lea.vmem %s2, 1
  %v1230 = vld [vmem:[%s1229] sm:$0x1]
  %v1232 = vlaneseq
  %v1233 = vshrl.u32 %v1232, 7
  %v1234 = vsub.s32 0, %v1233
  %v1235 = vrot.slane %v1230, %v1234
  %v1238 = vsel %vm101, %v1160, 0
  %v1241 = vsel %vm101, %v1161, 0
  %v1244 = vsel %vm101, %v1162, 0
  %v1247 = vsel %vm101, %v1163, 0
  %v1250 = vsel %vm101, %v1164, 0
  %v1253 = vsel %vm101, %v1165, 0
  %v1256 = vsel %vm101, %v1166, 0
  %v1259 = vsel %vm101, %v1167, 0
  %v1262 = vsel %vm101, %v1168, 0
  %v1265 = vsel %vm101, %v1169, 0
  %v1268 = vsel %vm101, %v1170, 0
  %v1271 = vsel %vm101, %v1171, 0
  %v1274 = vsel %vm101, %v1172, 0
  %v1277 = vsel %vm101, %v1173, 0
  %v1280 = vsel %vm101, %v1174, 0
  %v1283 = vsel %vm101, %v1175, 0
  %v1286 = vsel %vm101, %v1176, 0
  %v1289 = vsel %vm101, %v1177, 0
  %v1292 = vsel %vm101, %v1178, 0
  %v1295 = vsel %vm101, %v1179, 0
  %v1298 = vsel %vm101, %v1180, 0
  %v1301 = vsel %vm101, %v1181, 0
  %v1304 = vsel %vm101, %v1182, 0
  %v1307 = vsel %vm101, %v1183, 0
  %v1310 = vsel %vm101, %v1184, 0
  %v1313 = vsel %vm101, %v1185, 0
  %v1316 = vsel %vm101, %v1186, 0
  %v1319 = vsel %vm101, %v1187, 0
  %v1322 = vsel %vm101, %v1188, 0
  %v1325 = vsel %vm101, %v1189, 0
  %v1328 = vsel %vm101, %v1190, 0
  %v1331 = vsel %vm101, %v1191, 0
  %v1334 = vsel %vm101, %v1192, 0
  %v1337 = vsel %vm101, %v1193, 0
  %v1340 = vsel %vm101, %v1194, 0
  %v1343 = vsel %vm101, %v1195, 0
  %v1346 = vsel %vm101, %v1196, 0
  %v1349 = vsel %vm101, %v1197, 0
  %v1352 = vsel %vm101, %v1198, 0
  %v1355 = vsel %vm101, %v1199, 0
  %v1358 = vsel %vm101, %v1200, 0
  %v1361 = vsel %vm101, %v1201, 0
  %v1364 = vsel %vm101, %v1202, 0
  %v1367 = vsel %vm101, %v1203, 0
  %v1370 = vsel %vm101, %v1204, 0
  %v1373 = vsel %vm101, %v1205, 0
  %v1376 = vsel %vm101, %v1206, 0
  %v1379 = vsel %vm101, %v1207, 0
  %v1382 = vsel %vm101, %v1208, 0
  %v1385 = vsel %vm101, %v1209, 0
  %v1388 = vsel %vm101, %v1210, 0
  %v1391 = vsel %vm101, %v1211, 0
  %v1394 = vsel %vm101, %v1212, 0
  %v1397 = vsel %vm101, %v1213, 0
  %v1400 = vsel %vm101, %v1214, 0
  %v1403 = vsel %vm101, %v1215, 0
  %v1406 = vsel %vm101, %v1216, 0
  %v1409 = vsel %vm101, %v1217, 0
  %v1412 = vsel %vm101, %v1218, 0
  %v1415 = vsel %vm101, %v1219, 0
  %v1418 = vsel %vm101, %v1220, 0
  %v1421 = vsel %vm101, %v1221, 0
  %v1424 = vsel %vm101, %v1222, 0
  %v1427 = vsel %vm101, %v1223, 0
  %1429 = vmatprep.subr.mxu0 0.0
  %1430 = vmatpush1.msra.mxu0 %v1225
  %1431 = vmatprep.subr.mxu0 0.0
  %1432 = vmatpush1.msra.mxu0 %v1226
  %1433 = vmatprep.subr.mxu0 0.0
  %1434 = vmatpush1.msra.mxu0 %v1227
  %1435 = vmatprep.subr.mxu0 0.0
  %1436 = vmatpush1.msra.mxu0 %v1228
  %1437 = vmatprep.subr.mxu0 0.0
  %1438 = vmatpush1.msra.mxu0 0.0
  %1439 = vmatprep.subr.mxu0 0.0
  %1440 = vmatpush1.msra.mxu0 0.0
  %1441 = vmatprep.subr.mxu0 0.0
  %1442 = vmatpush1.msra.mxu0 0.0
  %1443 = vmatprep.subr.mxu0 0.0
  %1444 = vmatpush1.msra.mxu0 0.0
  %1445 = vmatprep.subr.mxu0 0.0
  %1446 = vmatpush1.msra.mxu0 0.0
  %1447 = vmatprep.subr.mxu0 0.0
  %1448 = vmatpush1.msra.mxu0 0.0
  %1449 = vmatprep.subr.mxu0 0.0
  %1450 = vmatpush1.msra.mxu0 0.0
  %1451 = vmatprep.subr.mxu0 0.0
  %1452 = vmatpush1.msra.mxu0 0.0
  %1453 = vmatprep.subr.mxu0 0.0
  %1454 = vmatpush1.msra.mxu0 0.0
  %1455 = vmatprep.subr.mxu0 0.0
  %1456 = vmatpush1.msra.mxu0 0.0
  %1457 = vmatprep.subr.mxu0 0.0
  %1458 = vmatpush1.msra.mxu0 0.0
  %1459 = vmatprep.subr.mxu0 0.0
  %1460 = vmatpush1.msra.mxu0 0.0
  %1461 = vmatprep.subr.mxu0 0.0
  %1462 = vmatpush1.msra.mxu0 0.0
  %1463 = vmatprep.subr.mxu0 0.0
  %1464 = vmatpush1.msra.mxu0 0.0
  %1465 = vmatprep.subr.mxu0 0.0
  %1466 = vmatpush1.msra.mxu0 0.0
  %1467 = vmatprep.subr.mxu0 0.0
  %1468 = vmatpush1.msra.mxu0 0.0
  %1469 = vmatprep.subr.mxu0 0.0
  %1470 = vmatpush1.msra.mxu0 0.0
  %1471 = vmatprep.subr.mxu0 0.0
  %1472 = vmatpush1.msra.mxu0 0.0
  %1473 = vmatprep.subr.mxu0 0.0
  %1474 = vmatpush1.msra.mxu0 0.0
  %1475 = vmatprep.subr.mxu0 0.0
  %1476 = vmatpush1.msra.mxu0 0.0
  %1477 = vmatprep.subr.mxu0 0.0
  %1478 = vmatpush1.msra.mxu0 0.0
  %1479 = vmatprep.subr.mxu0 0.0
  %1480 = vmatpush1.msra.mxu0 0.0
  %1481 = vmatprep.subr.mxu0 0.0
  %1482 = vmatpush1.msra.mxu0 0.0
  %1483 = vmatprep.subr.mxu0 0.0
  %1484 = vmatpush1.msra.mxu0 0.0
  %1485 = vmatprep.subr.mxu0 0.0
  %1486 = vmatpush1.msra.mxu0 0.0
  %1487 = vmatprep.subr.mxu0 0.0
  %1488 = vmatpush1.msra.mxu0 0.0
  %1489 = vmatprep.subr.mxu0 0.0
  %1490 = vmatpush1.msra.mxu0 0.0
  %1491 = vmatprep.subr.mxu0 0.0
  %1492 = vmatpush1.msra.mxu0 0.0
  %1493 = vmatprep.mubr.f32.mxu0 0.0
  %1494 = vmatmul.mubr.f32.gmra.mrb[0].mxu0 %v1238
  %v1495 = vpop.f32.mrb[0].mxu0
  %v1496 = vadd.f32 %v1235, %v1495
  %v1497 = vpop.f32.mrb[0].mxu0
  %1498 = vmatprep.mubr.f32.mxu0 0.0
  %1499 = vmatmul.mubr.f32.gmra.mrb[0].mxu0 %v1241
  %v1500 = vpop.f32.mrb[0].mxu0
  %v1501 = vadd.f32 %v1235, %v1500
  %v1502 = vpop.f32.mrb[0].mxu0
  %1503 = vmatprep.mubr.f32.mxu0 0.0
  %1504 = vmatmul.mubr.f32.gmra.mrb[0].mxu0 %v1244
  %v1505 = vpop.f32.mrb[0].mxu0
  %v1506 = vadd.f32 %v1235, %v1505
  %v1507 = vpop.f32.mrb[0].mxu0
  %1508 = vmatprep.mubr.f32.mxu0 0.0
  %1509 = vmatmul.mubr.f32.gmra.mrb[0].mxu0 %v1247
  %v1510 = vpop.f32.mrb[0].mxu0
  %v1511 = vadd.f32 %v1235, %v1510
  %v1512 = vpop.f32.mrb[0].mxu0
  %1513 = vmatprep.mubr.f32.mxu0 0.0
  %1514 = vmatmul.mubr.f32.gmra.mrb[0].mxu0 %v1250
  %v1515 = vpop.f32.mrb[0].mxu0
  %v1516 = vadd.f32 %v1235, %v1515
  %v1517 = vpop.f32.mrb[0].mxu0
  %1518 = vmatprep.mubr.f32.mxu0 0.0
  %1519 = vmatmul.mubr.f32.gmra.mrb[0].mxu0 %v1253
  %v1520 = vpop.f32.mrb[0].mxu0
  %v1521 = vadd.f32 %v1235, %v1520
  %v1522 = vpop.f32.mrb[0].mxu0
  %1523 = vmatprep.mubr.f32.mxu0 0.0
  %1524 = vmatmul.mubr.f32.gmra.mrb[0].mxu0 %v1256
  %v1525 = vpop.f32.mrb[0].mxu0
  %v1526 = vadd.f32 %v1235, %v1525
  %v1527 = vpop.f32.mrb[0].mxu0
  %1528 = vmatprep.mubr.f32.mxu0 0.0
  %1529 = vmatmul.mubr.f32.gmra.mrb[0].mxu0 %v1259
  %v1530 = vpop.f32.mrb[0].mxu0
  %v1531 = vadd.f32 %v1235, %v1530
  %v1532 = vpop.f32.mrb[0].mxu0
  %1533 = vmatprep.mubr.f32.mxu0 0.0
  %1534 = vmatmul.mubr.f32.gmra.mrb[0].mxu0 %v1262
  %v1535 = vpop.f32.mrb[0].mxu0
  %v1536 = vadd.f32 %v1235, %v1535
  %v1537 = vpop.f32.mrb[0].mxu0
  %1538 = vmatprep.mubr.f32.mxu0 0.0
  %1539 = vmatmul.mubr.f32.gmra.mrb[0].mxu0 %v1265
  %v1540 = vpop.f32.mrb[0].mxu0
  %v1541 = vadd.f32 %v1235, %v1540
  %v1542 = vpop.f32.mrb[0].mxu0
  %1543 = vmatprep.mubr.f32.mxu0 0.0
  %1544 = vmatmul.mubr.f32.gmra.mrb[0].mxu0 %v1268
  %v1545 = vpop.f32.mrb[0].mxu0
  %v1546 = vadd.f32 %v1235, %v1545
  %v1547 = vpop.f32.mrb[0].mxu0
  %1548 = vmatprep.mubr.f32.mxu0 0.0
  %1549 = vmatmul.mubr.f32.gmra.mrb[0].mxu0 %v1271
  %v1550 = vpop.f32.mrb[0].mxu0
  %v1551 = vadd.f32 %v1235, %v1550
  %v1552 = vpop.f32.mrb[0].mxu0
  %1553 = vmatprep.mubr.f32.mxu0 0.0
  %1554 = vmatmul.mubr.f32.gmra.mrb[0].mxu0 %v1274
  %v1555 = vpop.f32.mrb[0].mxu0
  %v1556 = vadd.f32 %v1235, %v1555
  %v1557 = vpop.f32.mrb[0].mxu0
  %1558 = vmatprep.mubr.f32.mxu0 0.0
  %1559 = vmatmul.mubr.f32.gmra.mrb[0].mxu0 %v1277
  %v1560 = vpop.f32.mrb[0].mxu0
  %v1561 = vadd.f32 %v1235, %v1560
  %v1562 = vpop.f32.mrb[0].mxu0
  %1563 = vmatprep.mubr.f32.mxu0 0.0
  %1564 = vmatmul.mubr.f32.gmra.mrb[0].mxu0 %v1280
  %v1565 = vpop.f32.mrb[0].mxu0
  %v1566 = vadd.f32 %v1235, %v1565
  %v1567 = vpop.f32.mrb[0].mxu0
  %1568 = vmatprep.mubr.f32.mxu0 0.0
  %1569 = vmatmul.mubr.f32.gmra.mrb[0].mxu0 %v1283
  %v1570 = vpop.f32.mrb[0].mxu0
  %v1571 = vadd.f32 %v1235, %v1570
  %v1572 = vpop.f32.mrb[0].mxu0
  %1573 = vmatprep.mubr.f32.mxu0 0.0
  %1574 = vmatmul.mubr.f32.gmra.mrb[0].mxu0 %v1286
  %v1575 = vpop.f32.mrb[0].mxu0
  %v1576 = vadd.f32 %v1235, %v1575
  %v1577 = vpop.f32.mrb[0].mxu0
  %1578 = vmatprep.mubr.f32.mxu0 0.0
  %1579 = vmatmul.mubr.f32.gmra.mrb[0].mxu0 %v1289
  %v1580 = vpop.f32.mrb[0].mxu0
  %v1581 = vadd.f32 %v1235, %v1580
  %v1582 = vpop.f32.mrb[0].mxu0
  %1583 = vmatprep.mubr.f32.mxu0 0.0
  %1584 = vmatmul.mubr.f32.gmra.mrb[0].mxu0 %v1292
  %v1585 = vpop.f32.mrb[0].mxu0
  %v1586 = vadd.f32 %v1235, %v1585
  %v1587 = vpop.f32.mrb[0].mxu0
  %1588 = vmatprep.mubr.f32.mxu0 0.0
  %1589 = vmatmul.mubr.f32.gmra.mrb[0].mxu0 %v1295
  %v1590 = vpop.f32.mrb[0].mxu0
  %v1591 = vadd.f32 %v1235, %v1590
  %v1592 = vpop.f32.mrb[0].mxu0
  %1593 = vmatprep.mubr.f32.mxu0 0.0
  %1594 = vmatmul.mubr.f32.gmra.mrb[0].mxu0 %v1298
  %v1595 = vpop.f32.mrb[0].mxu0
  %v1596 = vadd.f32 %v1235, %v1595
  %v1597 = vpop.f32.mrb[0].mxu0
  %1598 = vmatprep.mubr.f32.mxu0 0.0
  %1599 = vmatmul.mubr.f32.gmra.mrb[0].mxu0 %v1301
  %v1600 = vpop.f32.mrb[0].mxu0
  %v1601 = vadd.f32 %v1235, %v1600
  %v1602 = vpop.f32.mrb[0].mxu0
  %1603 = vmatprep.mubr.f32.mxu0 0.0
  %1604 = vmatmul.mubr.f32.gmra.mrb[0].mxu0 %v1304
  %v1605 = vpop.f32.mrb[0].mxu0
  %v1606 = vadd.f32 %v1235, %v1605
  %v1607 = vpop.f32.mrb[0].mxu0
  %1608 = vmatprep.mubr.f32.mxu0 0.0
  %1609 = vmatmul.mubr.f32.gmra.mrb[0].mxu0 %v1307
  %v1610 = vpop.f32.mrb[0].mxu0
  %v1611 = vadd.f32 %v1235, %v1610
  %v1612 = vpop.f32.mrb[0].mxu0
  %1613 = vmatprep.mubr.f32.mxu0 0.0
  %1614 = vmatmul.mubr.f32.gmra.mrb[0].mxu0 %v1310
  %v1615 = vpop.f32.mrb[0].mxu0
  %v1616 = vadd.f32 %v1235, %v1615
  %v1617 = vpop.f32.mrb[0].mxu0
  %1618 = vmatprep.mubr.f32.mxu0 0.0
  %1619 = vmatmul.mubr.f32.gmra.mrb[0].mxu0 %v1313
  %v1620 = vpop.f32.mrb[0].mxu0
  %v1621 = vadd.f32 %v1235, %v1620
  %v1622 = vpop.f32.mrb[0].mxu0
  %1623 = vmatprep.mubr.f32.mxu0 0.0
  %1624 = vmatmul.mubr.f32.gmra.mrb[0].mxu0 %v1316
  %v1625 = vpop.f32.mrb[0].mxu0
  %v1626 = vadd.f32 %v1235, %v1625
  %v1627 = vpop.f32.mrb[0].mxu0
  %1628 = vmatprep.mubr.f32.mxu0 0.0
  %1629 = vmatmul.mubr.f32.gmra.mrb[0].mxu0 %v1319
  %v1630 = vpop.f32.mrb[0].mxu0
  %v1631 = vadd.f32 %v1235, %v1630
  %v1632 = vpop.f32.mrb[0].mxu0
  %1633 = vmatprep.mubr.f32.mxu0 0.0
  %1634 = vmatmul.mubr.f32.gmra.mrb[0].mxu0 %v1322
  %v1635 = vpop.f32.mrb[0].mxu0
  %v1636 = vadd.f32 %v1235, %v1635
  %v1637 = vpop.f32.mrb[0].mxu0
  %1638 = vmatprep.mubr.f32.mxu0 0.0
  %1639 = vmatmul.mubr.f32.gmra.mrb[0].mxu0 %v1325
  %v1640 = vpop.f32.mrb[0].mxu0
  %v1641 = vadd.f32 %v1235, %v1640
  %v1642 = vpop.f32.mrb[0].mxu0
  %1643 = vmatprep.mubr.f32.mxu0 0.0
  %1644 = vmatmul.mubr.f32.gmra.mrb[0].mxu0 %v1328
  %v1645 = vpop.f32.mrb[0].mxu0
  %v1646 = vadd.f32 %v1235, %v1645
  %v1647 = vpop.f32.mrb[0].mxu0
  %1648 = vmatprep.mubr.f32.mxu0 0.0
  %1649 = vmatmul.mubr.f32.gmra.mrb[0].mxu0 %v1331
  %v1650 = vpop.f32.mrb[0].mxu0
  %v1651 = vadd.f32 %v1235, %v1650
  %v1652 = vpop.f32.mrb[0].mxu0
  %1653 = vmatprep.mubr.f32.mxu0 0.0
  %1654 = vmatmul.mubr.f32.gmra.mrb[0].mxu0 %v1334
  %v1655 = vpop.f32.mrb[0].mxu0
  %v1656 = vadd.f32 %v1235, %v1655
  %v1657 = vpop.f32.mrb[0].mxu0
  %1658 = vmatprep.mubr.f32.mxu0 0.0
  %1659 = vmatmul.mubr.f32.gmra.mrb[0].mxu0 %v1337
  %v1660 = vpop.f32.mrb[0].mxu0
  %v1661 = vadd.f32 %v1235, %v1660
  %v1662 = vpop.f32.mrb[0].mxu0
  %1663 = vmatprep.mubr.f32.mxu0 0.0
  %1664 = vmatmul.mubr.f32.gmra.mrb[0].mxu0 %v1340
  %v1665 = vpop.f32.mrb[0].mxu0
  %v1666 = vadd.f32 %v1235, %v1665
  %v1667 = vpop.f32.mrb[0].mxu0
  %1668 = vmatprep.mubr.f32.mxu0 0.0
  %1669 = vmatmul.mubr.f32.gmra.mrb[0].mxu0 %v1343
  %v1670 = vpop.f32.mrb[0].mxu0
  %v1671 = vadd.f32 %v1235, %v1670
  %v1672 = vpop.f32.mrb[0].mxu0
  %1673 = vmatprep.mubr.f32.mxu0 0.0
  %1674 = vmatmul.mubr.f32.gmra.mrb[0].mxu0 %v1346
  %v1675 = vpop.f32.mrb[0].mxu0
  %v1676 = vadd.f32 %v1235, %v1675
  %v1677 = vpop.f32.mrb[0].mxu0
  %1678 = vmatprep.mubr.f32.mxu0 0.0
  %1679 = vmatmul.mubr.f32.gmra.mrb[0].mxu0 %v1349
  %v1680 = vpop.f32.mrb[0].mxu0
  %v1681 = vadd.f32 %v1235, %v1680
  %v1682 = vpop.f32.mrb[0].mxu0
  %1683 = vmatprep.mubr.f32.mxu0 0.0
  %1684 = vmatmul.mubr.f32.gmra.mrb[0].mxu0 %v1352
  %v1685 = vpop.f32.mrb[0].mxu0
  %v1686 = vadd.f32 %v1235, %v1685
  %v1687 = vpop.f32.mrb[0].mxu0
  %1688 = vmatprep.mubr.f32.mxu0 0.0
  %1689 = vmatmul.mubr.f32.gmra.mrb[0].mxu0 %v1355
  %v1690 = vpop.f32.mrb[0].mxu0
  %v1691 = vadd.f32 %v1235, %v1690
  %v1692 = vpop.f32.mrb[0].mxu0
  %1693 = vmatprep.mubr.f32.mxu0 0.0
  %1694 = vmatmul.mubr.f32.gmra.mrb[0].mxu0 %v1358
  %v1695 = vpop.f32.mrb[0].mxu0
  %v1696 = vadd.f32 %v1235, %v1695
  %v1697 = vpop.f32.mrb[0].mxu0
  %1698 = vmatprep.mubr.f32.mxu0 0.0
  %1699 = vmatmul.mubr.f32.gmra.mrb[0].mxu0 %v1361
  %v1700 = vpop.f32.mrb[0].mxu0
  %v1701 = vadd.f32 %v1235, %v1700
  %v1702 = vpop.f32.mrb[0].mxu0
  %1703 = vmatprep.mubr.f32.mxu0 0.0
  %1704 = vmatmul.mubr.f32.gmra.mrb[0].mxu0 %v1364
  %v1705 = vpop.f32.mrb[0].mxu0
  %v1706 = vadd.f32 %v1235, %v1705
  %v1707 = vpop.f32.mrb[0].mxu0
  %1708 = vmatprep.mubr.f32.mxu0 0.0
  %1709 = vmatmul.mubr.f32.gmra.mrb[0].mxu0 %v1367
  %v1710 = vpop.f32.mrb[0].mxu0
  %v1711 = vadd.f32 %v1235, %v1710
  %v1712 = vpop.f32.mrb[0].mxu0
  %1713 = vmatprep.mubr.f32.mxu0 0.0
  %1714 = vmatmul.mubr.f32.gmra.mrb[0].mxu0 %v1370
  %v1715 = vpop.f32.mrb[0].mxu0
  %v1716 = vadd.f32 %v1235, %v1715
  %v1717 = vpop.f32.mrb[0].mxu0
  %1718 = vmatprep.mubr.f32.mxu0 0.0
  %1719 = vmatmul.mubr.f32.gmra.mrb[0].mxu0 %v1373
  %v1720 = vpop.f32.mrb[0].mxu0
  %v1721 = vadd.f32 %v1235, %v1720
  %v1722 = vpop.f32.mrb[0].mxu0
  %1723 = vmatprep.mubr.f32.mxu0 0.0
  %1724 = vmatmul.mubr.f32.gmra.mrb[0].mxu0 %v1376
  %v1725 = vpop.f32.mrb[0].mxu0
  %v1726 = vadd.f32 %v1235, %v1725
  %v1727 = vpop.f32.mrb[0].mxu0
  %1728 = vmatprep.mubr.f32.mxu0 0.0
  %1729 = vmatmul.mubr.f32.gmra.mrb[0].mxu0 %v1379
  %v1730 = vpop.f32.mrb[0].mxu0
  %v1731 = vadd.f32 %v1235, %v1730
  %v1732 = vpop.f32.mrb[0].mxu0
  %1733 = vmatprep.mubr.f32.mxu0 0.0
  %1734 = vmatmul.mubr.f32.gmra.mrb[0].mxu0 %v1382
  %v1735 = vpop.f32.mrb[0].mxu0
  %v1736 = vadd.f32 %v1235, %v1735
  %v1737 = vpop.f32.mrb[0].mxu0
  %1738 = vmatprep.mubr.f32.mxu0 0.0
  %1739 = vmatmul.mubr.f32.gmra.mrb[0].mxu0 %v1385
  %v1740 = vpop.f32.mrb[0].mxu0
  %v1741 = vadd.f32 %v1235, %v1740
  %v1742 = vpop.f32.mrb[0].mxu0
  %1743 = vmatprep.mubr.f32.mxu0 0.0
  %1744 = vmatmul.mubr.f32.gmra.mrb[0].mxu0 %v1388
  %v1745 = vpop.f32.mrb[0].mxu0
  %v1746 = vadd.f32 %v1235, %v1745
  %v1747 = vpop.f32.mrb[0].mxu0
  %1748 = vmatprep.mubr.f32.mxu0 0.0
  %1749 = vmatmul.mubr.f32.gmra.mrb[0].mxu0 %v1391
  %v1750 = vpop.f32.mrb[0].mxu0
  %v1751 = vadd.f32 %v1235, %v1750
  %v1752 = vpop.f32.mrb[0].mxu0
  %1753 = vmatprep.mubr.f32.mxu0 0.0
  %1754 = vmatmul.mubr.f32.gmra.mrb[0].mxu0 %v1394
  %v1755 = vpop.f32.mrb[0].mxu0
  %v1756 = vadd.f32 %v1235, %v1755
  %v1757 = vpop.f32.mrb[0].mxu0
  %1758 = vmatprep.mubr.f32.mxu0 0.0
  %1759 = vmatmul.mubr.f32.gmra.mrb[0].mxu0 %v1397
  %v1760 = vpop.f32.mrb[0].mxu0
  %v1761 = vadd.f32 %v1235, %v1760
  %v1762 = vpop.f32.mrb[0].mxu0
  %1763 = vmatprep.mubr.f32.mxu0 0.0
  %1764 = vmatmul.mubr.f32.gmra.mrb[0].mxu0 %v1400
  %v1765 = vpop.f32.mrb[0].mxu0
  %v1766 = vadd.f32 %v1235, %v1765
  %v1767 = vpop.f32.mrb[0].mxu0
  %1768 = vmatprep.mubr.f32.mxu0 0.0
  %1769 = vmatmul.mubr.f32.gmra.mrb[0].mxu0 %v1403
  %v1770 = vpop.f32.mrb[0].mxu0
  %v1771 = vadd.f32 %v1235, %v1770
  %v1772 = vpop.f32.mrb[0].mxu0
  %1773 = vmatprep.mubr.f32.mxu0 0.0
  %1774 = vmatmul.mubr.f32.gmra.mrb[0].mxu0 %v1406
  %v1775 = vpop.f32.mrb[0].mxu0
  %v1776 = vadd.f32 %v1235, %v1775
  %v1777 = vpop.f32.mrb[0].mxu0
  %1778 = vmatprep.mubr.f32.mxu0 0.0
  %1779 = vmatmul.mubr.f32.gmra.mrb[0].mxu0 %v1409
  %v1780 = vpop.f32.mrb[0].mxu0
  %v1781 = vadd.f32 %v1235, %v1780
  %v1782 = vpop.f32.mrb[0].mxu0
  %1783 = vmatprep.mubr.f32.mxu0 0.0
  %1784 = vmatmul.mubr.f32.gmra.mrb[0].mxu0 %v1412
  %v1785 = vpop.f32.mrb[0].mxu0
  %v1786 = vadd.f32 %v1235, %v1785
  %v1787 = vpop.f32.mrb[0].mxu0
  %1788 = vmatprep.mubr.f32.mxu0 0.0
  %1789 = vmatmul.mubr.f32.gmra.mrb[0].mxu0 %v1415
  %v1790 = vpop.f32.mrb[0].mxu0
  %v1791 = vadd.f32 %v1235, %v1790
  %v1792 = vpop.f32.mrb[0].mxu0
  %1793 = vmatprep.mubr.f32.mxu0 0.0
  %1794 = vmatmul.mubr.f32.gmra.mrb[0].mxu0 %v1418
  %v1795 = vpop.f32.mrb[0].mxu0
  %v1796 = vadd.f32 %v1235, %v1795
  %v1797 = vpop.f32.mrb[0].mxu0
  %1798 = vmatprep.mubr.f32.mxu0 0.0
  %1799 = vmatmul.mubr.f32.gmra.mrb[0].mxu0 %v1421
  %v1800 = vpop.f32.mrb[0].mxu0
  %v1801 = vadd.f32 %v1235, %v1800
  %v1802 = vpop.f32.mrb[0].mxu0
  %1803 = vmatprep.mubr.f32.mxu0 0.0
  %1804 = vmatmul.mubr.f32.gmra.mrb[0].mxu0 %v1424
  %v1805 = vpop.f32.mrb[0].mxu0
  %v1806 = vadd.f32 %v1235, %v1805
  %v1807 = vpop.f32.mrb[0].mxu0
  %1808 = vmatprep.mubr.f32.mxu0 0.0
  %1809 = vmatmul.mubr.f32.gmra.mrb[0].mxu0 %v1427
  %v1810 = vpop.f32.mrb[0].mxu0
  %v1811 = vadd.f32 %v1235, %v1810
  %v1812 = vpop.f32.mrb[0].mxu0
  %1813 = vdwg.mxu0
  %v1814 = vmax.f32 %v1496, 0.0
  %v1815 = vmax.f32 %v1501, 0.0
  %v1816 = vmax.f32 %v1506, 0.0
  %v1817 = vmax.f32 %v1511, 0.0
  %v1818 = vmax.f32 %v1516, 0.0
  %v1819 = vmax.f32 %v1521, 0.0
  %v1820 = vmax.f32 %v1526, 0.0
  %v1821 = vmax.f32 %v1531, 0.0
  %v1822 = vmax.f32 %v1536, 0.0
  %v1823 = vmax.f32 %v1541, 0.0
  %v1824 = vmax.f32 %v1546, 0.0
  %v1825 = vmax.f32 %v1551, 0.0
  %v1826 = vmax.f32 %v1556, 0.0
  %v1827 = vmax.f32 %v1561, 0.0
  %v1828 = vmax.f32 %v1566, 0.0
  %v1829 = vmax.f32 %v1571, 0.0
  %v1830 = vmax.f32 %v1576, 0.0
  %v1831 = vmax.f32 %v1581, 0.0
  %v1832 = vmax.f32 %v1586, 0.0
  %v1833 = vmax.f32 %v1591, 0.0
  %v1834 = vmax.f32 %v1596, 0.0
  %v1835 = vmax.f32 %v1601, 0.0
  %v1836 = vmax.f32 %v1606, 0.0
  %v1837 = vmax.f32 %v1611, 0.0
  %v1838 = vmax.f32 %v1616, 0.0
  %v1839 = vmax.f32 %v1621, 0.0
  %v1840 = vmax.f32 %v1626, 0.0
  %v1841 = vmax.f32 %v1631, 0.0
  %v1842 = vmax.f32 %v1636, 0.0
  %v1843 = vmax.f32 %v1641, 0.0
  %v1844 = vmax.f32 %v1646, 0.0
  %v1845 = vmax.f32 %v1651, 0.0
  %v1846 = vmax.f32 %v1656, 0.0
  %v1847 = vmax.f32 %v1661, 0.0
  %v1848 = vmax.f32 %v1666, 0.0
  %v1849 = vmax.f32 %v1671, 0.0
  %v1850 = vmax.f32 %v1676, 0.0
  %v1851 = vmax.f32 %v1681, 0.0
  %v1852 = vmax.f32 %v1686, 0.0
  %v1853 = vmax.f32 %v1691, 0.0
  %v1854 = vmax.f32 %v1696, 0.0
  %v1855 = vmax.f32 %v1701, 0.0
  %v1856 = vmax.f32 %v1706, 0.0
  %v1857 = vmax.f32 %v1711, 0.0
  %v1858 = vmax.f32 %v1716, 0.0
  %v1859 = vmax.f32 %v1721, 0.0
  %v1860 = vmax.f32 %v1726, 0.0
  %v1861 = vmax.f32 %v1731, 0.0
  %v1862 = vmax.f32 %v1736, 0.0
  %v1863 = vmax.f32 %v1741, 0.0
  %v1864 = vmax.f32 %v1746, 0.0
  %v1865 = vmax.f32 %v1751, 0.0
  %v1866 = vmax.f32 %v1756, 0.0
  %v1867 = vmax.f32 %v1761, 0.0
  %v1868 = vmax.f32 %v1766, 0.0
  %v1869 = vmax.f32 %v1771, 0.0
  %v1870 = vmax.f32 %v1776, 0.0
  %v1871 = vmax.f32 %v1781, 0.0
  %v1872 = vmax.f32 %v1786, 0.0
  %v1873 = vmax.f32 %v1791, 0.0
  %v1874 = vmax.f32 %v1796, 0.0
  %v1875 = vmax.f32 %v1801, 0.0
  %v1876 = vmax.f32 %v1806, 0.0
  %v1877 = vmax.f32 %v1811, 0.0
  %v1878 = vsel %vm101, %v1814, 0.0
  %v1879 = vsel %vm101, %v1815, 0.0
  %v1880 = vadd.f32 %v1878, %v1879
  %v1881 = vsel %vm101, %v1816, 0.0
  %v1882 = vadd.f32 %v1880, %v1881
  %v1883 = vsel %vm101, %v1817, 0.0
  %v1884 = vadd.f32 %v1882, %v1883
  %v1885 = vsel %vm101, %v1818, 0.0
  %v1886 = vadd.f32 %v1884, %v1885
  %v1887 = vsel %vm101, %v1819, 0.0
  %v1888 = vadd.f32 %v1886, %v1887
  %v1889 = vsel %vm101, %v1820, 0.0
  %v1890 = vadd.f32 %v1888, %v1889
  %v1891 = vsel %vm101, %v1821, 0.0
  %v1892 = vadd.f32 %v1890, %v1891
  %v1893 = vsel %vm101, %v1822, 0.0
  %v1894 = vadd.f32 %v1892, %v1893
  %v1895 = vsel %vm101, %v1823, 0.0
  %v1896 = vadd.f32 %v1894, %v1895
  %v1897 = vsel %vm101, %v1824, 0.0
  %v1898 = vadd.f32 %v1896, %v1897
  %v1899 = vsel %vm101, %v1825, 0.0
  %v1900 = vadd.f32 %v1898, %v1899
  %v1901 = vsel %vm101, %v1826, 0.0
  %v1902 = vadd.f32 %v1900, %v1901
  %v1903 = vsel %vm101, %v1827, 0.0
  %v1904 = vadd.f32 %v1902, %v1903
  %v1905 = vsel %vm101, %v1828, 0.0
  %v1906 = vadd.f32 %v1904, %v1905
  %v1907 = vsel %vm101, %v1829, 0.0
  %v1908 = vadd.f32 %v1906, %v1907
  %v1909 = vsel %vm101, %v1830, 0.0
  %v1910 = vadd.f32 %v1908, %v1909
  %v1911 = vsel %vm101, %v1831, 0.0
  %v1912 = vadd.f32 %v1910, %v1911
  %v1913 = vsel %vm101, %v1832, 0.0
  %v1914 = vadd.f32 %v1912, %v1913
  %v1915 = vsel %vm101, %v1833, 0.0
  %v1916 = vadd.f32 %v1914, %v1915
  %v1917 = vsel %vm101, %v1834, 0.0
  %v1918 = vadd.f32 %v1916, %v1917
  %v1919 = vsel %vm101, %v1835, 0.0
  %v1920 = vadd.f32 %v1918, %v1919
  %v1921 = vsel %vm101, %v1836, 0.0
  %v1922 = vadd.f32 %v1920, %v1921
  %v1923 = vsel %vm101, %v1837, 0.0
  %v1924 = vadd.f32 %v1922, %v1923
  %v1925 = vsel %vm101, %v1838, 0.0
  %v1926 = vadd.f32 %v1924, %v1925
  %v1927 = vsel %vm101, %v1839, 0.0
  %v1928 = vadd.f32 %v1926, %v1927
  %v1929 = vsel %vm101, %v1840, 0.0
  %v1930 = vadd.f32 %v1928, %v1929
  %v1931 = vsel %vm101, %v1841, 0.0
  %v1932 = vadd.f32 %v1930, %v1931
  %v1933 = vsel %vm101, %v1842, 0.0
  %v1934 = vadd.f32 %v1932, %v1933
  %v1935 = vsel %vm101, %v1843, 0.0
  %v1936 = vadd.f32 %v1934, %v1935
  %v1937 = vsel %vm101, %v1844, 0.0
  %v1938 = vadd.f32 %v1936, %v1937
  %v1939 = vsel %vm101, %v1845, 0.0
  %v1940 = vadd.f32 %v1938, %v1939
  %v1941 = vsel %vm101, %v1846, 0.0
  %v1942 = vadd.f32 %v1940, %v1941
  %v1943 = vsel %vm101, %v1847, 0.0
  %v1944 = vadd.f32 %v1942, %v1943
  %v1945 = vsel %vm101, %v1848, 0.0
  %v1946 = vadd.f32 %v1944, %v1945
  %v1947 = vsel %vm101, %v1849, 0.0
  %v1948 = vadd.f32 %v1946, %v1947
  %v1949 = vsel %vm101, %v1850, 0.0
  %v1950 = vadd.f32 %v1948, %v1949
  %v1951 = vsel %vm101, %v1851, 0.0
  %v1952 = vadd.f32 %v1950, %v1951
  %v1953 = vsel %vm101, %v1852, 0.0
  %v1954 = vadd.f32 %v1952, %v1953
  %v1955 = vsel %vm101, %v1853, 0.0
  %v1956 = vadd.f32 %v1954, %v1955
  %v1957 = vsel %vm101, %v1854, 0.0
  %v1958 = vadd.f32 %v1956, %v1957
  %v1959 = vsel %vm101, %v1855, 0.0
  %v1960 = vadd.f32 %v1958, %v1959
  %v1961 = vsel %vm101, %v1856, 0.0
  %v1962 = vadd.f32 %v1960, %v1961
  %v1963 = vsel %vm101, %v1857, 0.0
  %v1964 = vadd.f32 %v1962, %v1963
  %v1965 = vsel %vm101, %v1858, 0.0
  %v1966 = vadd.f32 %v1964, %v1965
  %v1967 = vsel %vm101, %v1859, 0.0
  %v1968 = vadd.f32 %v1966, %v1967
  %v1969 = vsel %vm101, %v1860, 0.0
  %v1970 = vadd.f32 %v1968, %v1969
  %v1971 = vsel %vm101, %v1861, 0.0
  %v1972 = vadd.f32 %v1970, %v1971
  %v1973 = vsel %vm101, %v1862, 0.0
  %v1974 = vadd.f32 %v1972, %v1973
  %v1975 = vsel %vm101, %v1863, 0.0
  %v1976 = vadd.f32 %v1974, %v1975
  %v1977 = vsel %vm101, %v1864, 0.0
  %v1978 = vadd.f32 %v1976, %v1977
  %v1979 = vsel %vm101, %v1865, 0.0
  %v1980 = vadd.f32 %v1978, %v1979
  %v1981 = vsel %vm101, %v1866, 0.0
  %v1982 = vadd.f32 %v1980, %v1981
  %v1983 = vsel %vm101, %v1867, 0.0
  %v1984 = vadd.f32 %v1982, %v1983
  %v1985 = vsel %vm101, %v1868, 0.0
  %v1986 = vadd.f32 %v1984, %v1985
  %v1987 = vsel %vm101, %v1869, 0.0
  %v1988 = vadd.f32 %v1986, %v1987
  %v1989 = vsel %vm101, %v1870, 0.0
  %v1990 = vadd.f32 %v1988, %v1989
  %v1991 = vsel %vm101, %v1871, 0.0
  %v1992 = vadd.f32 %v1990, %v1991
  %v1993 = vsel %vm101, %v1872, 0.0
  %v1994 = vadd.f32 %v1992, %v1993
  %v1995 = vsel %vm101, %v1873, 0.0
  %v1996 = vadd.f32 %v1994, %v1995
  %v1997 = vsel %vm101, %v1874, 0.0
  %v1998 = vadd.f32 %v1996, %v1997
  %v1999 = vsel %vm101, %v1875, 0.0
  %v2000 = vadd.f32 %v1998, %v1999
  %v2001 = vsel %vm101, %v1876, 0.0
  %v2002 = vadd.f32 %v2000, %v2001
  %v2003 = vsel %vm101, %v1877, 0.0
  %v2004 = vadd.f32 %v2002, %v2003
  %v2005 = vrot.slane %v2004, 4
  %v2006 = vadd.f32 %v2004, %v2005
  %v2007 = vrot.slane %v2006, 2
  %v2008 = vadd.f32 %v2006, %v2007
  %v2009 = vrot.slane %v2008, 1
  %v2010 = vadd.f32 %v2008, %v2009
  %v2011 = vmul.f32 %v1814, %v1814
  %v2012 = vmul.f32 %v1815, %v1815
  %v2013 = vmul.f32 %v1816, %v1816
  %v2014 = vmul.f32 %v1817, %v1817
  %v2015 = vmul.f32 %v1818, %v1818
  %v2016 = vmul.f32 %v1819, %v1819
  %v2017 = vmul.f32 %v1820, %v1820
  %v2018 = vmul.f32 %v1821, %v1821
  %v2019 = vmul.f32 %v1822, %v1822
  %v2020 = vmul.f32 %v1823, %v1823
  %v2021 = vmul.f32 %v1824, %v1824
  %v2022 = vmul.f32 %v1825, %v1825
  %v2023 = vmul.f32 %v1826, %v1826
  %v2024 = vmul.f32 %v1827, %v1827
  %v2025 = vmul.f32 %v1828, %v1828
  %v2026 = vmul.f32 %v1829, %v1829
  %v2027 = vmul.f32 %v1830, %v1830
  %v2028 = vmul.f32 %v1831, %v1831
  %v2029 = vmul.f32 %v1832, %v1832
  %v2030 = vmul.f32 %v1833, %v1833
  %v2031 = vmul.f32 %v1834, %v1834
  %v2032 = vmul.f32 %v1835, %v1835
  %v2033 = vmul.f32 %v1836, %v1836
  %v2034 = vmul.f32 %v1837, %v1837
  %v2035 = vmul.f32 %v1838, %v1838
  %v2036 = vmul.f32 %v1839, %v1839
  %v2037 = vmul.f32 %v1840, %v1840
  %v2038 = vmul.f32 %v1841, %v1841
  %v2039 = vmul.f32 %v1842, %v1842
  %v2040 = vmul.f32 %v1843, %v1843
  %v2041 = vmul.f32 %v1844, %v1844
  %v2042 = vmul.f32 %v1845, %v1845
  %v2043 = vmul.f32 %v1846, %v1846
  %v2044 = vmul.f32 %v1847, %v1847
  %v2045 = vmul.f32 %v1848, %v1848
  %v2046 = vmul.f32 %v1849, %v1849
  %v2047 = vmul.f32 %v1850, %v1850
  %v2048 = vmul.f32 %v1851, %v1851
  %v2049 = vmul.f32 %v1852, %v1852
  %v2050 = vmul.f32 %v1853, %v1853
  %v2051 = vmul.f32 %v1854, %v1854
  %v2052 = vmul.f32 %v1855, %v1855
  %v2053 = vmul.f32 %v1856, %v1856
  %v2054 = vmul.f32 %v1857, %v1857
  %v2055 = vmul.f32 %v1858, %v1858
  %v2056 = vmul.f32 %v1859, %v1859
  %v2057 = vmul.f32 %v1860, %v1860
  %v2058 = vmul.f32 %v1861, %v1861
  %v2059 = vmul.f32 %v1862, %v1862
  %v2060 = vmul.f32 %v1863, %v1863
  %v2061 = vmul.f32 %v1864, %v1864
  %v2062 = vmul.f32 %v1865, %v1865
  %v2063 = vmul.f32 %v1866, %v1866
  %v2064 = vmul.f32 %v1867, %v1867
  %v2065 = vmul.f32 %v1868, %v1868
  %v2066 = vmul.f32 %v1869, %v1869
  %v2067 = vmul.f32 %v1870, %v1870
  %v2068 = vmul.f32 %v1871, %v1871
  %v2069 = vmul.f32 %v1872, %v1872
  %v2070 = vmul.f32 %v1873, %v1873
  %v2071 = vmul.f32 %v1874, %v1874
  %v2072 = vmul.f32 %v1875, %v1875
  %v2073 = vmul.f32 %v1876, %v1876
  %v2074 = vmul.f32 %v1877, %v1877
  %v2075 = vsel %vm101, %v2011, 0.0
  %v2076 = vsel %vm101, %v2012, 0.0
  %v2077 = vadd.f32 %v2075, %v2076
  %v2078 = vsel %vm101, %v2013, 0.0
  %v2079 = vadd.f32 %v2077, %v2078
  %v2080 = vsel %vm101, %v2014, 0.0
  %v2081 = vadd.f32 %v2079, %v2080
  %v2082 = vsel %vm101, %v2015, 0.0
  %v2083 = vadd.f32 %v2081, %v2082
  %v2084 = vsel %vm101, %v2016, 0.0
  %v2085 = vadd.f32 %v2083, %v2084
  %v2086 = vsel %vm101, %v2017, 0.0
  %v2087 = vadd.f32 %v2085, %v2086
  %v2088 = vsel %vm101, %v2018, 0.0
  %v2089 = vadd.f32 %v2087, %v2088
  %v2090 = vsel %vm101, %v2019, 0.0
  %v2091 = vadd.f32 %v2089, %v2090
  %v2092 = vsel %vm101, %v2020, 0.0
  %v2093 = vadd.f32 %v2091, %v2092
  %v2094 = vsel %vm101, %v2021, 0.0
  %v2095 = vadd.f32 %v2093, %v2094
  %v2096 = vsel %vm101, %v2022, 0.0
  %v2097 = vadd.f32 %v2095, %v2096
  %v2098 = vsel %vm101, %v2023, 0.0
  %v2099 = vadd.f32 %v2097, %v2098
  %v2100 = vsel %vm101, %v2024, 0.0
  %v2101 = vadd.f32 %v2099, %v2100
  %v2102 = vsel %vm101, %v2025, 0.0
  %v2103 = vadd.f32 %v2101, %v2102
  %v2104 = vsel %vm101, %v2026, 0.0
  %v2105 = vadd.f32 %v2103, %v2104
  %v2106 = vsel %vm101, %v2027, 0.0
  %v2107 = vadd.f32 %v2105, %v2106
  %v2108 = vsel %vm101, %v2028, 0.0
  %v2109 = vadd.f32 %v2107, %v2108
  %v2110 = vsel %vm101, %v2029, 0.0
  %v2111 = vadd.f32 %v2109, %v2110
  %v2112 = vsel %vm101, %v2030, 0.0
  %v2113 = vadd.f32 %v2111, %v2112
  %v2114 = vsel %vm101, %v2031, 0.0
  %v2115 = vadd.f32 %v2113, %v2114
  %v2116 = vsel %vm101, %v2032, 0.0
  %v2117 = vadd.f32 %v2115, %v2116
  %v2118 = vsel %vm101, %v2033, 0.0
  %v2119 = vadd.f32 %v2117, %v2118
  %v2120 = vsel %vm101, %v2034, 0.0
  %v2121 = vadd.f32 %v2119, %v2120
  %v2122 = vsel %vm101, %v2035, 0.0
  %v2123 = vadd.f32 %v2121, %v2122
  %v2124 = vsel %vm101, %v2036, 0.0
  %v2125 = vadd.f32 %v2123, %v2124
  %v2126 = vsel %vm101, %v2037, 0.0
  %v2127 = vadd.f32 %v2125, %v2126
  %v2128 = vsel %vm101, %v2038, 0.0
  %v2129 = vadd.f32 %v2127, %v2128
  %v2130 = vsel %vm101, %v2039, 0.0
  %v2131 = vadd.f32 %v2129, %v2130
  %v2132 = vsel %vm101, %v2040, 0.0
  %v2133 = vadd.f32 %v2131, %v2132
  %v2134 = vsel %vm101, %v2041, 0.0
  %v2135 = vadd.f32 %v2133, %v2134
  %v2136 = vsel %vm101, %v2042, 0.0
  %v2137 = vadd.f32 %v2135, %v2136
  %v2138 = vsel %vm101, %v2043, 0.0
  %v2139 = vadd.f32 %v2137, %v2138
  %v2140 = vsel %vm101, %v2044, 0.0
  %v2141 = vadd.f32 %v2139, %v2140
  %v2142 = vsel %vm101, %v2045, 0.0
  %v2143 = vadd.f32 %v2141, %v2142
  %v2144 = vsel %vm101, %v2046, 0.0
  %v2145 = vadd.f32 %v2143, %v2144
  %v2146 = vsel %vm101, %v2047, 0.0
  %v2147 = vadd.f32 %v2145, %v2146
  %v2148 = vsel %vm101, %v2048, 0.0
  %v2149 = vadd.f32 %v2147, %v2148
  %v2150 = vsel %vm101, %v2049, 0.0
  %v2151 = vadd.f32 %v2149, %v2150
  %v2152 = vsel %vm101, %v2050, 0.0
  %v2153 = vadd.f32 %v2151, %v2152
  %v2154 = vsel %vm101, %v2051, 0.0
  %v2155 = vadd.f32 %v2153, %v2154
  %v2156 = vsel %vm101, %v2052, 0.0
  %v2157 = vadd.f32 %v2155, %v2156
  %v2158 = vsel %vm101, %v2053, 0.0
  %v2159 = vadd.f32 %v2157, %v2158
  %v2160 = vsel %vm101, %v2054, 0.0
  %v2161 = vadd.f32 %v2159, %v2160
  %v2162 = vsel %vm101, %v2055, 0.0
  %v2163 = vadd.f32 %v2161, %v2162
  %v2164 = vsel %vm101, %v2056, 0.0
  %v2165 = vadd.f32 %v2163, %v2164
  %v2166 = vsel %vm101, %v2057, 0.0
  %v2167 = vadd.f32 %v2165, %v2166
  %v2168 = vsel %vm101, %v2058, 0.0
  %v2169 = vadd.f32 %v2167, %v2168
  %v2170 = vsel %vm101, %v2059, 0.0
  %v2171 = vadd.f32 %v2169, %v2170
  %v2172 = vsel %vm101, %v2060, 0.0
  %v2173 = vadd.f32 %v2171, %v2172
  %v2174 = vsel %vm101, %v2061, 0.0
  %v2175 = vadd.f32 %v2173, %v2174
  %v2176 = vsel %vm101, %v2062, 0.0
  %v2177 = vadd.f32 %v2175, %v2176
  %v2178 = vsel %vm101, %v2063, 0.0
  %v2179 = vadd.f32 %v2177, %v2178
  %v2180 = vsel %vm101, %v2064, 0.0
  %v2181 = vadd.f32 %v2179, %v2180
  %v2182 = vsel %vm101, %v2065, 0.0
  %v2183 = vadd.f32 %v2181, %v2182
  %v2184 = vsel %vm101, %v2066, 0.0
  %v2185 = vadd.f32 %v2183, %v2184
  %v2186 = vsel %vm101, %v2067, 0.0
  %v2187 = vadd.f32 %v2185, %v2186
  %v2188 = vsel %vm101, %v2068, 0.0
  %v2189 = vadd.f32 %v2187, %v2188
  %v2190 = vsel %vm101, %v2069, 0.0
  %v2191 = vadd.f32 %v2189, %v2190
  %v2192 = vsel %vm101, %v2070, 0.0
  %v2193 = vadd.f32 %v2191, %v2192
  %v2194 = vsel %vm101, %v2071, 0.0
  %v2195 = vadd.f32 %v2193, %v2194
  %v2196 = vsel %vm101, %v2072, 0.0
  %v2197 = vadd.f32 %v2195, %v2196
  %v2198 = vsel %vm101, %v2073, 0.0
  %v2199 = vadd.f32 %v2197, %v2198
  %v2200 = vsel %vm101, %v2074, 0.0
  %v2201 = vadd.f32 %v2199, %v2200
  %v2202 = vrot.slane %v2201, 4
  %v2203 = vadd.f32 %v2201, %v2202
  %v2204 = vrot.slane %v2203, 2
  %v2205 = vadd.f32 %v2203, %v2204
  %v2206 = vrot.slane %v2205, 1
  %v2207 = vadd.f32 %v2205, %v2206
  %v2208 = vmul.f32 %v2010, 0.001953125
  %v2209 = vmul.f32 %v2207, 0.001953125
  %v2210 = vmul.f32 %v2208, %v2208
  %v2211 = vsub.f32 %v2209, %v2210
  %v2212 = vadd.f32 %v2211, 1e-05
  %v2213 = vrsqrt.pop %v2212
  %s2214 = scalar_lea.vmem %s3, 1
  %v2215 = vld [vmem:[%s2214] sm:$0x1]
  %v2216 = vmul.f32 %v2215, %v2213
  %s2217 = scalar_lea.vmem %s4, 1
  %v2218 = vld [vmem:[%s2217] sm:$0x1]
  %v2219 = vmul.f32 %v2208, %v2216
  %v2220 = vsub.f32 %v2218, %v2219
  %v2222 = vlaneseq
  %v2223 = vshrl.u32 %v2222, 7
  %v2224 = vsub.s32 0, %v2223
  %v2225 = vrot.slane %v2216, %v2224
  %v2227 = vmul.f32 %v1814, %v2225
  %v2228 = vmul.f32 %v1815, %v2225
  %v2229 = vmul.f32 %v1816, %v2225
  %v2230 = vmul.f32 %v1817, %v2225
  %v2231 = vmul.f32 %v1818, %v2225
  %v2232 = vmul.f32 %v1819, %v2225
  %v2233 = vmul.f32 %v1820, %v2225
  %v2234 = vmul.f32 %v1821, %v2225
  %v2235 = vmul.f32 %v1822, %v2225
  %v2236 = vmul.f32 %v1823, %v2225
  %v2237 = vmul.f32 %v1824, %v2225
  %v2238 = vmul.f32 %v1825, %v2225
  %v2239 = vmul.f32 %v1826, %v2225
  %v2240 = vmul.f32 %v1827, %v2225
  %v2241 = vmul.f32 %v1828, %v2225
  %v2242 = vmul.f32 %v1829, %v2225
  %v2243 = vmul.f32 %v1830, %v2225
  %v2244 = vmul.f32 %v1831, %v2225
  %v2245 = vmul.f32 %v1832, %v2225
  %v2246 = vmul.f32 %v1833, %v2225
  %v2247 = vmul.f32 %v1834, %v2225
  %v2248 = vmul.f32 %v1835, %v2225
  %v2249 = vmul.f32 %v1836, %v2225
  %v2250 = vmul.f32 %v1837, %v2225
  %v2251 = vmul.f32 %v1838, %v2225
  %v2252 = vmul.f32 %v1839, %v2225
  %v2253 = vmul.f32 %v1840, %v2225
  %v2254 = vmul.f32 %v1841, %v2225
  %v2255 = vmul.f32 %v1842, %v2225
  %v2256 = vmul.f32 %v1843, %v2225
  %v2257 = vmul.f32 %v1844, %v2225
  %v2258 = vmul.f32 %v1845, %v2225
  %v2259 = vmul.f32 %v1846, %v2225
  %v2260 = vmul.f32 %v1847, %v2225
  %v2261 = vmul.f32 %v1848, %v2225
  %v2262 = vmul.f32 %v1849, %v2225
  %v2263 = vmul.f32 %v1850, %v2225
  %v2264 = vmul.f32 %v1851, %v2225
  %v2265 = vmul.f32 %v1852, %v2225
  %v2266 = vmul.f32 %v1853, %v2225
  %v2267 = vmul.f32 %v1854, %v2225
  %v2268 = vmul.f32 %v1855, %v2225
  %v2269 = vmul.f32 %v1856, %v2225
  %v2270 = vmul.f32 %v1857, %v2225
  %v2271 = vmul.f32 %v1858, %v2225
  %v2272 = vmul.f32 %v1859, %v2225
  %v2273 = vmul.f32 %v1860, %v2225
  %v2274 = vmul.f32 %v1861, %v2225
  %v2275 = vmul.f32 %v1862, %v2225
  %v2276 = vmul.f32 %v1863, %v2225
  %v2277 = vmul.f32 %v1864, %v2225
  %v2278 = vmul.f32 %v1865, %v2225
  %v2279 = vmul.f32 %v1866, %v2225
  %v2280 = vmul.f32 %v1867, %v2225
  %v2281 = vmul.f32 %v1868, %v2225
  %v2282 = vmul.f32 %v1869, %v2225
  %v2283 = vmul.f32 %v1870, %v2225
  %v2284 = vmul.f32 %v1871, %v2225
  %v2285 = vmul.f32 %v1872, %v2225
  %v2286 = vmul.f32 %v1873, %v2225
  %v2287 = vmul.f32 %v1874, %v2225
  %v2288 = vmul.f32 %v1875, %v2225
  %v2289 = vmul.f32 %v1876, %v2225
  %v2290 = vmul.f32 %v1877, %v2225
  %v2292 = vlaneseq
  %v2293 = vshrl.u32 %v2292, 7
  %v2294 = vsub.s32 0, %v2293
  %v2295 = vrot.slane %v2220, %v2294
  %v2297 = vadd.f32 %v2227, %v2295
  %v2298 = vadd.f32 %v2228, %v2295
  %v2299 = vadd.f32 %v2229, %v2295
  %v2300 = vadd.f32 %v2230, %v2295
  %v2301 = vadd.f32 %v2231, %v2295
  %v2302 = vadd.f32 %v2232, %v2295
  %v2303 = vadd.f32 %v2233, %v2295
  %v2304 = vadd.f32 %v2234, %v2295
  %v2305 = vadd.f32 %v2235, %v2295
  %v2306 = vadd.f32 %v2236, %v2295
  %v2307 = vadd.f32 %v2237, %v2295
  %v2308 = vadd.f32 %v2238, %v2295
  %v2309 = vadd.f32 %v2239, %v2295
  %v2310 = vadd.f32 %v2240, %v2295
  %v2311 = vadd.f32 %v2241, %v2295
  %v2312 = vadd.f32 %v2242, %v2295
  %v2313 = vadd.f32 %v2243, %v2295
  %v2314 = vadd.f32 %v2244, %v2295
  %v2315 = vadd.f32 %v2245, %v2295
  %v2316 = vadd.f32 %v2246, %v2295
  %v2317 = vadd.f32 %v2247, %v2295
  %v2318 = vadd.f32 %v2248, %v2295
  %v2319 = vadd.f32 %v2249, %v2295
  %v2320 = vadd.f32 %v2250, %v2295
  %v2321 = vadd.f32 %v2251, %v2295
  %v2322 = vadd.f32 %v2252, %v2295
  %v2323 = vadd.f32 %v2253, %v2295
  %v2324 = vadd.f32 %v2254, %v2295
  %v2325 = vadd.f32 %v2255, %v2295
  %v2326 = vadd.f32 %v2256, %v2295
  %v2327 = vadd.f32 %v2257, %v2295
  %v2328 = vadd.f32 %v2258, %v2295
  %v2329 = vadd.f32 %v2259, %v2295
  %v2330 = vadd.f32 %v2260, %v2295
  %v2331 = vadd.f32 %v2261, %v2295
  %v2332 = vadd.f32 %v2262, %v2295
  %v2333 = vadd.f32 %v2263, %v2295
  %v2334 = vadd.f32 %v2264, %v2295
  %v2335 = vadd.f32 %v2265, %v2295
  %v2336 = vadd.f32 %v2266, %v2295
  %v2337 = vadd.f32 %v2267, %v2295
  %v2338 = vadd.f32 %v2268, %v2295
  %v2339 = vadd.f32 %v2269, %v2295
  %v2340 = vadd.f32 %v2270, %v2295
  %v2341 = vadd.f32 %v2271, %v2295
  %v2342 = vadd.f32 %v2272, %v2295
  %v2343 = vadd.f32 %v2273, %v2295
  %v2344 = vadd.f32 %v2274, %v2295
  %v2345 = vadd.f32 %v2275, %v2295
  %v2346 = vadd.f32 %v2276, %v2295
  %v2347 = vadd.f32 %v2277, %v2295
  %v2348 = vadd.f32 %v2278, %v2295
  %v2349 = vadd.f32 %v2279, %v2295
  %v2350 = vadd.f32 %v2280, %v2295
  %v2351 = vadd.f32 %v2281, %v2295
  %v2352 = vadd.f32 %v2282, %v2295
  %v2353 = vadd.f32 %v2283, %v2295
  %v2354 = vadd.f32 %v2284, %v2295
  %v2355 = vadd.f32 %v2285, %v2295
  %v2356 = vadd.f32 %v2286, %v2295
  %v2357 = vadd.f32 %v2287, %v2295
  %v2358 = vadd.f32 %v2288, %v2295
  %v2359 = vadd.f32 %v2289, %v2295
  %v2360 = vadd.f32 %v2290, %v2295
  %s2361 = scalar_lea.vmem %s1, 64
  %v2362 = vld [vmem:[%s2361] sm:$0xff]
  %v2363 = vld [vmem:[%s2361 + $0x8] sm:$0xff]
  %v2364 = vld [vmem:[%s2361 + $0x10] sm:$0xff]
  %v2365 = vld [vmem:[%s2361 + $0x18] sm:$0xff]
  %s2366 = scalar_lea.vmem %s2, 2
  %v2367 = vld [vmem:[%s2366] sm:$0x1]
  %v2369 = vlaneseq
  %v2370 = vshrl.u32 %v2369, 7
  %v2371 = vsub.s32 0, %v2370
  %v2372 = vrot.slane %v2367, %v2371
  %v2375 = vsel %vm101, %v2297, 0
  %v2378 = vsel %vm101, %v2298, 0
  %v2381 = vsel %vm101, %v2299, 0
  %v2384 = vsel %vm101, %v2300, 0
  %v2387 = vsel %vm101, %v2301, 0
  %v2390 = vsel %vm101, %v2302, 0
  %v2393 = vsel %vm101, %v2303, 0
  %v2396 = vsel %vm101, %v2304, 0
  %v2399 = vsel %vm101, %v2305, 0
  %v2402 = vsel %vm101, %v2306, 0
  %v2405 = vsel %vm101, %v2307, 0
  %v2408 = vsel %vm101, %v2308, 0
  %v2411 = vsel %vm101, %v2309, 0
  %v2414 = vsel %vm101, %v2310, 0
  %v2417 = vsel %vm101, %v2311, 0
  %v2420 = vsel %vm101, %v2312, 0
  %v2423 = vsel %vm101, %v2313, 0
  %v2426 = vsel %vm101, %v2314, 0
  %v2429 = vsel %vm101, %v2315, 0
  %v2432 = vsel %vm101, %v2316, 0
  %v2435 = vsel %vm101, %v2317, 0
  %v2438 = vsel %vm101, %v2318, 0
  %v2441 = vsel %vm101, %v2319, 0
  %v2444 = vsel %vm101, %v2320, 0
  %v2447 = vsel %vm101, %v2321, 0
  %v2450 = vsel %vm101, %v2322, 0
  %v2453 = vsel %vm101, %v2323, 0
  %v2456 = vsel %vm101, %v2324, 0
  %v2459 = vsel %vm101, %v2325, 0
  %v2462 = vsel %vm101, %v2326, 0
  %v2465 = vsel %vm101, %v2327, 0
  %v2468 = vsel %vm101, %v2328, 0
  %v2471 = vsel %vm101, %v2329, 0
  %v2474 = vsel %vm101, %v2330, 0
  %v2477 = vsel %vm101, %v2331, 0
  %v2480 = vsel %vm101, %v2332, 0
  %v2483 = vsel %vm101, %v2333, 0
  %v2486 = vsel %vm101, %v2334, 0
  %v2489 = vsel %vm101, %v2335, 0
  %v2492 = vsel %vm101, %v2336, 0
  %v2495 = vsel %vm101, %v2337, 0
  %v2498 = vsel %vm101, %v2338, 0
  %v2501 = vsel %vm101, %v2339, 0
  %v2504 = vsel %vm101, %v2340, 0
  %v2507 = vsel %vm101, %v2341, 0
  %v2510 = vsel %vm101, %v2342, 0
  %v2513 = vsel %vm101, %v2343, 0
  %v2516 = vsel %vm101, %v2344, 0
  %v2519 = vsel %vm101, %v2345, 0
  %v2522 = vsel %vm101, %v2346, 0
  %v2525 = vsel %vm101, %v2347, 0
  %v2528 = vsel %vm101, %v2348, 0
  %v2531 = vsel %vm101, %v2349, 0
  %v2534 = vsel %vm101, %v2350, 0
  %v2537 = vsel %vm101, %v2351, 0
  %v2540 = vsel %vm101, %v2352, 0
  %v2543 = vsel %vm101, %v2353, 0
  %v2546 = vsel %vm101, %v2354, 0
  %v2549 = vsel %vm101, %v2355, 0
  %v2552 = vsel %vm101, %v2356, 0
  %v2555 = vsel %vm101, %v2357, 0
  %v2558 = vsel %vm101, %v2358, 0
  %v2561 = vsel %vm101, %v2359, 0
  %v2564 = vsel %vm101, %v2360, 0
  %2566 = vmatprep.subr.mxu0 0.0
  %2567 = vmatpush1.msra.mxu0 %v2362
  %2568 = vmatprep.subr.mxu0 0.0
  %2569 = vmatpush1.msra.mxu0 %v2363
  %2570 = vmatprep.subr.mxu0 0.0
  %2571 = vmatpush1.msra.mxu0 %v2364
  %2572 = vmatprep.subr.mxu0 0.0
  %2573 = vmatpush1.msra.mxu0 %v2365
  %2574 = vmatprep.subr.mxu0 0.0
  %2575 = vmatpush1.msra.mxu0 0.0
  %2576 = vmatprep.subr.mxu0 0.0
  %2577 = vmatpush1.msra.mxu0 0.0
  %2578 = vmatprep.subr.mxu0 0.0
  %2579 = vmatpush1.msra.mxu0 0.0
  %2580 = vmatprep.subr.mxu0 0.0
  %2581 = vmatpush1.msra.mxu0 0.0
  %2582 = vmatprep.subr.mxu0 0.0
  %2583 = vmatpush1.msra.mxu0 0.0
  %2584 = vmatprep.subr.mxu0 0.0
  %2585 = vmatpush1.msra.mxu0 0.0
  %2586 = vmatprep.subr.mxu0 0.0
  %2587 = vmatpush1.msra.mxu0 0.0
  %2588 = vmatprep.subr.mxu0 0.0
  %2589 = vmatpush1.msra.mxu0 0.0
  %2590 = vmatprep.subr.mxu0 0.0
  %2591 = vmatpush1.msra.mxu0 0.0
  %2592 = vmatprep.subr.mxu0 0.0
  %2593 = vmatpush1.msra.mxu0 0.0
  %2594 = vmatprep.subr.mxu0 0.0
  %2595 = vmatpush1.msra.mxu0 0.0
  %2596 = vmatprep.subr.mxu0 0.0
  %2597 = vmatpush1.msra.mxu0 0.0
  %2598 = vmatprep.subr.mxu0 0.0
  %2599 = vmatpush1.msra.mxu0 0.0
  %2600 = vmatprep.subr.mxu0 0.0
  %2601 = vmatpush1.msra.mxu0 0.0
  %2602 = vmatprep.subr.mxu0 0.0
  %2603 = vmatpush1.msra.mxu0 0.0
  %2604 = vmatprep.subr.mxu0 0.0
  %2605 = vmatpush1.msra.mxu0 0.0
  %2606 = vmatprep.subr.mxu0 0.0
  %2607 = vmatpush1.msra.mxu0 0.0
  %2608 = vmatprep.subr.mxu0 0.0
  %2609 = vmatpush1.msra.mxu0 0.0
  %2610 = vmatprep.subr.mxu0 0.0
  %2611 = vmatpush1.msra.mxu0 0.0
  %2612 = vmatprep.subr.mxu0 0.0
  %2613 = vmatpush1.msra.mxu0 0.0
  %2614 = vmatprep.subr.mxu0 0.0
  %2615 = vmatpush1.msra.mxu0 0.0
  %2616 = vmatprep.subr.mxu0 0.0
  %2617 = vmatpush1.msra.mxu0 0.0
  %2618 = vmatprep.subr.mxu0 0.0
  %2619 = vmatpush1.msra.mxu0 0.0
  %2620 = vmatprep.subr.mxu0 0.0
  %2621 = vmatpush1.msra.mxu0 0.0
  %2622 = vmatprep.subr.mxu0 0.0
  %2623 = vmatpush1.msra.mxu0 0.0
  %2624 = vmatprep.subr.mxu0 0.0
  %2625 = vmatpush1.msra.mxu0 0.0
  %2626 = vmatprep.subr.mxu0 0.0
  %2627 = vmatpush1.msra.mxu0 0.0
  %2628 = vmatprep.subr.mxu0 0.0
  %2629 = vmatpush1.msra.mxu0 0.0
  %2630 = vmatprep.mubr.f32.mxu0 0.0
  %2631 = vmatmul.mubr.f32.gmra.mrb[0].mxu0 %v2375
  %v2632 = vpop.f32.mrb[0].mxu0
  %v2633 = vadd.f32 %v2372, %v2632
  %v2634 = vpop.f32.mrb[0].mxu0
  %2635 = vmatprep.mubr.f32.mxu0 0.0
  %2636 = vmatmul.mubr.f32.gmra.mrb[0].mxu0 %v2378
  %v2637 = vpop.f32.mrb[0].mxu0
  %v2638 = vadd.f32 %v2372, %v2637
  %v2639 = vpop.f32.mrb[0].mxu0
  %2640 = vmatprep.mubr.f32.mxu0 0.0
  %2641 = vmatmul.mubr.f32.gmra.mrb[0].mxu0 %v2381
  %v2642 = vpop.f32.mrb[0].mxu0
  %v2643 = vadd.f32 %v2372, %v2642
  %v2644 = vpop.f32.mrb[0].mxu0
  %2645 = vmatprep.mubr.f32.mxu0 0.0
  %2646 = vmatmul.mubr.f32.gmra.mrb[0].mxu0 %v2384
  %v2647 = vpop.f32.mrb[0].mxu0
  %v2648 = vadd.f32 %v2372, %v2647
  %v2649 = vpop.f32.mrb[0].mxu0
  %2650 = vmatprep.mubr.f32.mxu0 0.0
  %2651 = vmatmul.mubr.f32.gmra.mrb[0].mxu0 %v2387
  %v2652 = vpop.f32.mrb[0].mxu0
  %v2653 = vadd.f32 %v2372, %v2652
  %v2654 = vpop.f32.mrb[0].mxu0
  %2655 = vmatprep.mubr.f32.mxu0 0.0
  %2656 = vmatmul.mubr.f32.gmra.mrb[0].mxu0 %v2390
  %v2657 = vpop.f32.mrb[0].mxu0
  %v2658 = vadd.f32 %v2372, %v2657
  %v2659 = vpop.f32.mrb[0].mxu0
  %2660 = vmatprep.mubr.f32.mxu0 0.0
  %2661 = vmatmul.mubr.f32.gmra.mrb[0].mxu0 %v2393
  %v2662 = vpop.f32.mrb[0].mxu0
  %v2663 = vadd.f32 %v2372, %v2662
  %v2664 = vpop.f32.mrb[0].mxu0
  %2665 = vmatprep.mubr.f32.mxu0 0.0
  %2666 = vmatmul.mubr.f32.gmra.mrb[0].mxu0 %v2396
  %v2667 = vpop.f32.mrb[0].mxu0
  %v2668 = vadd.f32 %v2372, %v2667
  %v2669 = vpop.f32.mrb[0].mxu0
  %2670 = vmatprep.mubr.f32.mxu0 0.0
  %2671 = vmatmul.mubr.f32.gmra.mrb[0].mxu0 %v2399
  %v2672 = vpop.f32.mrb[0].mxu0
  %v2673 = vadd.f32 %v2372, %v2672
  %v2674 = vpop.f32.mrb[0].mxu0
  %2675 = vmatprep.mubr.f32.mxu0 0.0
  %2676 = vmatmul.mubr.f32.gmra.mrb[0].mxu0 %v2402
  %v2677 = vpop.f32.mrb[0].mxu0
  %v2678 = vadd.f32 %v2372, %v2677
  %v2679 = vpop.f32.mrb[0].mxu0
  %2680 = vmatprep.mubr.f32.mxu0 0.0
  %2681 = vmatmul.mubr.f32.gmra.mrb[0].mxu0 %v2405
  %v2682 = vpop.f32.mrb[0].mxu0
  %v2683 = vadd.f32 %v2372, %v2682
  %v2684 = vpop.f32.mrb[0].mxu0
  %2685 = vmatprep.mubr.f32.mxu0 0.0
  %2686 = vmatmul.mubr.f32.gmra.mrb[0].mxu0 %v2408
  %v2687 = vpop.f32.mrb[0].mxu0
  %v2688 = vadd.f32 %v2372, %v2687
  %v2689 = vpop.f32.mrb[0].mxu0
  %2690 = vmatprep.mubr.f32.mxu0 0.0
  %2691 = vmatmul.mubr.f32.gmra.mrb[0].mxu0 %v2411
  %v2692 = vpop.f32.mrb[0].mxu0
  %v2693 = vadd.f32 %v2372, %v2692
  %v2694 = vpop.f32.mrb[0].mxu0
  %2695 = vmatprep.mubr.f32.mxu0 0.0
  %2696 = vmatmul.mubr.f32.gmra.mrb[0].mxu0 %v2414
  %v2697 = vpop.f32.mrb[0].mxu0
  %v2698 = vadd.f32 %v2372, %v2697
  %v2699 = vpop.f32.mrb[0].mxu0
  %2700 = vmatprep.mubr.f32.mxu0 0.0
  %2701 = vmatmul.mubr.f32.gmra.mrb[0].mxu0 %v2417
  %v2702 = vpop.f32.mrb[0].mxu0
  %v2703 = vadd.f32 %v2372, %v2702
  %v2704 = vpop.f32.mrb[0].mxu0
  %2705 = vmatprep.mubr.f32.mxu0 0.0
  %2706 = vmatmul.mubr.f32.gmra.mrb[0].mxu0 %v2420
  %v2707 = vpop.f32.mrb[0].mxu0
  %v2708 = vadd.f32 %v2372, %v2707
  %v2709 = vpop.f32.mrb[0].mxu0
  %2710 = vmatprep.mubr.f32.mxu0 0.0
  %2711 = vmatmul.mubr.f32.gmra.mrb[0].mxu0 %v2423
  %v2712 = vpop.f32.mrb[0].mxu0
  %v2713 = vadd.f32 %v2372, %v2712
  %v2714 = vpop.f32.mrb[0].mxu0
  %2715 = vmatprep.mubr.f32.mxu0 0.0
  %2716 = vmatmul.mubr.f32.gmra.mrb[0].mxu0 %v2426
  %v2717 = vpop.f32.mrb[0].mxu0
  %v2718 = vadd.f32 %v2372, %v2717
  %v2719 = vpop.f32.mrb[0].mxu0
  %2720 = vmatprep.mubr.f32.mxu0 0.0
  %2721 = vmatmul.mubr.f32.gmra.mrb[0].mxu0 %v2429
  %v2722 = vpop.f32.mrb[0].mxu0
  %v2723 = vadd.f32 %v2372, %v2722
  %v2724 = vpop.f32.mrb[0].mxu0
  %2725 = vmatprep.mubr.f32.mxu0 0.0
  %2726 = vmatmul.mubr.f32.gmra.mrb[0].mxu0 %v2432
  %v2727 = vpop.f32.mrb[0].mxu0
  %v2728 = vadd.f32 %v2372, %v2727
  %v2729 = vpop.f32.mrb[0].mxu0
  %2730 = vmatprep.mubr.f32.mxu0 0.0
  %2731 = vmatmul.mubr.f32.gmra.mrb[0].mxu0 %v2435
  %v2732 = vpop.f32.mrb[0].mxu0
  %v2733 = vadd.f32 %v2372, %v2732
  %v2734 = vpop.f32.mrb[0].mxu0
  %2735 = vmatprep.mubr.f32.mxu0 0.0
  %2736 = vmatmul.mubr.f32.gmra.mrb[0].mxu0 %v2438
  %v2737 = vpop.f32.mrb[0].mxu0
  %v2738 = vadd.f32 %v2372, %v2737
  %v2739 = vpop.f32.mrb[0].mxu0
  %2740 = vmatprep.mubr.f32.mxu0 0.0
  %2741 = vmatmul.mubr.f32.gmra.mrb[0].mxu0 %v2441
  %v2742 = vpop.f32.mrb[0].mxu0
  %v2743 = vadd.f32 %v2372, %v2742
  %v2744 = vpop.f32.mrb[0].mxu0
  %2745 = vmatprep.mubr.f32.mxu0 0.0
  %2746 = vmatmul.mubr.f32.gmra.mrb[0].mxu0 %v2444
  %v2747 = vpop.f32.mrb[0].mxu0
  %v2748 = vadd.f32 %v2372, %v2747
  %v2749 = vpop.f32.mrb[0].mxu0
  %2750 = vmatprep.mubr.f32.mxu0 0.0
  %2751 = vmatmul.mubr.f32.gmra.mrb[0].mxu0 %v2447
  %v2752 = vpop.f32.mrb[0].mxu0
  %v2753 = vadd.f32 %v2372, %v2752
  %v2754 = vpop.f32.mrb[0].mxu0
  %2755 = vmatprep.mubr.f32.mxu0 0.0
  %2756 = vmatmul.mubr.f32.gmra.mrb[0].mxu0 %v2450
  %v2757 = vpop.f32.mrb[0].mxu0
  %v2758 = vadd.f32 %v2372, %v2757
  %v2759 = vpop.f32.mrb[0].mxu0
  %2760 = vmatprep.mubr.f32.mxu0 0.0
  %2761 = vmatmul.mubr.f32.gmra.mrb[0].mxu0 %v2453
  %v2762 = vpop.f32.mrb[0].mxu0
  %v2763 = vadd.f32 %v2372, %v2762
  %v2764 = vpop.f32.mrb[0].mxu0
  %2765 = vmatprep.mubr.f32.mxu0 0.0
  %2766 = vmatmul.mubr.f32.gmra.mrb[0].mxu0 %v2456
  %v2767 = vpop.f32.mrb[0].mxu0
  %v2768 = vadd.f32 %v2372, %v2767
  %v2769 = vpop.f32.mrb[0].mxu0
  %2770 = vmatprep.mubr.f32.mxu0 0.0
  %2771 = vmatmul.mubr.f32.gmra.mrb[0].mxu0 %v2459
  %v2772 = vpop.f32.mrb[0].mxu0
  %v2773 = vadd.f32 %v2372, %v2772
  %v2774 = vpop.f32.mrb[0].mxu0
  %2775 = vmatprep.mubr.f32.mxu0 0.0
  %2776 = vmatmul.mubr.f32.gmra.mrb[0].mxu0 %v2462
  %v2777 = vpop.f32.mrb[0].mxu0
  %v2778 = vadd.f32 %v2372, %v2777
  %v2779 = vpop.f32.mrb[0].mxu0
  %2780 = vmatprep.mubr.f32.mxu0 0.0
  %2781 = vmatmul.mubr.f32.gmra.mrb[0].mxu0 %v2465
  %v2782 = vpop.f32.mrb[0].mxu0
  %v2783 = vadd.f32 %v2372, %v2782
  %v2784 = vpop.f32.mrb[0].mxu0
  %2785 = vmatprep.mubr.f32.mxu0 0.0
  %2786 = vmatmul.mubr.f32.gmra.mrb[0].mxu0 %v2468
  %v2787 = vpop.f32.mrb[0].mxu0
  %v2788 = vadd.f32 %v2372, %v2787
  %v2789 = vpop.f32.mrb[0].mxu0
  %2790 = vmatprep.mubr.f32.mxu0 0.0
  %2791 = vmatmul.mubr.f32.gmra.mrb[0].mxu0 %v2471
  %v2792 = vpop.f32.mrb[0].mxu0
  %v2793 = vadd.f32 %v2372, %v2792
  %v2794 = vpop.f32.mrb[0].mxu0
  %2795 = vmatprep.mubr.f32.mxu0 0.0
  %2796 = vmatmul.mubr.f32.gmra.mrb[0].mxu0 %v2474
  %v2797 = vpop.f32.mrb[0].mxu0
  %v2798 = vadd.f32 %v2372, %v2797
  %v2799 = vpop.f32.mrb[0].mxu0
  %2800 = vmatprep.mubr.f32.mxu0 0.0
  %2801 = vmatmul.mubr.f32.gmra.mrb[0].mxu0 %v2477
  %v2802 = vpop.f32.mrb[0].mxu0
  %v2803 = vadd.f32 %v2372, %v2802
  %v2804 = vpop.f32.mrb[0].mxu0
  %2805 = vmatprep.mubr.f32.mxu0 0.0
  %2806 = vmatmul.mubr.f32.gmra.mrb[0].mxu0 %v2480
  %v2807 = vpop.f32.mrb[0].mxu0
  %v2808 = vadd.f32 %v2372, %v2807
  %v2809 = vpop.f32.mrb[0].mxu0
  %2810 = vmatprep.mubr.f32.mxu0 0.0
  %2811 = vmatmul.mubr.f32.gmra.mrb[0].mxu0 %v2483
  %v2812 = vpop.f32.mrb[0].mxu0
  %v2813 = vadd.f32 %v2372, %v2812
  %v2814 = vpop.f32.mrb[0].mxu0
  %2815 = vmatprep.mubr.f32.mxu0 0.0
  %2816 = vmatmul.mubr.f32.gmra.mrb[0].mxu0 %v2486
  %v2817 = vpop.f32.mrb[0].mxu0
  %v2818 = vadd.f32 %v2372, %v2817
  %v2819 = vpop.f32.mrb[0].mxu0
  %2820 = vmatprep.mubr.f32.mxu0 0.0
  %2821 = vmatmul.mubr.f32.gmra.mrb[0].mxu0 %v2489
  %v2822 = vpop.f32.mrb[0].mxu0
  %v2823 = vadd.f32 %v2372, %v2822
  %v2824 = vpop.f32.mrb[0].mxu0
  %2825 = vmatprep.mubr.f32.mxu0 0.0
  %2826 = vmatmul.mubr.f32.gmra.mrb[0].mxu0 %v2492
  %v2827 = vpop.f32.mrb[0].mxu0
  %v2828 = vadd.f32 %v2372, %v2827
  %v2829 = vpop.f32.mrb[0].mxu0
  %2830 = vmatprep.mubr.f32.mxu0 0.0
  %2831 = vmatmul.mubr.f32.gmra.mrb[0].mxu0 %v2495
  %v2832 = vpop.f32.mrb[0].mxu0
  %v2833 = vadd.f32 %v2372, %v2832
  %v2834 = vpop.f32.mrb[0].mxu0
  %2835 = vmatprep.mubr.f32.mxu0 0.0
  %2836 = vmatmul.mubr.f32.gmra.mrb[0].mxu0 %v2498
  %v2837 = vpop.f32.mrb[0].mxu0
  %v2838 = vadd.f32 %v2372, %v2837
  %v2839 = vpop.f32.mrb[0].mxu0
  %2840 = vmatprep.mubr.f32.mxu0 0.0
  %2841 = vmatmul.mubr.f32.gmra.mrb[0].mxu0 %v2501
  %v2842 = vpop.f32.mrb[0].mxu0
  %v2843 = vadd.f32 %v2372, %v2842
  %v2844 = vpop.f32.mrb[0].mxu0
  %2845 = vmatprep.mubr.f32.mxu0 0.0
  %2846 = vmatmul.mubr.f32.gmra.mrb[0].mxu0 %v2504
  %v2847 = vpop.f32.mrb[0].mxu0
  %v2848 = vadd.f32 %v2372, %v2847
  %v2849 = vpop.f32.mrb[0].mxu0
  %2850 = vmatprep.mubr.f32.mxu0 0.0
  %2851 = vmatmul.mubr.f32.gmra.mrb[0].mxu0 %v2507
  %v2852 = vpop.f32.mrb[0].mxu0
  %v2853 = vadd.f32 %v2372, %v2852
  %v2854 = vpop.f32.mrb[0].mxu0
  %2855 = vmatprep.mubr.f32.mxu0 0.0
  %2856 = vmatmul.mubr.f32.gmra.mrb[0].mxu0 %v2510
  %v2857 = vpop.f32.mrb[0].mxu0
  %v2858 = vadd.f32 %v2372, %v2857
  %v2859 = vpop.f32.mrb[0].mxu0
  %2860 = vmatprep.mubr.f32.mxu0 0.0
  %2861 = vmatmul.mubr.f32.gmra.mrb[0].mxu0 %v2513
  %v2862 = vpop.f32.mrb[0].mxu0
  %v2863 = vadd.f32 %v2372, %v2862
  %v2864 = vpop.f32.mrb[0].mxu0
  %2865 = vmatprep.mubr.f32.mxu0 0.0
  %2866 = vmatmul.mubr.f32.gmra.mrb[0].mxu0 %v2516
  %v2867 = vpop.f32.mrb[0].mxu0
  %v2868 = vadd.f32 %v2372, %v2867
  %v2869 = vpop.f32.mrb[0].mxu0
  %2870 = vmatprep.mubr.f32.mxu0 0.0
  %2871 = vmatmul.mubr.f32.gmra.mrb[0].mxu0 %v2519
  %v2872 = vpop.f32.mrb[0].mxu0
  %v2873 = vadd.f32 %v2372, %v2872
  %v2874 = vpop.f32.mrb[0].mxu0
  %2875 = vmatprep.mubr.f32.mxu0 0.0
  %2876 = vmatmul.mubr.f32.gmra.mrb[0].mxu0 %v2522
  %v2877 = vpop.f32.mrb[0].mxu0
  %v2878 = vadd.f32 %v2372, %v2877
  %v2879 = vpop.f32.mrb[0].mxu0
  %2880 = vmatprep.mubr.f32.mxu0 0.0
  %2881 = vmatmul.mubr.f32.gmra.mrb[0].mxu0 %v2525
  %v2882 = vpop.f32.mrb[0].mxu0
  %v2883 = vadd.f32 %v2372, %v2882
  %v2884 = vpop.f32.mrb[0].mxu0
  %2885 = vmatprep.mubr.f32.mxu0 0.0
  %2886 = vmatmul.mubr.f32.gmra.mrb[0].mxu0 %v2528
  %v2887 = vpop.f32.mrb[0].mxu0
  %v2888 = vadd.f32 %v2372, %v2887
  %v2889 = vpop.f32.mrb[0].mxu0
  %2890 = vmatprep.mubr.f32.mxu0 0.0
  %2891 = vmatmul.mubr.f32.gmra.mrb[0].mxu0 %v2531
  %v2892 = vpop.f32.mrb[0].mxu0
  %v2893 = vadd.f32 %v2372, %v2892
  %v2894 = vpop.f32.mrb[0].mxu0
  %2895 = vmatprep.mubr.f32.mxu0 0.0
  %2896 = vmatmul.mubr.f32.gmra.mrb[0].mxu0 %v2534
  %v2897 = vpop.f32.mrb[0].mxu0
  %v2898 = vadd.f32 %v2372, %v2897
  %v2899 = vpop.f32.mrb[0].mxu0
  %2900 = vmatprep.mubr.f32.mxu0 0.0
  %2901 = vmatmul.mubr.f32.gmra.mrb[0].mxu0 %v2537
  %v2902 = vpop.f32.mrb[0].mxu0
  %v2903 = vadd.f32 %v2372, %v2902
  %v2904 = vpop.f32.mrb[0].mxu0
  %2905 = vmatprep.mubr.f32.mxu0 0.0
  %2906 = vmatmul.mubr.f32.gmra.mrb[0].mxu0 %v2540
  %v2907 = vpop.f32.mrb[0].mxu0
  %v2908 = vadd.f32 %v2372, %v2907
  %v2909 = vpop.f32.mrb[0].mxu0
  %2910 = vmatprep.mubr.f32.mxu0 0.0
  %2911 = vmatmul.mubr.f32.gmra.mrb[0].mxu0 %v2543
  %v2912 = vpop.f32.mrb[0].mxu0
  %v2913 = vadd.f32 %v2372, %v2912
  %v2914 = vpop.f32.mrb[0].mxu0
  %2915 = vmatprep.mubr.f32.mxu0 0.0
  %2916 = vmatmul.mubr.f32.gmra.mrb[0].mxu0 %v2546
  %v2917 = vpop.f32.mrb[0].mxu0
  %v2918 = vadd.f32 %v2372, %v2917
  %v2919 = vpop.f32.mrb[0].mxu0
  %2920 = vmatprep.mubr.f32.mxu0 0.0
  %2921 = vmatmul.mubr.f32.gmra.mrb[0].mxu0 %v2549
  %v2922 = vpop.f32.mrb[0].mxu0
  %v2923 = vadd.f32 %v2372, %v2922
  %v2924 = vpop.f32.mrb[0].mxu0
  %2925 = vmatprep.mubr.f32.mxu0 0.0
  %2926 = vmatmul.mubr.f32.gmra.mrb[0].mxu0 %v2552
  %v2927 = vpop.f32.mrb[0].mxu0
  %v2928 = vadd.f32 %v2372, %v2927
  %v2929 = vpop.f32.mrb[0].mxu0
  %2930 = vmatprep.mubr.f32.mxu0 0.0
  %2931 = vmatmul.mubr.f32.gmra.mrb[0].mxu0 %v2555
  %v2932 = vpop.f32.mrb[0].mxu0
  %v2933 = vadd.f32 %v2372, %v2932
  %v2934 = vpop.f32.mrb[0].mxu0
  %2935 = vmatprep.mubr.f32.mxu0 0.0
  %2936 = vmatmul.mubr.f32.gmra.mrb[0].mxu0 %v2558
  %v2937 = vpop.f32.mrb[0].mxu0
  %v2938 = vadd.f32 %v2372, %v2937
  %v2939 = vpop.f32.mrb[0].mxu0
  %2940 = vmatprep.mubr.f32.mxu0 0.0
  %2941 = vmatmul.mubr.f32.gmra.mrb[0].mxu0 %v2561
  %v2942 = vpop.f32.mrb[0].mxu0
  %v2943 = vadd.f32 %v2372, %v2942
  %v2944 = vpop.f32.mrb[0].mxu0
  %2945 = vmatprep.mubr.f32.mxu0 0.0
  %2946 = vmatmul.mubr.f32.gmra.mrb[0].mxu0 %v2564
  %v2947 = vpop.f32.mrb[0].mxu0
  %v2948 = vadd.f32 %v2372, %v2947
  %v2949 = vpop.f32.mrb[0].mxu0
  %2950 = vdwg.mxu0
  %v2951 = vmax.f32 %v2633, 0.0
  %v2952 = vmax.f32 %v2638, 0.0
  %v2953 = vmax.f32 %v2643, 0.0
  %v2954 = vmax.f32 %v2648, 0.0
  %v2955 = vmax.f32 %v2653, 0.0
  %v2956 = vmax.f32 %v2658, 0.0
  %v2957 = vmax.f32 %v2663, 0.0
  %v2958 = vmax.f32 %v2668, 0.0
  %v2959 = vmax.f32 %v2673, 0.0
  %v2960 = vmax.f32 %v2678, 0.0
  %v2961 = vmax.f32 %v2683, 0.0
  %v2962 = vmax.f32 %v2688, 0.0
  %v2963 = vmax.f32 %v2693, 0.0
  %v2964 = vmax.f32 %v2698, 0.0
  %v2965 = vmax.f32 %v2703, 0.0
  %v2966 = vmax.f32 %v2708, 0.0
  %v2967 = vmax.f32 %v2713, 0.0
  %v2968 = vmax.f32 %v2718, 0.0
  %v2969 = vmax.f32 %v2723, 0.0
  %v2970 = vmax.f32 %v2728, 0.0
  %v2971 = vmax.f32 %v2733, 0.0
  %v2972 = vmax.f32 %v2738, 0.0
  %v2973 = vmax.f32 %v2743, 0.0
  %v2974 = vmax.f32 %v2748, 0.0
  %v2975 = vmax.f32 %v2753, 0.0
  %v2976 = vmax.f32 %v2758, 0.0
  %v2977 = vmax.f32 %v2763, 0.0
  %v2978 = vmax.f32 %v2768, 0.0
  %v2979 = vmax.f32 %v2773, 0.0
  %v2980 = vmax.f32 %v2778, 0.0
  %v2981 = vmax.f32 %v2783, 0.0
  %v2982 = vmax.f32 %v2788, 0.0
  %v2983 = vmax.f32 %v2793, 0.0
  %v2984 = vmax.f32 %v2798, 0.0
  %v2985 = vmax.f32 %v2803, 0.0
  %v2986 = vmax.f32 %v2808, 0.0
  %v2987 = vmax.f32 %v2813, 0.0
  %v2988 = vmax.f32 %v2818, 0.0
  %v2989 = vmax.f32 %v2823, 0.0
  %v2990 = vmax.f32 %v2828, 0.0
  %v2991 = vmax.f32 %v2833, 0.0
  %v2992 = vmax.f32 %v2838, 0.0
  %v2993 = vmax.f32 %v2843, 0.0
  %v2994 = vmax.f32 %v2848, 0.0
  %v2995 = vmax.f32 %v2853, 0.0
  %v2996 = vmax.f32 %v2858, 0.0
  %v2997 = vmax.f32 %v2863, 0.0
  %v2998 = vmax.f32 %v2868, 0.0
  %v2999 = vmax.f32 %v2873, 0.0
  %v3000 = vmax.f32 %v2878, 0.0
  %v3001 = vmax.f32 %v2883, 0.0
  %v3002 = vmax.f32 %v2888, 0.0
  %v3003 = vmax.f32 %v2893, 0.0
  %v3004 = vmax.f32 %v2898, 0.0
  %v3005 = vmax.f32 %v2903, 0.0
  %v3006 = vmax.f32 %v2908, 0.0
  %v3007 = vmax.f32 %v2913, 0.0
  %v3008 = vmax.f32 %v2918, 0.0
  %v3009 = vmax.f32 %v2923, 0.0
  %v3010 = vmax.f32 %v2928, 0.0
  %v3011 = vmax.f32 %v2933, 0.0
  %v3012 = vmax.f32 %v2938, 0.0
  %v3013 = vmax.f32 %v2943, 0.0
  %v3014 = vmax.f32 %v2948, 0.0
  %v3015 = vsel %vm101, %v2951, 0.0
  %v3016 = vsel %vm101, %v2952, 0.0
  %v3017 = vadd.f32 %v3015, %v3016
  %v3018 = vsel %vm101, %v2953, 0.0
  %v3019 = vadd.f32 %v3017, %v3018
  %v3020 = vsel %vm101, %v2954, 0.0
  %v3021 = vadd.f32 %v3019, %v3020
  %v3022 = vsel %vm101, %v2955, 0.0
  %v3023 = vadd.f32 %v3021, %v3022
  %v3024 = vsel %vm101, %v2956, 0.0
  %v3025 = vadd.f32 %v3023, %v3024
  %v3026 = vsel %vm101, %v2957, 0.0
  %v3027 = vadd.f32 %v3025, %v3026
  %v3028 = vsel %vm101, %v2958, 0.0
  %v3029 = vadd.f32 %v3027, %v3028
  %v3030 = vsel %vm101, %v2959, 0.0
  %v3031 = vadd.f32 %v3029, %v3030
  %v3032 = vsel %vm101, %v2960, 0.0
  %v3033 = vadd.f32 %v3031, %v3032
  %v3034 = vsel %vm101, %v2961, 0.0
  %v3035 = vadd.f32 %v3033, %v3034
  %v3036 = vsel %vm101, %v2962, 0.0
  %v3037 = vadd.f32 %v3035, %v3036
  %v3038 = vsel %vm101, %v2963, 0.0
  %v3039 = vadd.f32 %v3037, %v3038
  %v3040 = vsel %vm101, %v2964, 0.0
  %v3041 = vadd.f32 %v3039, %v3040
  %v3042 = vsel %vm101, %v2965, 0.0
  %v3043 = vadd.f32 %v3041, %v3042
  %v3044 = vsel %vm101, %v2966, 0.0
  %v3045 = vadd.f32 %v3043, %v3044
  %v3046 = vsel %vm101, %v2967, 0.0
  %v3047 = vadd.f32 %v3045, %v3046
  %v3048 = vsel %vm101, %v2968, 0.0
  %v3049 = vadd.f32 %v3047, %v3048
  %v3050 = vsel %vm101, %v2969, 0.0
  %v3051 = vadd.f32 %v3049, %v3050
  %v3052 = vsel %vm101, %v2970, 0.0
  %v3053 = vadd.f32 %v3051, %v3052
  %v3054 = vsel %vm101, %v2971, 0.0
  %v3055 = vadd.f32 %v3053, %v3054
  %v3056 = vsel %vm101, %v2972, 0.0
  %v3057 = vadd.f32 %v3055, %v3056
  %v3058 = vsel %vm101, %v2973, 0.0
  %v3059 = vadd.f32 %v3057, %v3058
  %v3060 = vsel %vm101, %v2974, 0.0
  %v3061 = vadd.f32 %v3059, %v3060
  %v3062 = vsel %vm101, %v2975, 0.0
  %v3063 = vadd.f32 %v3061, %v3062
  %v3064 = vsel %vm101, %v2976, 0.0
  %v3065 = vadd.f32 %v3063, %v3064
  %v3066 = vsel %vm101, %v2977, 0.0
  %v3067 = vadd.f32 %v3065, %v3066
  %v3068 = vsel %vm101, %v2978, 0.0
  %v3069 = vadd.f32 %v3067, %v3068
  %v3070 = vsel %vm101, %v2979, 0.0
  %v3071 = vadd.f32 %v3069, %v3070
  %v3072 = vsel %vm101, %v2980, 0.0
  %v3073 = vadd.f32 %v3071, %v3072
  %v3074 = vsel %vm101, %v2981, 0.0
  %v3075 = vadd.f32 %v3073, %v3074
  %v3076 = vsel %vm101, %v2982, 0.0
  %v3077 = vadd.f32 %v3075, %v3076
  %v3078 = vsel %vm101, %v2983, 0.0
  %v3079 = vadd.f32 %v3077, %v3078
  %v3080 = vsel %vm101, %v2984, 0.0
  %v3081 = vadd.f32 %v3079, %v3080
  %v3082 = vsel %vm101, %v2985, 0.0
  %v3083 = vadd.f32 %v3081, %v3082
  %v3084 = vsel %vm101, %v2986, 0.0
  %v3085 = vadd.f32 %v3083, %v3084
  %v3086 = vsel %vm101, %v2987, 0.0
  %v3087 = vadd.f32 %v3085, %v3086
  %v3088 = vsel %vm101, %v2988, 0.0
  %v3089 = vadd.f32 %v3087, %v3088
  %v3090 = vsel %vm101, %v2989, 0.0
  %v3091 = vadd.f32 %v3089, %v3090
  %v3092 = vsel %vm101, %v2990, 0.0
  %v3093 = vadd.f32 %v3091, %v3092
  %v3094 = vsel %vm101, %v2991, 0.0
  %v3095 = vadd.f32 %v3093, %v3094
  %v3096 = vsel %vm101, %v2992, 0.0
  %v3097 = vadd.f32 %v3095, %v3096
  %v3098 = vsel %vm101, %v2993, 0.0
  %v3099 = vadd.f32 %v3097, %v3098
  %v3100 = vsel %vm101, %v2994, 0.0
  %v3101 = vadd.f32 %v3099, %v3100
  %v3102 = vsel %vm101, %v2995, 0.0
  %v3103 = vadd.f32 %v3101, %v3102
  %v3104 = vsel %vm101, %v2996, 0.0
  %v3105 = vadd.f32 %v3103, %v3104
  %v3106 = vsel %vm101, %v2997, 0.0
  %v3107 = vadd.f32 %v3105, %v3106
  %v3108 = vsel %vm101, %v2998, 0.0
  %v3109 = vadd.f32 %v3107, %v3108
  %v3110 = vsel %vm101, %v2999, 0.0
  %v3111 = vadd.f32 %v3109, %v3110
  %v3112 = vsel %vm101, %v3000, 0.0
  %v3113 = vadd.f32 %v3111, %v3112
  %v3114 = vsel %vm101, %v3001, 0.0
  %v3115 = vadd.f32 %v3113, %v3114
  %v3116 = vsel %vm101, %v3002, 0.0
  %v3117 = vadd.f32 %v3115, %v3116
  %v3118 = vsel %vm101, %v3003, 0.0
  %v3119 = vadd.f32 %v3117, %v3118
  %v3120 = vsel %vm101, %v3004, 0.0
  %v3121 = vadd.f32 %v3119, %v3120
  %v3122 = vsel %vm101, %v3005, 0.0
  %v3123 = vadd.f32 %v3121, %v3122
  %v3124 = vsel %vm101, %v3006, 0.0
  %v3125 = vadd.f32 %v3123, %v3124
  %v3126 = vsel %vm101, %v3007, 0.0
  %v3127 = vadd.f32 %v3125, %v3126
  %v3128 = vsel %vm101, %v3008, 0.0
  %v3129 = vadd.f32 %v3127, %v3128
  %v3130 = vsel %vm101, %v3009, 0.0
  %v3131 = vadd.f32 %v3129, %v3130
  %v3132 = vsel %vm101, %v3010, 0.0
  %v3133 = vadd.f32 %v3131, %v3132
  %v3134 = vsel %vm101, %v3011, 0.0
  %v3135 = vadd.f32 %v3133, %v3134
  %v3136 = vsel %vm101, %v3012, 0.0
  %v3137 = vadd.f32 %v3135, %v3136
  %v3138 = vsel %vm101, %v3013, 0.0
  %v3139 = vadd.f32 %v3137, %v3138
  %v3140 = vsel %vm101, %v3014, 0.0
  %v3141 = vadd.f32 %v3139, %v3140
  %v3142 = vrot.slane %v3141, 4
  %v3143 = vadd.f32 %v3141, %v3142
  %v3144 = vrot.slane %v3143, 2
  %v3145 = vadd.f32 %v3143, %v3144
  %v3146 = vrot.slane %v3145, 1
  %v3147 = vadd.f32 %v3145, %v3146
  %v3148 = vmul.f32 %v2951, %v2951
  %v3149 = vmul.f32 %v2952, %v2952
  %v3150 = vmul.f32 %v2953, %v2953
  %v3151 = vmul.f32 %v2954, %v2954
  %v3152 = vmul.f32 %v2955, %v2955
  %v3153 = vmul.f32 %v2956, %v2956
  %v3154 = vmul.f32 %v2957, %v2957
  %v3155 = vmul.f32 %v2958, %v2958
  %v3156 = vmul.f32 %v2959, %v2959
  %v3157 = vmul.f32 %v2960, %v2960
  %v3158 = vmul.f32 %v2961, %v2961
  %v3159 = vmul.f32 %v2962, %v2962
  %v3160 = vmul.f32 %v2963, %v2963
  %v3161 = vmul.f32 %v2964, %v2964
  %v3162 = vmul.f32 %v2965, %v2965
  %v3163 = vmul.f32 %v2966, %v2966
  %v3164 = vmul.f32 %v2967, %v2967
  %v3165 = vmul.f32 %v2968, %v2968
  %v3166 = vmul.f32 %v2969, %v2969
  %v3167 = vmul.f32 %v2970, %v2970
  %v3168 = vmul.f32 %v2971, %v2971
  %v3169 = vmul.f32 %v2972, %v2972
  %v3170 = vmul.f32 %v2973, %v2973
  %v3171 = vmul.f32 %v2974, %v2974
  %v3172 = vmul.f32 %v2975, %v2975
  %v3173 = vmul.f32 %v2976, %v2976
  %v3174 = vmul.f32 %v2977, %v2977
  %v3175 = vmul.f32 %v2978, %v2978
  %v3176 = vmul.f32 %v2979, %v2979
  %v3177 = vmul.f32 %v2980, %v2980
  %v3178 = vmul.f32 %v2981, %v2981
  %v3179 = vmul.f32 %v2982, %v2982
  %v3180 = vmul.f32 %v2983, %v2983
  %v3181 = vmul.f32 %v2984, %v2984
  %v3182 = vmul.f32 %v2985, %v2985
  %v3183 = vmul.f32 %v2986, %v2986
  %v3184 = vmul.f32 %v2987, %v2987
  %v3185 = vmul.f32 %v2988, %v2988
  %v3186 = vmul.f32 %v2989, %v2989
  %v3187 = vmul.f32 %v2990, %v2990
  %v3188 = vmul.f32 %v2991, %v2991
  %v3189 = vmul.f32 %v2992, %v2992
  %v3190 = vmul.f32 %v2993, %v2993
  %v3191 = vmul.f32 %v2994, %v2994
  %v3192 = vmul.f32 %v2995, %v2995
  %v3193 = vmul.f32 %v2996, %v2996
  %v3194 = vmul.f32 %v2997, %v2997
  %v3195 = vmul.f32 %v2998, %v2998
  %v3196 = vmul.f32 %v2999, %v2999
  %v3197 = vmul.f32 %v3000, %v3000
  %v3198 = vmul.f32 %v3001, %v3001
  %v3199 = vmul.f32 %v3002, %v3002
  %v3200 = vmul.f32 %v3003, %v3003
  %v3201 = vmul.f32 %v3004, %v3004
  %v3202 = vmul.f32 %v3005, %v3005
  %v3203 = vmul.f32 %v3006, %v3006
  %v3204 = vmul.f32 %v3007, %v3007
  %v3205 = vmul.f32 %v3008, %v3008
  %v3206 = vmul.f32 %v3009, %v3009
  %v3207 = vmul.f32 %v3010, %v3010
  %v3208 = vmul.f32 %v3011, %v3011
  %v3209 = vmul.f32 %v3012, %v3012
  %v3210 = vmul.f32 %v3013, %v3013
  %v3211 = vmul.f32 %v3014, %v3014
  %v3212 = vsel %vm101, %v3148, 0.0
  %v3213 = vsel %vm101, %v3149, 0.0
  %v3214 = vadd.f32 %v3212, %v3213
  %v3215 = vsel %vm101, %v3150, 0.0
  %v3216 = vadd.f32 %v3214, %v3215
  %v3217 = vsel %vm101, %v3151, 0.0
  %v3218 = vadd.f32 %v3216, %v3217
  %v3219 = vsel %vm101, %v3152, 0.0
  %v3220 = vadd.f32 %v3218, %v3219
  %v3221 = vsel %vm101, %v3153, 0.0
  %v3222 = vadd.f32 %v3220, %v3221
  %v3223 = vsel %vm101, %v3154, 0.0
  %v3224 = vadd.f32 %v3222, %v3223
  %v3225 = vsel %vm101, %v3155, 0.0
  %v3226 = vadd.f32 %v3224, %v3225
  %v3227 = vsel %vm101, %v3156, 0.0
  %v3228 = vadd.f32 %v3226, %v3227
  %v3229 = vsel %vm101, %v3157, 0.0
  %v3230 = vadd.f32 %v3228, %v3229
  %v3231 = vsel %vm101, %v3158, 0.0
  %v3232 = vadd.f32 %v3230, %v3231
  %v3233 = vsel %vm101, %v3159, 0.0
  %v3234 = vadd.f32 %v3232, %v3233
  %v3235 = vsel %vm101, %v3160, 0.0
  %v3236 = vadd.f32 %v3234, %v3235
  %v3237 = vsel %vm101, %v3161, 0.0
  %v3238 = vadd.f32 %v3236, %v3237
  %v3239 = vsel %vm101, %v3162, 0.0
  %v3240 = vadd.f32 %v3238, %v3239
  %v3241 = vsel %vm101, %v3163, 0.0
  %v3242 = vadd.f32 %v3240, %v3241
  %v3243 = vsel %vm101, %v3164, 0.0
  %v3244 = vadd.f32 %v3242, %v3243
  %v3245 = vsel %vm101, %v3165, 0.0
  %v3246 = vadd.f32 %v3244, %v3245
  %v3247 = vsel %vm101, %v3166, 0.0
  %v3248 = vadd.f32 %v3246, %v3247
  %v3249 = vsel %vm101, %v3167, 0.0
  %v3250 = vadd.f32 %v3248, %v3249
  %v3251 = vsel %vm101, %v3168, 0.0
  %v3252 = vadd.f32 %v3250, %v3251
  %v3253 = vsel %vm101, %v3169, 0.0
  %v3254 = vadd.f32 %v3252, %v3253
  %v3255 = vsel %vm101, %v3170, 0.0
  %v3256 = vadd.f32 %v3254, %v3255
  %v3257 = vsel %vm101, %v3171, 0.0
  %v3258 = vadd.f32 %v3256, %v3257
  %v3259 = vsel %vm101, %v3172, 0.0
  %v3260 = vadd.f32 %v3258, %v3259
  %v3261 = vsel %vm101, %v3173, 0.0
  %v3262 = vadd.f32 %v3260, %v3261
  %v3263 = vsel %vm101, %v3174, 0.0
  %v3264 = vadd.f32 %v3262, %v3263
  %v3265 = vsel %vm101, %v3175, 0.0
  %v3266 = vadd.f32 %v3264, %v3265
  %v3267 = vsel %vm101, %v3176, 0.0
  %v3268 = vadd.f32 %v3266, %v3267
  %v3269 = vsel %vm101, %v3177, 0.0
  %v3270 = vadd.f32 %v3268, %v3269
  %v3271 = vsel %vm101, %v3178, 0.0
  %v3272 = vadd.f32 %v3270, %v3271
  %v3273 = vsel %vm101, %v3179, 0.0
  %v3274 = vadd.f32 %v3272, %v3273
  %v3275 = vsel %vm101, %v3180, 0.0
  %v3276 = vadd.f32 %v3274, %v3275
  %v3277 = vsel %vm101, %v3181, 0.0
  %v3278 = vadd.f32 %v3276, %v3277
  %v3279 = vsel %vm101, %v3182, 0.0
  %v3280 = vadd.f32 %v3278, %v3279
  %v3281 = vsel %vm101, %v3183, 0.0
  %v3282 = vadd.f32 %v3280, %v3281
  %v3283 = vsel %vm101, %v3184, 0.0
  %v3284 = vadd.f32 %v3282, %v3283
  %v3285 = vsel %vm101, %v3185, 0.0
  %v3286 = vadd.f32 %v3284, %v3285
  %v3287 = vsel %vm101, %v3186, 0.0
  %v3288 = vadd.f32 %v3286, %v3287
  %v3289 = vsel %vm101, %v3187, 0.0
  %v3290 = vadd.f32 %v3288, %v3289
  %v3291 = vsel %vm101, %v3188, 0.0
  %v3292 = vadd.f32 %v3290, %v3291
  %v3293 = vsel %vm101, %v3189, 0.0
  %v3294 = vadd.f32 %v3292, %v3293
  %v3295 = vsel %vm101, %v3190, 0.0
  %v3296 = vadd.f32 %v3294, %v3295
  %v3297 = vsel %vm101, %v3191, 0.0
  %v3298 = vadd.f32 %v3296, %v3297
  %v3299 = vsel %vm101, %v3192, 0.0
  %v3300 = vadd.f32 %v3298, %v3299
  %v3301 = vsel %vm101, %v3193, 0.0
  %v3302 = vadd.f32 %v3300, %v3301
  %v3303 = vsel %vm101, %v3194, 0.0
  %v3304 = vadd.f32 %v3302, %v3303
  %v3305 = vsel %vm101, %v3195, 0.0
  %v3306 = vadd.f32 %v3304, %v3305
  %v3307 = vsel %vm101, %v3196, 0.0
  %v3308 = vadd.f32 %v3306, %v3307
  %v3309 = vsel %vm101, %v3197, 0.0
  %v3310 = vadd.f32 %v3308, %v3309
  %v3311 = vsel %vm101, %v3198, 0.0
  %v3312 = vadd.f32 %v3310, %v3311
  %v3313 = vsel %vm101, %v3199, 0.0
  %v3314 = vadd.f32 %v3312, %v3313
  %v3315 = vsel %vm101, %v3200, 0.0
  %v3316 = vadd.f32 %v3314, %v3315
  %v3317 = vsel %vm101, %v3201, 0.0
  %v3318 = vadd.f32 %v3316, %v3317
  %v3319 = vsel %vm101, %v3202, 0.0
  %v3320 = vadd.f32 %v3318, %v3319
  %v3321 = vsel %vm101, %v3203, 0.0
  %v3322 = vadd.f32 %v3320, %v3321
  %v3323 = vsel %vm101, %v3204, 0.0
  %v3324 = vadd.f32 %v3322, %v3323
  %v3325 = vsel %vm101, %v3205, 0.0
  %v3326 = vadd.f32 %v3324, %v3325
  %v3327 = vsel %vm101, %v3206, 0.0
  %v3328 = vadd.f32 %v3326, %v3327
  %v3329 = vsel %vm101, %v3207, 0.0
  %v3330 = vadd.f32 %v3328, %v3329
  %v3331 = vsel %vm101, %v3208, 0.0
  %v3332 = vadd.f32 %v3330, %v3331
  %v3333 = vsel %vm101, %v3209, 0.0
  %v3334 = vadd.f32 %v3332, %v3333
  %v3335 = vsel %vm101, %v3210, 0.0
  %v3336 = vadd.f32 %v3334, %v3335
  %v3337 = vsel %vm101, %v3211, 0.0
  %v3338 = vadd.f32 %v3336, %v3337
  %v3339 = vrot.slane %v3338, 4
  %v3340 = vadd.f32 %v3338, %v3339
  %v3341 = vrot.slane %v3340, 2
  %v3342 = vadd.f32 %v3340, %v3341
  %v3343 = vrot.slane %v3342, 1
  %v3344 = vadd.f32 %v3342, %v3343
  %v3345 = vmul.f32 %v3147, 0.001953125
  %v3346 = vmul.f32 %v3344, 0.001953125
  %v3347 = vmul.f32 %v3345, %v3345
  %v3348 = vsub.f32 %v3346, %v3347
  %v3349 = vadd.f32 %v3348, 1e-05
  %v3350 = vrsqrt.pop %v3349
  %s3351 = scalar_lea.vmem %s3, 2
  %v3352 = vld [vmem:[%s3351] sm:$0x1]
  %v3353 = vmul.f32 %v3352, %v3350
  %s3354 = scalar_lea.vmem %s4, 2
  %v3355 = vld [vmem:[%s3354] sm:$0x1]
  %v3356 = vmul.f32 %v3345, %v3353
  %v3357 = vsub.f32 %v3355, %v3356
  %v3359 = vlaneseq
  %v3360 = vshrl.u32 %v3359, 7
  %v3361 = vsub.s32 0, %v3360
  %v3362 = vrot.slane %v3353, %v3361
  %v3364 = vmul.f32 %v2951, %v3362
  %v3365 = vmul.f32 %v2952, %v3362
  %v3366 = vmul.f32 %v2953, %v3362
  %v3367 = vmul.f32 %v2954, %v3362
  %v3368 = vmul.f32 %v2955, %v3362
  %v3369 = vmul.f32 %v2956, %v3362
  %v3370 = vmul.f32 %v2957, %v3362
  %v3371 = vmul.f32 %v2958, %v3362
  %v3372 = vmul.f32 %v2959, %v3362
  %v3373 = vmul.f32 %v2960, %v3362
  %v3374 = vmul.f32 %v2961, %v3362
  %v3375 = vmul.f32 %v2962, %v3362
  %v3376 = vmul.f32 %v2963, %v3362
  %v3377 = vmul.f32 %v2964, %v3362
  %v3378 = vmul.f32 %v2965, %v3362
  %v3379 = vmul.f32 %v2966, %v3362
  %v3380 = vmul.f32 %v2967, %v3362
  %v3381 = vmul.f32 %v2968, %v3362
  %v3382 = vmul.f32 %v2969, %v3362
  %v3383 = vmul.f32 %v2970, %v3362
  %v3384 = vmul.f32 %v2971, %v3362
  %v3385 = vmul.f32 %v2972, %v3362
  %v3386 = vmul.f32 %v2973, %v3362
  %v3387 = vmul.f32 %v2974, %v3362
  %v3388 = vmul.f32 %v2975, %v3362
  %v3389 = vmul.f32 %v2976, %v3362
  %v3390 = vmul.f32 %v2977, %v3362
  %v3391 = vmul.f32 %v2978, %v3362
  %v3392 = vmul.f32 %v2979, %v3362
  %v3393 = vmul.f32 %v2980, %v3362
  %v3394 = vmul.f32 %v2981, %v3362
  %v3395 = vmul.f32 %v2982, %v3362
  %v3396 = vmul.f32 %v2983, %v3362
  %v3397 = vmul.f32 %v2984, %v3362
  %v3398 = vmul.f32 %v2985, %v3362
  %v3399 = vmul.f32 %v2986, %v3362
  %v3400 = vmul.f32 %v2987, %v3362
  %v3401 = vmul.f32 %v2988, %v3362
  %v3402 = vmul.f32 %v2989, %v3362
  %v3403 = vmul.f32 %v2990, %v3362
  %v3404 = vmul.f32 %v2991, %v3362
  %v3405 = vmul.f32 %v2992, %v3362
  %v3406 = vmul.f32 %v2993, %v3362
  %v3407 = vmul.f32 %v2994, %v3362
  %v3408 = vmul.f32 %v2995, %v3362
  %v3409 = vmul.f32 %v2996, %v3362
  %v3410 = vmul.f32 %v2997, %v3362
  %v3411 = vmul.f32 %v2998, %v3362
  %v3412 = vmul.f32 %v2999, %v3362
  %v3413 = vmul.f32 %v3000, %v3362
  %v3414 = vmul.f32 %v3001, %v3362
  %v3415 = vmul.f32 %v3002, %v3362
  %v3416 = vmul.f32 %v3003, %v3362
  %v3417 = vmul.f32 %v3004, %v3362
  %v3418 = vmul.f32 %v3005, %v3362
  %v3419 = vmul.f32 %v3006, %v3362
  %v3420 = vmul.f32 %v3007, %v3362
  %v3421 = vmul.f32 %v3008, %v3362
  %v3422 = vmul.f32 %v3009, %v3362
  %v3423 = vmul.f32 %v3010, %v3362
  %v3424 = vmul.f32 %v3011, %v3362
  %v3425 = vmul.f32 %v3012, %v3362
  %v3426 = vmul.f32 %v3013, %v3362
  %v3427 = vmul.f32 %v3014, %v3362
  %v3429 = vlaneseq
  %v3430 = vshrl.u32 %v3429, 7
  %v3431 = vsub.s32 0, %v3430
  %v3432 = vrot.slane %v3357, %v3431
  %v3434 = vadd.f32 %v3364, %v3432
  %v3435 = vadd.f32 %v3365, %v3432
  %v3436 = vadd.f32 %v3366, %v3432
  %v3437 = vadd.f32 %v3367, %v3432
  %v3438 = vadd.f32 %v3368, %v3432
  %v3439 = vadd.f32 %v3369, %v3432
  %v3440 = vadd.f32 %v3370, %v3432
  %v3441 = vadd.f32 %v3371, %v3432
  %v3442 = vadd.f32 %v3372, %v3432
  %v3443 = vadd.f32 %v3373, %v3432
  %v3444 = vadd.f32 %v3374, %v3432
  %v3445 = vadd.f32 %v3375, %v3432
  %v3446 = vadd.f32 %v3376, %v3432
  %v3447 = vadd.f32 %v3377, %v3432
  %v3448 = vadd.f32 %v3378, %v3432
  %v3449 = vadd.f32 %v3379, %v3432
  %v3450 = vadd.f32 %v3380, %v3432
  %v3451 = vadd.f32 %v3381, %v3432
  %v3452 = vadd.f32 %v3382, %v3432
  %v3453 = vadd.f32 %v3383, %v3432
  %v3454 = vadd.f32 %v3384, %v3432
  %v3455 = vadd.f32 %v3385, %v3432
  %v3456 = vadd.f32 %v3386, %v3432
  %v3457 = vadd.f32 %v3387, %v3432
  %v3458 = vadd.f32 %v3388, %v3432
  %v3459 = vadd.f32 %v3389, %v3432
  %v3460 = vadd.f32 %v3390, %v3432
  %v3461 = vadd.f32 %v3391, %v3432
  %v3462 = vadd.f32 %v3392, %v3432
  %v3463 = vadd.f32 %v3393, %v3432
  %v3464 = vadd.f32 %v3394, %v3432
  %v3465 = vadd.f32 %v3395, %v3432
  %v3466 = vadd.f32 %v3396, %v3432
  %v3467 = vadd.f32 %v3397, %v3432
  %v3468 = vadd.f32 %v3398, %v3432
  %v3469 = vadd.f32 %v3399, %v3432
  %v3470 = vadd.f32 %v3400, %v3432
  %v3471 = vadd.f32 %v3401, %v3432
  %v3472 = vadd.f32 %v3402, %v3432
  %v3473 = vadd.f32 %v3403, %v3432
  %v3474 = vadd.f32 %v3404, %v3432
  %v3475 = vadd.f32 %v3405, %v3432
  %v3476 = vadd.f32 %v3406, %v3432
  %v3477 = vadd.f32 %v3407, %v3432
  %v3478 = vadd.f32 %v3408, %v3432
  %v3479 = vadd.f32 %v3409, %v3432
  %v3480 = vadd.f32 %v3410, %v3432
  %v3481 = vadd.f32 %v3411, %v3432
  %v3482 = vadd.f32 %v3412, %v3432
  %v3483 = vadd.f32 %v3413, %v3432
  %v3484 = vadd.f32 %v3414, %v3432
  %v3485 = vadd.f32 %v3415, %v3432
  %v3486 = vadd.f32 %v3416, %v3432
  %v3487 = vadd.f32 %v3417, %v3432
  %v3488 = vadd.f32 %v3418, %v3432
  %v3489 = vadd.f32 %v3419, %v3432
  %v3490 = vadd.f32 %v3420, %v3432
  %v3491 = vadd.f32 %v3421, %v3432
  %v3492 = vadd.f32 %v3422, %v3432
  %v3493 = vadd.f32 %v3423, %v3432
  %v3494 = vadd.f32 %v3424, %v3432
  %v3495 = vadd.f32 %v3425, %v3432
  %v3496 = vadd.f32 %v3426, %v3432
  %v3497 = vadd.f32 %v3427, %v3432
  %s3498 = scalar_lea.vmem %s1, 96
  %v3499 = vld [vmem:[%s3498] sm:$0xff]
  %v3500 = vld [vmem:[%s3498 + $0x8] sm:$0xff]
  %v3501 = vld [vmem:[%s3498 + $0x10] sm:$0xff]
  %v3502 = vld [vmem:[%s3498 + $0x18] sm:$0xff]
  %s3503 = scalar_lea.vmem %s2, 3
  %v3504 = vld [vmem:[%s3503] sm:$0x1]
  %v3506 = vlaneseq
  %v3507 = vshrl.u32 %v3506, 7
  %v3508 = vsub.s32 0, %v3507
  %v3509 = vrot.slane %v3504, %v3508
  %v3512 = vsel %vm101, %v3434, 0
  %v3515 = vsel %vm101, %v3435, 0
  %v3518 = vsel %vm101, %v3436, 0
  %v3521 = vsel %vm101, %v3437, 0
  %v3524 = vsel %vm101, %v3438, 0
  %v3527 = vsel %vm101, %v3439, 0
  %v3530 = vsel %vm101, %v3440, 0
  %v3533 = vsel %vm101, %v3441, 0
  %v3536 = vsel %vm101, %v3442, 0
  %v3539 = vsel %vm101, %v3443, 0
  %v3542 = vsel %vm101, %v3444, 0
  %v3545 = vsel %vm101, %v3445, 0
  %v3548 = vsel %vm101, %v3446, 0
  %v3551 = vsel %vm101, %v3447, 0
  %v3554 = vsel %vm101, %v3448, 0
  %v3557 = vsel %vm101, %v3449, 0
  %v3560 = vsel %vm101, %v3450, 0
  %v3563 = vsel %vm101, %v3451, 0
  %v3566 = vsel %vm101, %v3452, 0
  %v3569 = vsel %vm101, %v3453, 0
  %v3572 = vsel %vm101, %v3454, 0
  %v3575 = vsel %vm101, %v3455, 0
  %v3578 = vsel %vm101, %v3456, 0
  %v3581 = vsel %vm101, %v3457, 0
  %v3584 = vsel %vm101, %v3458, 0
  %v3587 = vsel %vm101, %v3459, 0
  %v3590 = vsel %vm101, %v3460, 0
  %v3593 = vsel %vm101, %v3461, 0
  %v3596 = vsel %vm101, %v3462, 0
  %v3599 = vsel %vm101, %v3463, 0
  %v3602 = vsel %vm101, %v3464, 0
  %v3605 = vsel %vm101, %v3465, 0
  %v3608 = vsel %vm101, %v3466, 0
  %v3611 = vsel %vm101, %v3467, 0
  %v3614 = vsel %vm101, %v3468, 0
  %v3617 = vsel %vm101, %v3469, 0
  %v3620 = vsel %vm101, %v3470, 0
  %v3623 = vsel %vm101, %v3471, 0
  %v3626 = vsel %vm101, %v3472, 0
  %v3629 = vsel %vm101, %v3473, 0
  %v3632 = vsel %vm101, %v3474, 0
  %v3635 = vsel %vm101, %v3475, 0
  %v3638 = vsel %vm101, %v3476, 0
  %v3641 = vsel %vm101, %v3477, 0
  %v3644 = vsel %vm101, %v3478, 0
  %v3647 = vsel %vm101, %v3479, 0
  %v3650 = vsel %vm101, %v3480, 0
  %v3653 = vsel %vm101, %v3481, 0
  %v3656 = vsel %vm101, %v3482, 0
  %v3659 = vsel %vm101, %v3483, 0
  %v3662 = vsel %vm101, %v3484, 0
  %v3665 = vsel %vm101, %v3485, 0
  %v3668 = vsel %vm101, %v3486, 0
  %v3671 = vsel %vm101, %v3487, 0
  %v3674 = vsel %vm101, %v3488, 0
  %v3677 = vsel %vm101, %v3489, 0
  %v3680 = vsel %vm101, %v3490, 0
  %v3683 = vsel %vm101, %v3491, 0
  %v3686 = vsel %vm101, %v3492, 0
  %v3689 = vsel %vm101, %v3493, 0
  %v3692 = vsel %vm101, %v3494, 0
  %v3695 = vsel %vm101, %v3495, 0
  %v3698 = vsel %vm101, %v3496, 0
  %v3701 = vsel %vm101, %v3497, 0
  %3703 = vmatprep.subr.mxu0 0.0
  %3704 = vmatpush1.msra.mxu0 %v3499
  %3705 = vmatprep.subr.mxu0 0.0
  %3706 = vmatpush1.msra.mxu0 %v3500
  %3707 = vmatprep.subr.mxu0 0.0
  %3708 = vmatpush1.msra.mxu0 %v3501
  %3709 = vmatprep.subr.mxu0 0.0
  %3710 = vmatpush1.msra.mxu0 %v3502
  %3711 = vmatprep.subr.mxu0 0.0
  %3712 = vmatpush1.msra.mxu0 0.0
  %3713 = vmatprep.subr.mxu0 0.0
  %3714 = vmatpush1.msra.mxu0 0.0
  %3715 = vmatprep.subr.mxu0 0.0
  %3716 = vmatpush1.msra.mxu0 0.0
  %3717 = vmatprep.subr.mxu0 0.0
  %3718 = vmatpush1.msra.mxu0 0.0
  %3719 = vmatprep.subr.mxu0 0.0
  %3720 = vmatpush1.msra.mxu0 0.0
  %3721 = vmatprep.subr.mxu0 0.0
  %3722 = vmatpush1.msra.mxu0 0.0
  %3723 = vmatprep.subr.mxu0 0.0
  %3724 = vmatpush1.msra.mxu0 0.0
  %3725 = vmatprep.subr.mxu0 0.0
  %3726 = vmatpush1.msra.mxu0 0.0
  %3727 = vmatprep.subr.mxu0 0.0
  %3728 = vmatpush1.msra.mxu0 0.0
  %3729 = vmatprep.subr.mxu0 0.0
  %3730 = vmatpush1.msra.mxu0 0.0
  %3731 = vmatprep.subr.mxu0 0.0
  %3732 = vmatpush1.msra.mxu0 0.0
  %3733 = vmatprep.subr.mxu0 0.0
  %3734 = vmatpush1.msra.mxu0 0.0
  %3735 = vmatprep.subr.mxu0 0.0
  %3736 = vmatpush1.msra.mxu0 0.0
  %3737 = vmatprep.subr.mxu0 0.0
  %3738 = vmatpush1.msra.mxu0 0.0
  %3739 = vmatprep.subr.mxu0 0.0
  %3740 = vmatpush1.msra.mxu0 0.0
  %3741 = vmatprep.subr.mxu0 0.0
  %3742 = vmatpush1.msra.mxu0 0.0
  %3743 = vmatprep.subr.mxu0 0.0
  %3744 = vmatpush1.msra.mxu0 0.0
  %3745 = vmatprep.subr.mxu0 0.0
  %3746 = vmatpush1.msra.mxu0 0.0
  %3747 = vmatprep.subr.mxu0 0.0
  %3748 = vmatpush1.msra.mxu0 0.0
  %3749 = vmatprep.subr.mxu0 0.0
  %3750 = vmatpush1.msra.mxu0 0.0
  %3751 = vmatprep.subr.mxu0 0.0
  %3752 = vmatpush1.msra.mxu0 0.0
  %3753 = vmatprep.subr.mxu0 0.0
  %3754 = vmatpush1.msra.mxu0 0.0
  %3755 = vmatprep.subr.mxu0 0.0
  %3756 = vmatpush1.msra.mxu0 0.0
  %3757 = vmatprep.subr.mxu0 0.0
  %3758 = vmatpush1.msra.mxu0 0.0
  %3759 = vmatprep.subr.mxu0 0.0
  %3760 = vmatpush1.msra.mxu0 0.0
  %3761 = vmatprep.subr.mxu0 0.0
  %3762 = vmatpush1.msra.mxu0 0.0
  %3763 = vmatprep.subr.mxu0 0.0
  %3764 = vmatpush1.msra.mxu0 0.0
  %3765 = vmatprep.subr.mxu0 0.0
  %3766 = vmatpush1.msra.mxu0 0.0
  %3767 = vmatprep.mubr.f32.mxu0 0.0
  %3768 = vmatmul.mubr.f32.gmra.mrb[0].mxu0 %v3512
  %v3769 = vpop.f32.mrb[0].mxu0
  %v3770 = vadd.f32 %v3509, %v3769
  %v3771 = vpop.f32.mrb[0].mxu0
  %3772 = vmatprep.mubr.f32.mxu0 0.0
  %3773 = vmatmul.mubr.f32.gmra.mrb[0].mxu0 %v3515
  %v3774 = vpop.f32.mrb[0].mxu0
  %v3775 = vadd.f32 %v3509, %v3774
  %v3776 = vpop.f32.mrb[0].mxu0
  %3777 = vmatprep.mubr.f32.mxu0 0.0
  %3778 = vmatmul.mubr.f32.gmra.mrb[0].mxu0 %v3518
  %v3779 = vpop.f32.mrb[0].mxu0
  %v3780 = vadd.f32 %v3509, %v3779
  %v3781 = vpop.f32.mrb[0].mxu0
  %3782 = vmatprep.mubr.f32.mxu0 0.0
  %3783 = vmatmul.mubr.f32.gmra.mrb[0].mxu0 %v3521
  %v3784 = vpop.f32.mrb[0].mxu0
  %v3785 = vadd.f32 %v3509, %v3784
  %v3786 = vpop.f32.mrb[0].mxu0
  %3787 = vmatprep.mubr.f32.mxu0 0.0
  %3788 = vmatmul.mubr.f32.gmra.mrb[0].mxu0 %v3524
  %v3789 = vpop.f32.mrb[0].mxu0
  %v3790 = vadd.f32 %v3509, %v3789
  %v3791 = vpop.f32.mrb[0].mxu0
  %3792 = vmatprep.mubr.f32.mxu0 0.0
  %3793 = vmatmul.mubr.f32.gmra.mrb[0].mxu0 %v3527
  %v3794 = vpop.f32.mrb[0].mxu0
  %v3795 = vadd.f32 %v3509, %v3794
  %v3796 = vpop.f32.mrb[0].mxu0
  %3797 = vmatprep.mubr.f32.mxu0 0.0
  %3798 = vmatmul.mubr.f32.gmra.mrb[0].mxu0 %v3530
  %v3799 = vpop.f32.mrb[0].mxu0
  %v3800 = vadd.f32 %v3509, %v3799
  %v3801 = vpop.f32.mrb[0].mxu0
  %3802 = vmatprep.mubr.f32.mxu0 0.0
  %3803 = vmatmul.mubr.f32.gmra.mrb[0].mxu0 %v3533
  %v3804 = vpop.f32.mrb[0].mxu0
  %v3805 = vadd.f32 %v3509, %v3804
  %v3806 = vpop.f32.mrb[0].mxu0
  %3807 = vmatprep.mubr.f32.mxu0 0.0
  %3808 = vmatmul.mubr.f32.gmra.mrb[0].mxu0 %v3536
  %v3809 = vpop.f32.mrb[0].mxu0
  %v3810 = vadd.f32 %v3509, %v3809
  %v3811 = vpop.f32.mrb[0].mxu0
  %3812 = vmatprep.mubr.f32.mxu0 0.0
  %3813 = vmatmul.mubr.f32.gmra.mrb[0].mxu0 %v3539
  %v3814 = vpop.f32.mrb[0].mxu0
  %v3815 = vadd.f32 %v3509, %v3814
  %v3816 = vpop.f32.mrb[0].mxu0
  %3817 = vmatprep.mubr.f32.mxu0 0.0
  %3818 = vmatmul.mubr.f32.gmra.mrb[0].mxu0 %v3542
  %v3819 = vpop.f32.mrb[0].mxu0
  %v3820 = vadd.f32 %v3509, %v3819
  %v3821 = vpop.f32.mrb[0].mxu0
  %3822 = vmatprep.mubr.f32.mxu0 0.0
  %3823 = vmatmul.mubr.f32.gmra.mrb[0].mxu0 %v3545
  %v3824 = vpop.f32.mrb[0].mxu0
  %v3825 = vadd.f32 %v3509, %v3824
  %v3826 = vpop.f32.mrb[0].mxu0
  %3827 = vmatprep.mubr.f32.mxu0 0.0
  %3828 = vmatmul.mubr.f32.gmra.mrb[0].mxu0 %v3548
  %v3829 = vpop.f32.mrb[0].mxu0
  %v3830 = vadd.f32 %v3509, %v3829
  %v3831 = vpop.f32.mrb[0].mxu0
  %3832 = vmatprep.mubr.f32.mxu0 0.0
  %3833 = vmatmul.mubr.f32.gmra.mrb[0].mxu0 %v3551
  %v3834 = vpop.f32.mrb[0].mxu0
  %v3835 = vadd.f32 %v3509, %v3834
  %v3836 = vpop.f32.mrb[0].mxu0
  %3837 = vmatprep.mubr.f32.mxu0 0.0
  %3838 = vmatmul.mubr.f32.gmra.mrb[0].mxu0 %v3554
  %v3839 = vpop.f32.mrb[0].mxu0
  %v3840 = vadd.f32 %v3509, %v3839
  %v3841 = vpop.f32.mrb[0].mxu0
  %3842 = vmatprep.mubr.f32.mxu0 0.0
  %3843 = vmatmul.mubr.f32.gmra.mrb[0].mxu0 %v3557
  %v3844 = vpop.f32.mrb[0].mxu0
  %v3845 = vadd.f32 %v3509, %v3844
  %v3846 = vpop.f32.mrb[0].mxu0
  %3847 = vmatprep.mubr.f32.mxu0 0.0
  %3848 = vmatmul.mubr.f32.gmra.mrb[0].mxu0 %v3560
  %v3849 = vpop.f32.mrb[0].mxu0
  %v3850 = vadd.f32 %v3509, %v3849
  %v3851 = vpop.f32.mrb[0].mxu0
  %3852 = vmatprep.mubr.f32.mxu0 0.0
  %3853 = vmatmul.mubr.f32.gmra.mrb[0].mxu0 %v3563
  %v3854 = vpop.f32.mrb[0].mxu0
  %v3855 = vadd.f32 %v3509, %v3854
  %v3856 = vpop.f32.mrb[0].mxu0
  %3857 = vmatprep.mubr.f32.mxu0 0.0
  %3858 = vmatmul.mubr.f32.gmra.mrb[0].mxu0 %v3566
  %v3859 = vpop.f32.mrb[0].mxu0
  %v3860 = vadd.f32 %v3509, %v3859
  %v3861 = vpop.f32.mrb[0].mxu0
  %3862 = vmatprep.mubr.f32.mxu0 0.0
  %3863 = vmatmul.mubr.f32.gmra.mrb[0].mxu0 %v3569
  %v3864 = vpop.f32.mrb[0].mxu0
  %v3865 = vadd.f32 %v3509, %v3864
  %v3866 = vpop.f32.mrb[0].mxu0
  %3867 = vmatprep.mubr.f32.mxu0 0.0
  %3868 = vmatmul.mubr.f32.gmra.mrb[0].mxu0 %v3572
  %v3869 = vpop.f32.mrb[0].mxu0
  %v3870 = vadd.f32 %v3509, %v3869
  %v3871 = vpop.f32.mrb[0].mxu0
  %3872 = vmatprep.mubr.f32.mxu0 0.0
  %3873 = vmatmul.mubr.f32.gmra.mrb[0].mxu0 %v3575
  %v3874 = vpop.f32.mrb[0].mxu0
  %v3875 = vadd.f32 %v3509, %v3874
  %v3876 = vpop.f32.mrb[0].mxu0
  %3877 = vmatprep.mubr.f32.mxu0 0.0
  %3878 = vmatmul.mubr.f32.gmra.mrb[0].mxu0 %v3578
  %v3879 = vpop.f32.mrb[0].mxu0
  %v3880 = vadd.f32 %v3509, %v3879
  %v3881 = vpop.f32.mrb[0].mxu0
  %3882 = vmatprep.mubr.f32.mxu0 0.0
  %3883 = vmatmul.mubr.f32.gmra.mrb[0].mxu0 %v3581
  %v3884 = vpop.f32.mrb[0].mxu0
  %v3885 = vadd.f32 %v3509, %v3884
  %v3886 = vpop.f32.mrb[0].mxu0
  %3887 = vmatprep.mubr.f32.mxu0 0.0
  %3888 = vmatmul.mubr.f32.gmra.mrb[0].mxu0 %v3584
  %v3889 = vpop.f32.mrb[0].mxu0
  %v3890 = vadd.f32 %v3509, %v3889
  %v3891 = vpop.f32.mrb[0].mxu0
  %3892 = vmatprep.mubr.f32.mxu0 0.0
  %3893 = vmatmul.mubr.f32.gmra.mrb[0].mxu0 %v3587
  %v3894 = vpop.f32.mrb[0].mxu0
  %v3895 = vadd.f32 %v3509, %v3894
  %v3896 = vpop.f32.mrb[0].mxu0
  %3897 = vmatprep.mubr.f32.mxu0 0.0
  %3898 = vmatmul.mubr.f32.gmra.mrb[0].mxu0 %v3590
  %v3899 = vpop.f32.mrb[0].mxu0
  %v3900 = vadd.f32 %v3509, %v3899
  %v3901 = vpop.f32.mrb[0].mxu0
  %3902 = vmatprep.mubr.f32.mxu0 0.0
  %3903 = vmatmul.mubr.f32.gmra.mrb[0].mxu0 %v3593
  %v3904 = vpop.f32.mrb[0].mxu0
  %v3905 = vadd.f32 %v3509, %v3904
  %v3906 = vpop.f32.mrb[0].mxu0
  %3907 = vmatprep.mubr.f32.mxu0 0.0
  %3908 = vmatmul.mubr.f32.gmra.mrb[0].mxu0 %v3596
  %v3909 = vpop.f32.mrb[0].mxu0
  %v3910 = vadd.f32 %v3509, %v3909
  %v3911 = vpop.f32.mrb[0].mxu0
  %3912 = vmatprep.mubr.f32.mxu0 0.0
  %3913 = vmatmul.mubr.f32.gmra.mrb[0].mxu0 %v3599
  %v3914 = vpop.f32.mrb[0].mxu0
  %v3915 = vadd.f32 %v3509, %v3914
  %v3916 = vpop.f32.mrb[0].mxu0
  %3917 = vmatprep.mubr.f32.mxu0 0.0
  %3918 = vmatmul.mubr.f32.gmra.mrb[0].mxu0 %v3602
  %v3919 = vpop.f32.mrb[0].mxu0
  %v3920 = vadd.f32 %v3509, %v3919
  %v3921 = vpop.f32.mrb[0].mxu0
  %3922 = vmatprep.mubr.f32.mxu0 0.0
  %3923 = vmatmul.mubr.f32.gmra.mrb[0].mxu0 %v3605
  %v3924 = vpop.f32.mrb[0].mxu0
  %v3925 = vadd.f32 %v3509, %v3924
  %v3926 = vpop.f32.mrb[0].mxu0
  %3927 = vmatprep.mubr.f32.mxu0 0.0
  %3928 = vmatmul.mubr.f32.gmra.mrb[0].mxu0 %v3608
  %v3929 = vpop.f32.mrb[0].mxu0
  %v3930 = vadd.f32 %v3509, %v3929
  %v3931 = vpop.f32.mrb[0].mxu0
  %3932 = vmatprep.mubr.f32.mxu0 0.0
  %3933 = vmatmul.mubr.f32.gmra.mrb[0].mxu0 %v3611
  %v3934 = vpop.f32.mrb[0].mxu0
  %v3935 = vadd.f32 %v3509, %v3934
  %v3936 = vpop.f32.mrb[0].mxu0
  %3937 = vmatprep.mubr.f32.mxu0 0.0
  %3938 = vmatmul.mubr.f32.gmra.mrb[0].mxu0 %v3614
  %v3939 = vpop.f32.mrb[0].mxu0
  %v3940 = vadd.f32 %v3509, %v3939
  %v3941 = vpop.f32.mrb[0].mxu0
  %3942 = vmatprep.mubr.f32.mxu0 0.0
  %3943 = vmatmul.mubr.f32.gmra.mrb[0].mxu0 %v3617
  %v3944 = vpop.f32.mrb[0].mxu0
  %v3945 = vadd.f32 %v3509, %v3944
  %v3946 = vpop.f32.mrb[0].mxu0
  %3947 = vmatprep.mubr.f32.mxu0 0.0
  %3948 = vmatmul.mubr.f32.gmra.mrb[0].mxu0 %v3620
  %v3949 = vpop.f32.mrb[0].mxu0
  %v3950 = vadd.f32 %v3509, %v3949
  %v3951 = vpop.f32.mrb[0].mxu0
  %3952 = vmatprep.mubr.f32.mxu0 0.0
  %3953 = vmatmul.mubr.f32.gmra.mrb[0].mxu0 %v3623
  %v3954 = vpop.f32.mrb[0].mxu0
  %v3955 = vadd.f32 %v3509, %v3954
  %v3956 = vpop.f32.mrb[0].mxu0
  %3957 = vmatprep.mubr.f32.mxu0 0.0
  %3958 = vmatmul.mubr.f32.gmra.mrb[0].mxu0 %v3626
  %v3959 = vpop.f32.mrb[0].mxu0
  %v3960 = vadd.f32 %v3509, %v3959
  %v3961 = vpop.f32.mrb[0].mxu0
  %3962 = vmatprep.mubr.f32.mxu0 0.0
  %3963 = vmatmul.mubr.f32.gmra.mrb[0].mxu0 %v3629
  %v3964 = vpop.f32.mrb[0].mxu0
  %v3965 = vadd.f32 %v3509, %v3964
  %v3966 = vpop.f32.mrb[0].mxu0
  %3967 = vmatprep.mubr.f32.mxu0 0.0
  %3968 = vmatmul.mubr.f32.gmra.mrb[0].mxu0 %v3632
  %v3969 = vpop.f32.mrb[0].mxu0
  %v3970 = vadd.f32 %v3509, %v3969
  %v3971 = vpop.f32.mrb[0].mxu0
  %3972 = vmatprep.mubr.f32.mxu0 0.0
  %3973 = vmatmul.mubr.f32.gmra.mrb[0].mxu0 %v3635
  %v3974 = vpop.f32.mrb[0].mxu0
  %v3975 = vadd.f32 %v3509, %v3974
  %v3976 = vpop.f32.mrb[0].mxu0
  %3977 = vmatprep.mubr.f32.mxu0 0.0
  %3978 = vmatmul.mubr.f32.gmra.mrb[0].mxu0 %v3638
  %v3979 = vpop.f32.mrb[0].mxu0
  %v3980 = vadd.f32 %v3509, %v3979
  %v3981 = vpop.f32.mrb[0].mxu0
  %3982 = vmatprep.mubr.f32.mxu0 0.0
  %3983 = vmatmul.mubr.f32.gmra.mrb[0].mxu0 %v3641
  %v3984 = vpop.f32.mrb[0].mxu0
  %v3985 = vadd.f32 %v3509, %v3984
  %v3986 = vpop.f32.mrb[0].mxu0
  %3987 = vmatprep.mubr.f32.mxu0 0.0
  %3988 = vmatmul.mubr.f32.gmra.mrb[0].mxu0 %v3644
  %v3989 = vpop.f32.mrb[0].mxu0
  %v3990 = vadd.f32 %v3509, %v3989
  %v3991 = vpop.f32.mrb[0].mxu0
  %3992 = vmatprep.mubr.f32.mxu0 0.0
  %3993 = vmatmul.mubr.f32.gmra.mrb[0].mxu0 %v3647
  %v3994 = vpop.f32.mrb[0].mxu0
  %v3995 = vadd.f32 %v3509, %v3994
  %v3996 = vpop.f32.mrb[0].mxu0
  %3997 = vmatprep.mubr.f32.mxu0 0.0
  %3998 = vmatmul.mubr.f32.gmra.mrb[0].mxu0 %v3650
  %v3999 = vpop.f32.mrb[0].mxu0
  %v4000 = vadd.f32 %v3509, %v3999
  %v4001 = vpop.f32.mrb[0].mxu0
  %4002 = vmatprep.mubr.f32.mxu0 0.0
  %4003 = vmatmul.mubr.f32.gmra.mrb[0].mxu0 %v3653
  %v4004 = vpop.f32.mrb[0].mxu0
  %v4005 = vadd.f32 %v3509, %v4004
  %v4006 = vpop.f32.mrb[0].mxu0
  %4007 = vmatprep.mubr.f32.mxu0 0.0
  %4008 = vmatmul.mubr.f32.gmra.mrb[0].mxu0 %v3656
  %v4009 = vpop.f32.mrb[0].mxu0
  %v4010 = vadd.f32 %v3509, %v4009
  %v4011 = vpop.f32.mrb[0].mxu0
  %4012 = vmatprep.mubr.f32.mxu0 0.0
  %4013 = vmatmul.mubr.f32.gmra.mrb[0].mxu0 %v3659
  %v4014 = vpop.f32.mrb[0].mxu0
  %v4015 = vadd.f32 %v3509, %v4014
  %v4016 = vpop.f32.mrb[0].mxu0
  %4017 = vmatprep.mubr.f32.mxu0 0.0
  %4018 = vmatmul.mubr.f32.gmra.mrb[0].mxu0 %v3662
  %v4019 = vpop.f32.mrb[0].mxu0
  %v4020 = vadd.f32 %v3509, %v4019
  %v4021 = vpop.f32.mrb[0].mxu0
  %4022 = vmatprep.mubr.f32.mxu0 0.0
  %4023 = vmatmul.mubr.f32.gmra.mrb[0].mxu0 %v3665
  %v4024 = vpop.f32.mrb[0].mxu0
  %v4025 = vadd.f32 %v3509, %v4024
  %v4026 = vpop.f32.mrb[0].mxu0
  %4027 = vmatprep.mubr.f32.mxu0 0.0
  %4028 = vmatmul.mubr.f32.gmra.mrb[0].mxu0 %v3668
  %v4029 = vpop.f32.mrb[0].mxu0
  %v4030 = vadd.f32 %v3509, %v4029
  %v4031 = vpop.f32.mrb[0].mxu0
  %4032 = vmatprep.mubr.f32.mxu0 0.0
  %4033 = vmatmul.mubr.f32.gmra.mrb[0].mxu0 %v3671
  %v4034 = vpop.f32.mrb[0].mxu0
  %v4035 = vadd.f32 %v3509, %v4034
  %v4036 = vpop.f32.mrb[0].mxu0
  %4037 = vmatprep.mubr.f32.mxu0 0.0
  %4038 = vmatmul.mubr.f32.gmra.mrb[0].mxu0 %v3674
  %v4039 = vpop.f32.mrb[0].mxu0
  %v4040 = vadd.f32 %v3509, %v4039
  %v4041 = vpop.f32.mrb[0].mxu0
  %4042 = vmatprep.mubr.f32.mxu0 0.0
  %4043 = vmatmul.mubr.f32.gmra.mrb[0].mxu0 %v3677
  %v4044 = vpop.f32.mrb[0].mxu0
  %v4045 = vadd.f32 %v3509, %v4044
  %v4046 = vpop.f32.mrb[0].mxu0
  %4047 = vmatprep.mubr.f32.mxu0 0.0
  %4048 = vmatmul.mubr.f32.gmra.mrb[0].mxu0 %v3680
  %v4049 = vpop.f32.mrb[0].mxu0
  %v4050 = vadd.f32 %v3509, %v4049
  %v4051 = vpop.f32.mrb[0].mxu0
  %4052 = vmatprep.mubr.f32.mxu0 0.0
  %4053 = vmatmul.mubr.f32.gmra.mrb[0].mxu0 %v3683
  %v4054 = vpop.f32.mrb[0].mxu0
  %v4055 = vadd.f32 %v3509, %v4054
  %v4056 = vpop.f32.mrb[0].mxu0
  %4057 = vmatprep.mubr.f32.mxu0 0.0
  %4058 = vmatmul.mubr.f32.gmra.mrb[0].mxu0 %v3686
  %v4059 = vpop.f32.mrb[0].mxu0
  %v4060 = vadd.f32 %v3509, %v4059
  %v4061 = vpop.f32.mrb[0].mxu0
  %4062 = vmatprep.mubr.f32.mxu0 0.0
  %4063 = vmatmul.mubr.f32.gmra.mrb[0].mxu0 %v3689
  %v4064 = vpop.f32.mrb[0].mxu0
  %v4065 = vadd.f32 %v3509, %v4064
  %v4066 = vpop.f32.mrb[0].mxu0
  %4067 = vmatprep.mubr.f32.mxu0 0.0
  %4068 = vmatmul.mubr.f32.gmra.mrb[0].mxu0 %v3692
  %v4069 = vpop.f32.mrb[0].mxu0
  %v4070 = vadd.f32 %v3509, %v4069
  %v4071 = vpop.f32.mrb[0].mxu0
  %4072 = vmatprep.mubr.f32.mxu0 0.0
  %4073 = vmatmul.mubr.f32.gmra.mrb[0].mxu0 %v3695
  %v4074 = vpop.f32.mrb[0].mxu0
  %v4075 = vadd.f32 %v3509, %v4074
  %v4076 = vpop.f32.mrb[0].mxu0
  %4077 = vmatprep.mubr.f32.mxu0 0.0
  %4078 = vmatmul.mubr.f32.gmra.mrb[0].mxu0 %v3698
  %v4079 = vpop.f32.mrb[0].mxu0
  %v4080 = vadd.f32 %v3509, %v4079
  %v4081 = vpop.f32.mrb[0].mxu0
  %4082 = vmatprep.mubr.f32.mxu0 0.0
  %4083 = vmatmul.mubr.f32.gmra.mrb[0].mxu0 %v3701
  %v4084 = vpop.f32.mrb[0].mxu0
  %v4085 = vadd.f32 %v3509, %v4084
  %v4086 = vpop.f32.mrb[0].mxu0
  %4087 = vdwg.mxu0
  %v4088 = vmax.f32 %v3770, 0.0
  %v4089 = vmax.f32 %v3775, 0.0
  %v4090 = vmax.f32 %v3780, 0.0
  %v4091 = vmax.f32 %v3785, 0.0
  %v4092 = vmax.f32 %v3790, 0.0
  %v4093 = vmax.f32 %v3795, 0.0
  %v4094 = vmax.f32 %v3800, 0.0
  %v4095 = vmax.f32 %v3805, 0.0
  %v4096 = vmax.f32 %v3810, 0.0
  %v4097 = vmax.f32 %v3815, 0.0
  %v4098 = vmax.f32 %v3820, 0.0
  %v4099 = vmax.f32 %v3825, 0.0
  %v4100 = vmax.f32 %v3830, 0.0
  %v4101 = vmax.f32 %v3835, 0.0
  %v4102 = vmax.f32 %v3840, 0.0
  %v4103 = vmax.f32 %v3845, 0.0
  %v4104 = vmax.f32 %v3850, 0.0
  %v4105 = vmax.f32 %v3855, 0.0
  %v4106 = vmax.f32 %v3860, 0.0
  %v4107 = vmax.f32 %v3865, 0.0
  %v4108 = vmax.f32 %v3870, 0.0
  %v4109 = vmax.f32 %v3875, 0.0
  %v4110 = vmax.f32 %v3880, 0.0
  %v4111 = vmax.f32 %v3885, 0.0
  %v4112 = vmax.f32 %v3890, 0.0
  %v4113 = vmax.f32 %v3895, 0.0
  %v4114 = vmax.f32 %v3900, 0.0
  %v4115 = vmax.f32 %v3905, 0.0
  %v4116 = vmax.f32 %v3910, 0.0
  %v4117 = vmax.f32 %v3915, 0.0
  %v4118 = vmax.f32 %v3920, 0.0
  %v4119 = vmax.f32 %v3925, 0.0
  %v4120 = vmax.f32 %v3930, 0.0
  %v4121 = vmax.f32 %v3935, 0.0
  %v4122 = vmax.f32 %v3940, 0.0
  %v4123 = vmax.f32 %v3945, 0.0
  %v4124 = vmax.f32 %v3950, 0.0
  %v4125 = vmax.f32 %v3955, 0.0
  %v4126 = vmax.f32 %v3960, 0.0
  %v4127 = vmax.f32 %v3965, 0.0
  %v4128 = vmax.f32 %v3970, 0.0
  %v4129 = vmax.f32 %v3975, 0.0
  %v4130 = vmax.f32 %v3980, 0.0
  %v4131 = vmax.f32 %v3985, 0.0
  %v4132 = vmax.f32 %v3990, 0.0
  %v4133 = vmax.f32 %v3995, 0.0
  %v4134 = vmax.f32 %v4000, 0.0
  %v4135 = vmax.f32 %v4005, 0.0
  %v4136 = vmax.f32 %v4010, 0.0
  %v4137 = vmax.f32 %v4015, 0.0
  %v4138 = vmax.f32 %v4020, 0.0
  %v4139 = vmax.f32 %v4025, 0.0
  %v4140 = vmax.f32 %v4030, 0.0
  %v4141 = vmax.f32 %v4035, 0.0
  %v4142 = vmax.f32 %v4040, 0.0
  %v4143 = vmax.f32 %v4045, 0.0
  %v4144 = vmax.f32 %v4050, 0.0
  %v4145 = vmax.f32 %v4055, 0.0
  %v4146 = vmax.f32 %v4060, 0.0
  %v4147 = vmax.f32 %v4065, 0.0
  %v4148 = vmax.f32 %v4070, 0.0
  %v4149 = vmax.f32 %v4075, 0.0
  %v4150 = vmax.f32 %v4080, 0.0
  %v4151 = vmax.f32 %v4085, 0.0
  %v4152 = vsel %vm101, %v4088, 0.0
  %v4153 = vsel %vm101, %v4089, 0.0
  %v4154 = vadd.f32 %v4152, %v4153
  %v4155 = vsel %vm101, %v4090, 0.0
  %v4156 = vadd.f32 %v4154, %v4155
  %v4157 = vsel %vm101, %v4091, 0.0
  %v4158 = vadd.f32 %v4156, %v4157
  %v4159 = vsel %vm101, %v4092, 0.0
  %v4160 = vadd.f32 %v4158, %v4159
  %v4161 = vsel %vm101, %v4093, 0.0
  %v4162 = vadd.f32 %v4160, %v4161
  %v4163 = vsel %vm101, %v4094, 0.0
  %v4164 = vadd.f32 %v4162, %v4163
  %v4165 = vsel %vm101, %v4095, 0.0
  %v4166 = vadd.f32 %v4164, %v4165
  %v4167 = vsel %vm101, %v4096, 0.0
  %v4168 = vadd.f32 %v4166, %v4167
  %v4169 = vsel %vm101, %v4097, 0.0
  %v4170 = vadd.f32 %v4168, %v4169
  %v4171 = vsel %vm101, %v4098, 0.0
  %v4172 = vadd.f32 %v4170, %v4171
  %v4173 = vsel %vm101, %v4099, 0.0
  %v4174 = vadd.f32 %v4172, %v4173
  %v4175 = vsel %vm101, %v4100, 0.0
  %v4176 = vadd.f32 %v4174, %v4175
  %v4177 = vsel %vm101, %v4101, 0.0
  %v4178 = vadd.f32 %v4176, %v4177
  %v4179 = vsel %vm101, %v4102, 0.0
  %v4180 = vadd.f32 %v4178, %v4179
  %v4181 = vsel %vm101, %v4103, 0.0
  %v4182 = vadd.f32 %v4180, %v4181
  %v4183 = vsel %vm101, %v4104, 0.0
  %v4184 = vadd.f32 %v4182, %v4183
  %v4185 = vsel %vm101, %v4105, 0.0
  %v4186 = vadd.f32 %v4184, %v4185
  %v4187 = vsel %vm101, %v4106, 0.0
  %v4188 = vadd.f32 %v4186, %v4187
  %v4189 = vsel %vm101, %v4107, 0.0
  %v4190 = vadd.f32 %v4188, %v4189
  %v4191 = vsel %vm101, %v4108, 0.0
  %v4192 = vadd.f32 %v4190, %v4191
  %v4193 = vsel %vm101, %v4109, 0.0
  %v4194 = vadd.f32 %v4192, %v4193
  %v4195 = vsel %vm101, %v4110, 0.0
  %v4196 = vadd.f32 %v4194, %v4195
  %v4197 = vsel %vm101, %v4111, 0.0
  %v4198 = vadd.f32 %v4196, %v4197
  %v4199 = vsel %vm101, %v4112, 0.0
  %v4200 = vadd.f32 %v4198, %v4199
  %v4201 = vsel %vm101, %v4113, 0.0
  %v4202 = vadd.f32 %v4200, %v4201
  %v4203 = vsel %vm101, %v4114, 0.0
  %v4204 = vadd.f32 %v4202, %v4203
  %v4205 = vsel %vm101, %v4115, 0.0
  %v4206 = vadd.f32 %v4204, %v4205
  %v4207 = vsel %vm101, %v4116, 0.0
  %v4208 = vadd.f32 %v4206, %v4207
  %v4209 = vsel %vm101, %v4117, 0.0
  %v4210 = vadd.f32 %v4208, %v4209
  %v4211 = vsel %vm101, %v4118, 0.0
  %v4212 = vadd.f32 %v4210, %v4211
  %v4213 = vsel %vm101, %v4119, 0.0
  %v4214 = vadd.f32 %v4212, %v4213
  %v4215 = vsel %vm101, %v4120, 0.0
  %v4216 = vadd.f32 %v4214, %v4215
  %v4217 = vsel %vm101, %v4121, 0.0
  %v4218 = vadd.f32 %v4216, %v4217
  %v4219 = vsel %vm101, %v4122, 0.0
  %v4220 = vadd.f32 %v4218, %v4219
  %v4221 = vsel %vm101, %v4123, 0.0
  %v4222 = vadd.f32 %v4220, %v4221
  %v4223 = vsel %vm101, %v4124, 0.0
  %v4224 = vadd.f32 %v4222, %v4223
  %v4225 = vsel %vm101, %v4125, 0.0
  %v4226 = vadd.f32 %v4224, %v4225
  %v4227 = vsel %vm101, %v4126, 0.0
  %v4228 = vadd.f32 %v4226, %v4227
  %v4229 = vsel %vm101, %v4127, 0.0
  %v4230 = vadd.f32 %v4228, %v4229
  %v4231 = vsel %vm101, %v4128, 0.0
  %v4232 = vadd.f32 %v4230, %v4231
  %v4233 = vsel %vm101, %v4129, 0.0
  %v4234 = vadd.f32 %v4232, %v4233
  %v4235 = vsel %vm101, %v4130, 0.0
  %v4236 = vadd.f32 %v4234, %v4235
  %v4237 = vsel %vm101, %v4131, 0.0
  %v4238 = vadd.f32 %v4236, %v4237
  %v4239 = vsel %vm101, %v4132, 0.0
  %v4240 = vadd.f32 %v4238, %v4239
  %v4241 = vsel %vm101, %v4133, 0.0
  %v4242 = vadd.f32 %v4240, %v4241
  %v4243 = vsel %vm101, %v4134, 0.0
  %v4244 = vadd.f32 %v4242, %v4243
  %v4245 = vsel %vm101, %v4135, 0.0
  %v4246 = vadd.f32 %v4244, %v4245
  %v4247 = vsel %vm101, %v4136, 0.0
  %v4248 = vadd.f32 %v4246, %v4247
  %v4249 = vsel %vm101, %v4137, 0.0
  %v4250 = vadd.f32 %v4248, %v4249
  %v4251 = vsel %vm101, %v4138, 0.0
  %v4252 = vadd.f32 %v4250, %v4251
  %v4253 = vsel %vm101, %v4139, 0.0
  %v4254 = vadd.f32 %v4252, %v4253
  %v4255 = vsel %vm101, %v4140, 0.0
  %v4256 = vadd.f32 %v4254, %v4255
  %v4257 = vsel %vm101, %v4141, 0.0
  %v4258 = vadd.f32 %v4256, %v4257
  %v4259 = vsel %vm101, %v4142, 0.0
  %v4260 = vadd.f32 %v4258, %v4259
  %v4261 = vsel %vm101, %v4143, 0.0
  %v4262 = vadd.f32 %v4260, %v4261
  %v4263 = vsel %vm101, %v4144, 0.0
  %v4264 = vadd.f32 %v4262, %v4263
  %v4265 = vsel %vm101, %v4145, 0.0
  %v4266 = vadd.f32 %v4264, %v4265
  %v4267 = vsel %vm101, %v4146, 0.0
  %v4268 = vadd.f32 %v4266, %v4267
  %v4269 = vsel %vm101, %v4147, 0.0
  %v4270 = vadd.f32 %v4268, %v4269
  %v4271 = vsel %vm101, %v4148, 0.0
  %v4272 = vadd.f32 %v4270, %v4271
  %v4273 = vsel %vm101, %v4149, 0.0
  %v4274 = vadd.f32 %v4272, %v4273
  %v4275 = vsel %vm101, %v4150, 0.0
  %v4276 = vadd.f32 %v4274, %v4275
  %v4277 = vsel %vm101, %v4151, 0.0
  %v4278 = vadd.f32 %v4276, %v4277
  %v4279 = vrot.slane %v4278, 4
  %v4280 = vadd.f32 %v4278, %v4279
  %v4281 = vrot.slane %v4280, 2
  %v4282 = vadd.f32 %v4280, %v4281
  %v4283 = vrot.slane %v4282, 1
  %v4284 = vadd.f32 %v4282, %v4283
  %v4285 = vmul.f32 %v4088, %v4088
  %v4286 = vmul.f32 %v4089, %v4089
  %v4287 = vmul.f32 %v4090, %v4090
  %v4288 = vmul.f32 %v4091, %v4091
  %v4289 = vmul.f32 %v4092, %v4092
  %v4290 = vmul.f32 %v4093, %v4093
  %v4291 = vmul.f32 %v4094, %v4094
  %v4292 = vmul.f32 %v4095, %v4095
  %v4293 = vmul.f32 %v4096, %v4096
  %v4294 = vmul.f32 %v4097, %v4097
  %v4295 = vmul.f32 %v4098, %v4098
  %v4296 = vmul.f32 %v4099, %v4099
  %v4297 = vmul.f32 %v4100, %v4100
  %v4298 = vmul.f32 %v4101, %v4101
  %v4299 = vmul.f32 %v4102, %v4102
  %v4300 = vmul.f32 %v4103, %v4103
  %v4301 = vmul.f32 %v4104, %v4104
  %v4302 = vmul.f32 %v4105, %v4105
  %v4303 = vmul.f32 %v4106, %v4106
  %v4304 = vmul.f32 %v4107, %v4107
  %v4305 = vmul.f32 %v4108, %v4108
  %v4306 = vmul.f32 %v4109, %v4109
  %v4307 = vmul.f32 %v4110, %v4110
  %v4308 = vmul.f32 %v4111, %v4111
  %v4309 = vmul.f32 %v4112, %v4112
  %v4310 = vmul.f32 %v4113, %v4113
  %v4311 = vmul.f32 %v4114, %v4114
  %v4312 = vmul.f32 %v4115, %v4115
  %v4313 = vmul.f32 %v4116, %v4116
  %v4314 = vmul.f32 %v4117, %v4117
  %v4315 = vmul.f32 %v4118, %v4118
  %v4316 = vmul.f32 %v4119, %v4119
  %v4317 = vmul.f32 %v4120, %v4120
  %v4318 = vmul.f32 %v4121, %v4121
  %v4319 = vmul.f32 %v4122, %v4122
  %v4320 = vmul.f32 %v4123, %v4123
  %v4321 = vmul.f32 %v4124, %v4124
  %v4322 = vmul.f32 %v4125, %v4125
  %v4323 = vmul.f32 %v4126, %v4126
  %v4324 = vmul.f32 %v4127, %v4127
  %v4325 = vmul.f32 %v4128, %v4128
  %v4326 = vmul.f32 %v4129, %v4129
  %v4327 = vmul.f32 %v4130, %v4130
  %v4328 = vmul.f32 %v4131, %v4131
  %v4329 = vmul.f32 %v4132, %v4132
  %v4330 = vmul.f32 %v4133, %v4133
  %v4331 = vmul.f32 %v4134, %v4134
  %v4332 = vmul.f32 %v4135, %v4135
  %v4333 = vmul.f32 %v4136, %v4136
  %v4334 = vmul.f32 %v4137, %v4137
  %v4335 = vmul.f32 %v4138, %v4138
  %v4336 = vmul.f32 %v4139, %v4139
  %v4337 = vmul.f32 %v4140, %v4140
  %v4338 = vmul.f32 %v4141, %v4141
  %v4339 = vmul.f32 %v4142, %v4142
  %v4340 = vmul.f32 %v4143, %v4143
  %v4341 = vmul.f32 %v4144, %v4144
  %v4342 = vmul.f32 %v4145, %v4145
  %v4343 = vmul.f32 %v4146, %v4146
  %v4344 = vmul.f32 %v4147, %v4147
  %v4345 = vmul.f32 %v4148, %v4148
  %v4346 = vmul.f32 %v4149, %v4149
  %v4347 = vmul.f32 %v4150, %v4150
  %v4348 = vmul.f32 %v4151, %v4151
  %v4349 = vsel %vm101, %v4285, 0.0
  %v4350 = vsel %vm101, %v4286, 0.0
  %v4351 = vadd.f32 %v4349, %v4350
  %v4352 = vsel %vm101, %v4287, 0.0
  %v4353 = vadd.f32 %v4351, %v4352
  %v4354 = vsel %vm101, %v4288, 0.0
  %v4355 = vadd.f32 %v4353, %v4354
  %v4356 = vsel %vm101, %v4289, 0.0
  %v4357 = vadd.f32 %v4355, %v4356
  %v4358 = vsel %vm101, %v4290, 0.0
  %v4359 = vadd.f32 %v4357, %v4358
  %v4360 = vsel %vm101, %v4291, 0.0
  %v4361 = vadd.f32 %v4359, %v4360
  %v4362 = vsel %vm101, %v4292, 0.0
  %v4363 = vadd.f32 %v4361, %v4362
  %v4364 = vsel %vm101, %v4293, 0.0
  %v4365 = vadd.f32 %v4363, %v4364
  %v4366 = vsel %vm101, %v4294, 0.0
  %v4367 = vadd.f32 %v4365, %v4366
  %v4368 = vsel %vm101, %v4295, 0.0
  %v4369 = vadd.f32 %v4367, %v4368
  %v4370 = vsel %vm101, %v4296, 0.0
  %v4371 = vadd.f32 %v4369, %v4370
  %v4372 = vsel %vm101, %v4297, 0.0
  %v4373 = vadd.f32 %v4371, %v4372
  %v4374 = vsel %vm101, %v4298, 0.0
  %v4375 = vadd.f32 %v4373, %v4374
  %v4376 = vsel %vm101, %v4299, 0.0
  %v4377 = vadd.f32 %v4375, %v4376
  %v4378 = vsel %vm101, %v4300, 0.0
  %v4379 = vadd.f32 %v4377, %v4378
  %v4380 = vsel %vm101, %v4301, 0.0
  %v4381 = vadd.f32 %v4379, %v4380
  %v4382 = vsel %vm101, %v4302, 0.0
  %v4383 = vadd.f32 %v4381, %v4382
  %v4384 = vsel %vm101, %v4303, 0.0
  %v4385 = vadd.f32 %v4383, %v4384
  %v4386 = vsel %vm101, %v4304, 0.0
  %v4387 = vadd.f32 %v4385, %v4386
  %v4388 = vsel %vm101, %v4305, 0.0
  %v4389 = vadd.f32 %v4387, %v4388
  %v4390 = vsel %vm101, %v4306, 0.0
  %v4391 = vadd.f32 %v4389, %v4390
  %v4392 = vsel %vm101, %v4307, 0.0
  %v4393 = vadd.f32 %v4391, %v4392
  %v4394 = vsel %vm101, %v4308, 0.0
  %v4395 = vadd.f32 %v4393, %v4394
  %v4396 = vsel %vm101, %v4309, 0.0
  %v4397 = vadd.f32 %v4395, %v4396
  %v4398 = vsel %vm101, %v4310, 0.0
  %v4399 = vadd.f32 %v4397, %v4398
  %v4400 = vsel %vm101, %v4311, 0.0
  %v4401 = vadd.f32 %v4399, %v4400
  %v4402 = vsel %vm101, %v4312, 0.0
  %v4403 = vadd.f32 %v4401, %v4402
  %v4404 = vsel %vm101, %v4313, 0.0
  %v4405 = vadd.f32 %v4403, %v4404
  %v4406 = vsel %vm101, %v4314, 0.0
  %v4407 = vadd.f32 %v4405, %v4406
  %v4408 = vsel %vm101, %v4315, 0.0
  %v4409 = vadd.f32 %v4407, %v4408
  %v4410 = vsel %vm101, %v4316, 0.0
  %v4411 = vadd.f32 %v4409, %v4410
  %v4412 = vsel %vm101, %v4317, 0.0
  %v4413 = vadd.f32 %v4411, %v4412
  %v4414 = vsel %vm101, %v4318, 0.0
  %v4415 = vadd.f32 %v4413, %v4414
  %v4416 = vsel %vm101, %v4319, 0.0
  %v4417 = vadd.f32 %v4415, %v4416
  %v4418 = vsel %vm101, %v4320, 0.0
  %v4419 = vadd.f32 %v4417, %v4418
  %v4420 = vsel %vm101, %v4321, 0.0
  %v4421 = vadd.f32 %v4419, %v4420
  %v4422 = vsel %vm101, %v4322, 0.0
  %v4423 = vadd.f32 %v4421, %v4422
  %v4424 = vsel %vm101, %v4323, 0.0
  %v4425 = vadd.f32 %v4423, %v4424
  %v4426 = vsel %vm101, %v4324, 0.0
  %v4427 = vadd.f32 %v4425, %v4426
  %v4428 = vsel %vm101, %v4325, 0.0
  %v4429 = vadd.f32 %v4427, %v4428
  %v4430 = vsel %vm101, %v4326, 0.0
  %v4431 = vadd.f32 %v4429, %v4430
  %v4432 = vsel %vm101, %v4327, 0.0
  %v4433 = vadd.f32 %v4431, %v4432
  %v4434 = vsel %vm101, %v4328, 0.0
  %v4435 = vadd.f32 %v4433, %v4434
  %v4436 = vsel %vm101, %v4329, 0.0
  %v4437 = vadd.f32 %v4435, %v4436
  %v4438 = vsel %vm101, %v4330, 0.0
  %v4439 = vadd.f32 %v4437, %v4438
  %v4440 = vsel %vm101, %v4331, 0.0
  %v4441 = vadd.f32 %v4439, %v4440
  %v4442 = vsel %vm101, %v4332, 0.0
  %v4443 = vadd.f32 %v4441, %v4442
  %v4444 = vsel %vm101, %v4333, 0.0
  %v4445 = vadd.f32 %v4443, %v4444
  %v4446 = vsel %vm101, %v4334, 0.0
  %v4447 = vadd.f32 %v4445, %v4446
  %v4448 = vsel %vm101, %v4335, 0.0
  %v4449 = vadd.f32 %v4447, %v4448
  %v4450 = vsel %vm101, %v4336, 0.0
  %v4451 = vadd.f32 %v4449, %v4450
  %v4452 = vsel %vm101, %v4337, 0.0
  %v4453 = vadd.f32 %v4451, %v4452
  %v4454 = vsel %vm101, %v4338, 0.0
  %v4455 = vadd.f32 %v4453, %v4454
  %v4456 = vsel %vm101, %v4339, 0.0
  %v4457 = vadd.f32 %v4455, %v4456
  %v4458 = vsel %vm101, %v4340, 0.0
  %v4459 = vadd.f32 %v4457, %v4458
  %v4460 = vsel %vm101, %v4341, 0.0
  %v4461 = vadd.f32 %v4459, %v4460
  %v4462 = vsel %vm101, %v4342, 0.0
  %v4463 = vadd.f32 %v4461, %v4462
  %v4464 = vsel %vm101, %v4343, 0.0
  %v4465 = vadd.f32 %v4463, %v4464
  %v4466 = vsel %vm101, %v4344, 0.0
  %v4467 = vadd.f32 %v4465, %v4466
  %v4468 = vsel %vm101, %v4345, 0.0
  %v4469 = vadd.f32 %v4467, %v4468
  %v4470 = vsel %vm101, %v4346, 0.0
  %v4471 = vadd.f32 %v4469, %v4470
  %v4472 = vsel %vm101, %v4347, 0.0
  %v4473 = vadd.f32 %v4471, %v4472
  %v4474 = vsel %vm101, %v4348, 0.0
  %v4475 = vadd.f32 %v4473, %v4474
  %v4476 = vrot.slane %v4475, 4
  %v4477 = vadd.f32 %v4475, %v4476
  %v4478 = vrot.slane %v4477, 2
  %v4479 = vadd.f32 %v4477, %v4478
  %v4480 = vrot.slane %v4479, 1
  %v4481 = vadd.f32 %v4479, %v4480
  %v4482 = vmul.f32 %v4284, 0.001953125
  %v4483 = vmul.f32 %v4481, 0.001953125
  %v4484 = vmul.f32 %v4482, %v4482
  %v4485 = vsub.f32 %v4483, %v4484
  %v4486 = vadd.f32 %v4485, 1e-05
  %v4487 = vrsqrt.pop %v4486
  %s4488 = scalar_lea.vmem %s3, 3
  %v4489 = vld [vmem:[%s4488] sm:$0x1]
  %v4490 = vmul.f32 %v4489, %v4487
  %s4491 = scalar_lea.vmem %s4, 3
  %v4492 = vld [vmem:[%s4491] sm:$0x1]
  %v4493 = vmul.f32 %v4482, %v4490
  %v4494 = vsub.f32 %v4492, %v4493
  %v4496 = vlaneseq
  %v4497 = vshrl.u32 %v4496, 7
  %v4498 = vsub.s32 0, %v4497
  %v4499 = vrot.slane %v4490, %v4498
  %v4501 = vmul.f32 %v4088, %v4499
  %v4502 = vmul.f32 %v4089, %v4499
  %v4503 = vmul.f32 %v4090, %v4499
  %v4504 = vmul.f32 %v4091, %v4499
  %v4505 = vmul.f32 %v4092, %v4499
  %v4506 = vmul.f32 %v4093, %v4499
  %v4507 = vmul.f32 %v4094, %v4499
  %v4508 = vmul.f32 %v4095, %v4499
  %v4509 = vmul.f32 %v4096, %v4499
  %v4510 = vmul.f32 %v4097, %v4499
  %v4511 = vmul.f32 %v4098, %v4499
  %v4512 = vmul.f32 %v4099, %v4499
  %v4513 = vmul.f32 %v4100, %v4499
  %v4514 = vmul.f32 %v4101, %v4499
  %v4515 = vmul.f32 %v4102, %v4499
  %v4516 = vmul.f32 %v4103, %v4499
  %v4517 = vmul.f32 %v4104, %v4499
  %v4518 = vmul.f32 %v4105, %v4499
  %v4519 = vmul.f32 %v4106, %v4499
  %v4520 = vmul.f32 %v4107, %v4499
  %v4521 = vmul.f32 %v4108, %v4499
  %v4522 = vmul.f32 %v4109, %v4499
  %v4523 = vmul.f32 %v4110, %v4499
  %v4524 = vmul.f32 %v4111, %v4499
  %v4525 = vmul.f32 %v4112, %v4499
  %v4526 = vmul.f32 %v4113, %v4499
  %v4527 = vmul.f32 %v4114, %v4499
  %v4528 = vmul.f32 %v4115, %v4499
  %v4529 = vmul.f32 %v4116, %v4499
  %v4530 = vmul.f32 %v4117, %v4499
  %v4531 = vmul.f32 %v4118, %v4499
  %v4532 = vmul.f32 %v4119, %v4499
  %v4533 = vmul.f32 %v4120, %v4499
  %v4534 = vmul.f32 %v4121, %v4499
  %v4535 = vmul.f32 %v4122, %v4499
  %v4536 = vmul.f32 %v4123, %v4499
  %v4537 = vmul.f32 %v4124, %v4499
  %v4538 = vmul.f32 %v4125, %v4499
  %v4539 = vmul.f32 %v4126, %v4499
  %v4540 = vmul.f32 %v4127, %v4499
  %v4541 = vmul.f32 %v4128, %v4499
  %v4542 = vmul.f32 %v4129, %v4499
  %v4543 = vmul.f32 %v4130, %v4499
  %v4544 = vmul.f32 %v4131, %v4499
  %v4545 = vmul.f32 %v4132, %v4499
  %v4546 = vmul.f32 %v4133, %v4499
  %v4547 = vmul.f32 %v4134, %v4499
  %v4548 = vmul.f32 %v4135, %v4499
  %v4549 = vmul.f32 %v4136, %v4499
  %v4550 = vmul.f32 %v4137, %v4499
  %v4551 = vmul.f32 %v4138, %v4499
  %v4552 = vmul.f32 %v4139, %v4499
  %v4553 = vmul.f32 %v4140, %v4499
  %v4554 = vmul.f32 %v4141, %v4499
  %v4555 = vmul.f32 %v4142, %v4499
  %v4556 = vmul.f32 %v4143, %v4499
  %v4557 = vmul.f32 %v4144, %v4499
  %v4558 = vmul.f32 %v4145, %v4499
  %v4559 = vmul.f32 %v4146, %v4499
  %v4560 = vmul.f32 %v4147, %v4499
  %v4561 = vmul.f32 %v4148, %v4499
  %v4562 = vmul.f32 %v4149, %v4499
  %v4563 = vmul.f32 %v4150, %v4499
  %v4564 = vmul.f32 %v4151, %v4499
  %v4566 = vlaneseq
  %v4567 = vshrl.u32 %v4566, 7
  %v4568 = vsub.s32 0, %v4567
  %v4569 = vrot.slane %v4494, %v4568
  %v4571 = vadd.f32 %v4501, %v4569
  %v4572 = vadd.f32 %v4502, %v4569
  %v4573 = vadd.f32 %v4503, %v4569
  %v4574 = vadd.f32 %v4504, %v4569
  %v4575 = vadd.f32 %v4505, %v4569
  %v4576 = vadd.f32 %v4506, %v4569
  %v4577 = vadd.f32 %v4507, %v4569
  %v4578 = vadd.f32 %v4508, %v4569
  %v4579 = vadd.f32 %v4509, %v4569
  %v4580 = vadd.f32 %v4510, %v4569
  %v4581 = vadd.f32 %v4511, %v4569
  %v4582 = vadd.f32 %v4512, %v4569
  %v4583 = vadd.f32 %v4513, %v4569
  %v4584 = vadd.f32 %v4514, %v4569
  %v4585 = vadd.f32 %v4515, %v4569
  %v4586 = vadd.f32 %v4516, %v4569
  %v4587 = vadd.f32 %v4517, %v4569
  %v4588 = vadd.f32 %v4518, %v4569
  %v4589 = vadd.f32 %v4519, %v4569
  %v4590 = vadd.f32 %v4520, %v4569
  %v4591 = vadd.f32 %v4521, %v4569
  %v4592 = vadd.f32 %v4522, %v4569
  %v4593 = vadd.f32 %v4523, %v4569
  %v4594 = vadd.f32 %v4524, %v4569
  %v4595 = vadd.f32 %v4525, %v4569
  %v4596 = vadd.f32 %v4526, %v4569
  %v4597 = vadd.f32 %v4527, %v4569
  %v4598 = vadd.f32 %v4528, %v4569
  %v4599 = vadd.f32 %v4529, %v4569
  %v4600 = vadd.f32 %v4530, %v4569
  %v4601 = vadd.f32 %v4531, %v4569
  %v4602 = vadd.f32 %v4532, %v4569
  %v4603 = vadd.f32 %v4533, %v4569
  %v4604 = vadd.f32 %v4534, %v4569
  %v4605 = vadd.f32 %v4535, %v4569
  %v4606 = vadd.f32 %v4536, %v4569
  %v4607 = vadd.f32 %v4537, %v4569
  %v4608 = vadd.f32 %v4538, %v4569
  %v4609 = vadd.f32 %v4539, %v4569
  %v4610 = vadd.f32 %v4540, %v4569
  %v4611 = vadd.f32 %v4541, %v4569
  %v4612 = vadd.f32 %v4542, %v4569
  %v4613 = vadd.f32 %v4543, %v4569
  %v4614 = vadd.f32 %v4544, %v4569
  %v4615 = vadd.f32 %v4545, %v4569
  %v4616 = vadd.f32 %v4546, %v4569
  %v4617 = vadd.f32 %v4547, %v4569
  %v4618 = vadd.f32 %v4548, %v4569
  %v4619 = vadd.f32 %v4549, %v4569
  %v4620 = vadd.f32 %v4550, %v4569
  %v4621 = vadd.f32 %v4551, %v4569
  %v4622 = vadd.f32 %v4552, %v4569
  %v4623 = vadd.f32 %v4553, %v4569
  %v4624 = vadd.f32 %v4554, %v4569
  %v4625 = vadd.f32 %v4555, %v4569
  %v4626 = vadd.f32 %v4556, %v4569
  %v4627 = vadd.f32 %v4557, %v4569
  %v4628 = vadd.f32 %v4558, %v4569
  %v4629 = vadd.f32 %v4559, %v4569
  %v4630 = vadd.f32 %v4560, %v4569
  %v4631 = vadd.f32 %v4561, %v4569
  %v4632 = vadd.f32 %v4562, %v4569
  %v4633 = vadd.f32 %v4563, %v4569
  %v4634 = vadd.f32 %v4564, %v4569
  %v4635 = vld [vmem:[%s5] sm:$0xff]
  %v4636 = vld [vmem:[%s5 + $0x8] sm:$0xff]
  %v4637 = vld [vmem:[%s5 + $0x10] sm:$0xff]
  %v4638 = vld [vmem:[%s5 + $0x18] sm:$0xff]
  %v4639 = vld [vmem:[%s6] sm:$0x1]
  %v4641 = vlaneseq
  %v4642 = vshrl.u32 %v4641, 7
  %v4643 = vsub.s32 0, %v4642
  %v4644 = vrot.slane %v4639, %v4643
  %v4647 = vsel %vm101, %v4571, 0
  %v4650 = vsel %vm101, %v4572, 0
  %v4653 = vsel %vm101, %v4573, 0
  %v4656 = vsel %vm101, %v4574, 0
  %v4659 = vsel %vm101, %v4575, 0
  %v4662 = vsel %vm101, %v4576, 0
  %v4665 = vsel %vm101, %v4577, 0
  %v4668 = vsel %vm101, %v4578, 0
  %v4671 = vsel %vm101, %v4579, 0
  %v4674 = vsel %vm101, %v4580, 0
  %v4677 = vsel %vm101, %v4581, 0
  %v4680 = vsel %vm101, %v4582, 0
  %v4683 = vsel %vm101, %v4583, 0
  %v4686 = vsel %vm101, %v4584, 0
  %v4689 = vsel %vm101, %v4585, 0
  %v4692 = vsel %vm101, %v4586, 0
  %v4695 = vsel %vm101, %v4587, 0
  %v4698 = vsel %vm101, %v4588, 0
  %v4701 = vsel %vm101, %v4589, 0
  %v4704 = vsel %vm101, %v4590, 0
  %v4707 = vsel %vm101, %v4591, 0
  %v4710 = vsel %vm101, %v4592, 0
  %v4713 = vsel %vm101, %v4593, 0
  %v4716 = vsel %vm101, %v4594, 0
  %v4719 = vsel %vm101, %v4595, 0
  %v4722 = vsel %vm101, %v4596, 0
  %v4725 = vsel %vm101, %v4597, 0
  %v4728 = vsel %vm101, %v4598, 0
  %v4731 = vsel %vm101, %v4599, 0
  %v4734 = vsel %vm101, %v4600, 0
  %v4737 = vsel %vm101, %v4601, 0
  %v4740 = vsel %vm101, %v4602, 0
  %v4743 = vsel %vm101, %v4603, 0
  %v4746 = vsel %vm101, %v4604, 0
  %v4749 = vsel %vm101, %v4605, 0
  %v4752 = vsel %vm101, %v4606, 0
  %v4755 = vsel %vm101, %v4607, 0
  %v4758 = vsel %vm101, %v4608, 0
  %v4761 = vsel %vm101, %v4609, 0
  %v4764 = vsel %vm101, %v4610, 0
  %v4767 = vsel %vm101, %v4611, 0
  %v4770 = vsel %vm101, %v4612, 0
  %v4773 = vsel %vm101, %v4613, 0
  %v4776 = vsel %vm101, %v4614, 0
  %v4779 = vsel %vm101, %v4615, 0
  %v4782 = vsel %vm101, %v4616, 0
  %v4785 = vsel %vm101, %v4617, 0
  %v4788 = vsel %vm101, %v4618, 0
  %v4791 = vsel %vm101, %v4619, 0
  %v4794 = vsel %vm101, %v4620, 0
  %v4797 = vsel %vm101, %v4621, 0
  %v4800 = vsel %vm101, %v4622, 0
  %v4803 = vsel %vm101, %v4623, 0
  %v4806 = vsel %vm101, %v4624, 0
  %v4809 = vsel %vm101, %v4625, 0
  %v4812 = vsel %vm101, %v4626, 0
  %v4815 = vsel %vm101, %v4627, 0
  %v4818 = vsel %vm101, %v4628, 0
  %v4821 = vsel %vm101, %v4629, 0
  %v4824 = vsel %vm101, %v4630, 0
  %v4827 = vsel %vm101, %v4631, 0
  %v4830 = vsel %vm101, %v4632, 0
  %v4833 = vsel %vm101, %v4633, 0
  %v4836 = vsel %vm101, %v4634, 0
  %4838 = vmatprep.subr.mxu0 0.0
  %4839 = vmatpush1.msra.mxu0 %v4635
  %4840 = vmatprep.subr.mxu0 0.0
  %4841 = vmatpush1.msra.mxu0 %v4636
  %4842 = vmatprep.subr.mxu0 0.0
  %4843 = vmatpush1.msra.mxu0 %v4637
  %4844 = vmatprep.subr.mxu0 0.0
  %4845 = vmatpush1.msra.mxu0 %v4638
  %4846 = vmatprep.subr.mxu0 0.0
  %4847 = vmatpush1.msra.mxu0 0.0
  %4848 = vmatprep.subr.mxu0 0.0
  %4849 = vmatpush1.msra.mxu0 0.0
  %4850 = vmatprep.subr.mxu0 0.0
  %4851 = vmatpush1.msra.mxu0 0.0
  %4852 = vmatprep.subr.mxu0 0.0
  %4853 = vmatpush1.msra.mxu0 0.0
  %4854 = vmatprep.subr.mxu0 0.0
  %4855 = vmatpush1.msra.mxu0 0.0
  %4856 = vmatprep.subr.mxu0 0.0
  %4857 = vmatpush1.msra.mxu0 0.0
  %4858 = vmatprep.subr.mxu0 0.0
  %4859 = vmatpush1.msra.mxu0 0.0
  %4860 = vmatprep.subr.mxu0 0.0
  %4861 = vmatpush1.msra.mxu0 0.0
  %4862 = vmatprep.subr.mxu0 0.0
  %4863 = vmatpush1.msra.mxu0 0.0
  %4864 = vmatprep.subr.mxu0 0.0
  %4865 = vmatpush1.msra.mxu0 0.0
  %4866 = vmatprep.subr.mxu0 0.0
  %4867 = vmatpush1.msra.mxu0 0.0
  %4868 = vmatprep.subr.mxu0 0.0
  %4869 = vmatpush1.msra.mxu0 0.0
  %4870 = vmatprep.subr.mxu0 0.0
  %4871 = vmatpush1.msra.mxu0 0.0
  %4872 = vmatprep.subr.mxu0 0.0
  %4873 = vmatpush1.msra.mxu0 0.0
  %4874 = vmatprep.subr.mxu0 0.0
  %4875 = vmatpush1.msra.mxu0 0.0
  %4876 = vmatprep.subr.mxu0 0.0
  %4877 = vmatpush1.msra.mxu0 0.0
  %4878 = vmatprep.subr.mxu0 0.0
  %4879 = vmatpush1.msra.mxu0 0.0
  %4880 = vmatprep.subr.mxu0 0.0
  %4881 = vmatpush1.msra.mxu0 0.0
  %4882 = vmatprep.subr.mxu0 0.0
  %4883 = vmatpush1.msra.mxu0 0.0
  %4884 = vmatprep.subr.mxu0 0.0
  %4885 = vmatpush1.msra.mxu0 0.0
  %4886 = vmatprep.subr.mxu0 0.0
  %4887 = vmatpush1.msra.mxu0 0.0
  %4888 = vmatprep.subr.mxu0 0.0
  %4889 = vmatpush1.msra.mxu0 0.0
  %4890 = vmatprep.subr.mxu0 0.0
  %4891 = vmatpush1.msra.mxu0 0.0
  %4892 = vmatprep.subr.mxu0 0.0
  %4893 = vmatpush1.msra.mxu0 0.0
  %4894 = vmatprep.subr.mxu0 0.0
  %4895 = vmatpush1.msra.mxu0 0.0
  %4896 = vmatprep.subr.mxu0 0.0
  %4897 = vmatpush1.msra.mxu0 0.0
  %4898 = vmatprep.subr.mxu0 0.0
  %4899 = vmatpush1.msra.mxu0 0.0
  %4900 = vmatprep.subr.mxu0 0.0
  %4901 = vmatpush1.msra.mxu0 0.0
  %4902 = vmatprep.mubr.f32.mxu0 0.0
  %4903 = vmatmul.mubr.f32.gmra.mrb[0].mxu0 %v4647
  %v4904 = vpop.f32.mrb[0].mxu0
  %v4905 = vadd.f32 %v4644, %v4904
  %v4906 = vpop.f32.mrb[0].mxu0
  %4907 = vmatprep.mubr.f32.mxu0 0.0
  %4908 = vmatmul.mubr.f32.gmra.mrb[0].mxu0 %v4650
  %v4909 = vpop.f32.mrb[0].mxu0
  %v4910 = vadd.f32 %v4644, %v4909
  %v4911 = vpop.f32.mrb[0].mxu0
  %4912 = vmatprep.mubr.f32.mxu0 0.0
  %4913 = vmatmul.mubr.f32.gmra.mrb[0].mxu0 %v4653
  %v4914 = vpop.f32.mrb[0].mxu0
  %v4915 = vadd.f32 %v4644, %v4914
  %v4916 = vpop.f32.mrb[0].mxu0
  %4917 = vmatprep.mubr.f32.mxu0 0.0
  %4918 = vmatmul.mubr.f32.gmra.mrb[0].mxu0 %v4656
  %v4919 = vpop.f32.mrb[0].mxu0
  %v4920 = vadd.f32 %v4644, %v4919
  %v4921 = vpop.f32.mrb[0].mxu0
  %4922 = vmatprep.mubr.f32.mxu0 0.0
  %4923 = vmatmul.mubr.f32.gmra.mrb[0].mxu0 %v4659
  %v4924 = vpop.f32.mrb[0].mxu0
  %v4925 = vadd.f32 %v4644, %v4924
  %v4926 = vpop.f32.mrb[0].mxu0
  %4927 = vmatprep.mubr.f32.mxu0 0.0
  %4928 = vmatmul.mubr.f32.gmra.mrb[0].mxu0 %v4662
  %v4929 = vpop.f32.mrb[0].mxu0
  %v4930 = vadd.f32 %v4644, %v4929
  %v4931 = vpop.f32.mrb[0].mxu0
  %4932 = vmatprep.mubr.f32.mxu0 0.0
  %4933 = vmatmul.mubr.f32.gmra.mrb[0].mxu0 %v4665
  %v4934 = vpop.f32.mrb[0].mxu0
  %v4935 = vadd.f32 %v4644, %v4934
  %v4936 = vpop.f32.mrb[0].mxu0
  %4937 = vmatprep.mubr.f32.mxu0 0.0
  %4938 = vmatmul.mubr.f32.gmra.mrb[0].mxu0 %v4668
  %v4939 = vpop.f32.mrb[0].mxu0
  %v4940 = vadd.f32 %v4644, %v4939
  %v4941 = vpop.f32.mrb[0].mxu0
  %4942 = vmatprep.mubr.f32.mxu0 0.0
  %4943 = vmatmul.mubr.f32.gmra.mrb[0].mxu0 %v4671
  %v4944 = vpop.f32.mrb[0].mxu0
  %v4945 = vadd.f32 %v4644, %v4944
  %v4946 = vpop.f32.mrb[0].mxu0
  %4947 = vmatprep.mubr.f32.mxu0 0.0
  %4948 = vmatmul.mubr.f32.gmra.mrb[0].mxu0 %v4674
  %v4949 = vpop.f32.mrb[0].mxu0
  %v4950 = vadd.f32 %v4644, %v4949
  %v4951 = vpop.f32.mrb[0].mxu0
  %4952 = vmatprep.mubr.f32.mxu0 0.0
  %4953 = vmatmul.mubr.f32.gmra.mrb[0].mxu0 %v4677
  %v4954 = vpop.f32.mrb[0].mxu0
  %v4955 = vadd.f32 %v4644, %v4954
  %v4956 = vpop.f32.mrb[0].mxu0
  %4957 = vmatprep.mubr.f32.mxu0 0.0
  %4958 = vmatmul.mubr.f32.gmra.mrb[0].mxu0 %v4680
  %v4959 = vpop.f32.mrb[0].mxu0
  %v4960 = vadd.f32 %v4644, %v4959
  %v4961 = vpop.f32.mrb[0].mxu0
  %4962 = vmatprep.mubr.f32.mxu0 0.0
  %4963 = vmatmul.mubr.f32.gmra.mrb[0].mxu0 %v4683
  %v4964 = vpop.f32.mrb[0].mxu0
  %v4965 = vadd.f32 %v4644, %v4964
  %v4966 = vpop.f32.mrb[0].mxu0
  %4967 = vmatprep.mubr.f32.mxu0 0.0
  %4968 = vmatmul.mubr.f32.gmra.mrb[0].mxu0 %v4686
  %v4969 = vpop.f32.mrb[0].mxu0
  %v4970 = vadd.f32 %v4644, %v4969
  %v4971 = vpop.f32.mrb[0].mxu0
  %4972 = vmatprep.mubr.f32.mxu0 0.0
  %4973 = vmatmul.mubr.f32.gmra.mrb[0].mxu0 %v4689
  %v4974 = vpop.f32.mrb[0].mxu0
  %v4975 = vadd.f32 %v4644, %v4974
  %v4976 = vpop.f32.mrb[0].mxu0
  %4977 = vmatprep.mubr.f32.mxu0 0.0
  %4978 = vmatmul.mubr.f32.gmra.mrb[0].mxu0 %v4692
  %v4979 = vpop.f32.mrb[0].mxu0
  %v4980 = vadd.f32 %v4644, %v4979
  %v4981 = vpop.f32.mrb[0].mxu0
  %4982 = vmatprep.mubr.f32.mxu0 0.0
  %4983 = vmatmul.mubr.f32.gmra.mrb[0].mxu0 %v4695
  %v4984 = vpop.f32.mrb[0].mxu0
  %v4985 = vadd.f32 %v4644, %v4984
  %v4986 = vpop.f32.mrb[0].mxu0
  %4987 = vmatprep.mubr.f32.mxu0 0.0
  %4988 = vmatmul.mubr.f32.gmra.mrb[0].mxu0 %v4698
  %v4989 = vpop.f32.mrb[0].mxu0
  %v4990 = vadd.f32 %v4644, %v4989
  %v4991 = vpop.f32.mrb[0].mxu0
  %4992 = vmatprep.mubr.f32.mxu0 0.0
  %4993 = vmatmul.mubr.f32.gmra.mrb[0].mxu0 %v4701
  %v4994 = vpop.f32.mrb[0].mxu0
  %v4995 = vadd.f32 %v4644, %v4994
  %v4996 = vpop.f32.mrb[0].mxu0
  %4997 = vmatprep.mubr.f32.mxu0 0.0
  %4998 = vmatmul.mubr.f32.gmra.mrb[0].mxu0 %v4704
  %v4999 = vpop.f32.mrb[0].mxu0
  %v5000 = vadd.f32 %v4644, %v4999
  %v5001 = vpop.f32.mrb[0].mxu0
  %5002 = vmatprep.mubr.f32.mxu0 0.0
  %5003 = vmatmul.mubr.f32.gmra.mrb[0].mxu0 %v4707
  %v5004 = vpop.f32.mrb[0].mxu0
  %v5005 = vadd.f32 %v4644, %v5004
  %v5006 = vpop.f32.mrb[0].mxu0
  %5007 = vmatprep.mubr.f32.mxu0 0.0
  %5008 = vmatmul.mubr.f32.gmra.mrb[0].mxu0 %v4710
  %v5009 = vpop.f32.mrb[0].mxu0
  %v5010 = vadd.f32 %v4644, %v5009
  %v5011 = vpop.f32.mrb[0].mxu0
  %5012 = vmatprep.mubr.f32.mxu0 0.0
  %5013 = vmatmul.mubr.f32.gmra.mrb[0].mxu0 %v4713
  %v5014 = vpop.f32.mrb[0].mxu0
  %v5015 = vadd.f32 %v4644, %v5014
  %v5016 = vpop.f32.mrb[0].mxu0
  %5017 = vmatprep.mubr.f32.mxu0 0.0
  %5018 = vmatmul.mubr.f32.gmra.mrb[0].mxu0 %v4716
  %v5019 = vpop.f32.mrb[0].mxu0
  %v5020 = vadd.f32 %v4644, %v5019
  %v5021 = vpop.f32.mrb[0].mxu0
  %5022 = vmatprep.mubr.f32.mxu0 0.0
  %5023 = vmatmul.mubr.f32.gmra.mrb[0].mxu0 %v4719
  %v5024 = vpop.f32.mrb[0].mxu0
  %v5025 = vadd.f32 %v4644, %v5024
  %v5026 = vpop.f32.mrb[0].mxu0
  %5027 = vmatprep.mubr.f32.mxu0 0.0
  %5028 = vmatmul.mubr.f32.gmra.mrb[0].mxu0 %v4722
  %v5029 = vpop.f32.mrb[0].mxu0
  %v5030 = vadd.f32 %v4644, %v5029
  %v5031 = vpop.f32.mrb[0].mxu0
  %5032 = vmatprep.mubr.f32.mxu0 0.0
  %5033 = vmatmul.mubr.f32.gmra.mrb[0].mxu0 %v4725
  %v5034 = vpop.f32.mrb[0].mxu0
  %v5035 = vadd.f32 %v4644, %v5034
  %v5036 = vpop.f32.mrb[0].mxu0
  %5037 = vmatprep.mubr.f32.mxu0 0.0
  %5038 = vmatmul.mubr.f32.gmra.mrb[0].mxu0 %v4728
  %v5039 = vpop.f32.mrb[0].mxu0
  %v5040 = vadd.f32 %v4644, %v5039
  %v5041 = vpop.f32.mrb[0].mxu0
  %5042 = vmatprep.mubr.f32.mxu0 0.0
  %5043 = vmatmul.mubr.f32.gmra.mrb[0].mxu0 %v4731
  %v5044 = vpop.f32.mrb[0].mxu0
  %v5045 = vadd.f32 %v4644, %v5044
  %v5046 = vpop.f32.mrb[0].mxu0
  %5047 = vmatprep.mubr.f32.mxu0 0.0
  %5048 = vmatmul.mubr.f32.gmra.mrb[0].mxu0 %v4734
  %v5049 = vpop.f32.mrb[0].mxu0
  %v5050 = vadd.f32 %v4644, %v5049
  %v5051 = vpop.f32.mrb[0].mxu0
  %5052 = vmatprep.mubr.f32.mxu0 0.0
  %5053 = vmatmul.mubr.f32.gmra.mrb[0].mxu0 %v4737
  %v5054 = vpop.f32.mrb[0].mxu0
  %v5055 = vadd.f32 %v4644, %v5054
  %v5056 = vpop.f32.mrb[0].mxu0
  %5057 = vmatprep.mubr.f32.mxu0 0.0
  %5058 = vmatmul.mubr.f32.gmra.mrb[0].mxu0 %v4740
  %v5059 = vpop.f32.mrb[0].mxu0
  %v5060 = vadd.f32 %v4644, %v5059
  %v5061 = vpop.f32.mrb[0].mxu0
  %5062 = vmatprep.mubr.f32.mxu0 0.0
  %5063 = vmatmul.mubr.f32.gmra.mrb[0].mxu0 %v4743
  %v5064 = vpop.f32.mrb[0].mxu0
  %v5065 = vadd.f32 %v4644, %v5064
  %v5066 = vpop.f32.mrb[0].mxu0
  %5067 = vmatprep.mubr.f32.mxu0 0.0
  %5068 = vmatmul.mubr.f32.gmra.mrb[0].mxu0 %v4746
  %v5069 = vpop.f32.mrb[0].mxu0
  %v5070 = vadd.f32 %v4644, %v5069
  %v5071 = vpop.f32.mrb[0].mxu0
  %5072 = vmatprep.mubr.f32.mxu0 0.0
  %5073 = vmatmul.mubr.f32.gmra.mrb[0].mxu0 %v4749
  %v5074 = vpop.f32.mrb[0].mxu0
  %v5075 = vadd.f32 %v4644, %v5074
  %v5076 = vpop.f32.mrb[0].mxu0
  %5077 = vmatprep.mubr.f32.mxu0 0.0
  %5078 = vmatmul.mubr.f32.gmra.mrb[0].mxu0 %v4752
  %v5079 = vpop.f32.mrb[0].mxu0
  %v5080 = vadd.f32 %v4644, %v5079
  %v5081 = vpop.f32.mrb[0].mxu0
  %5082 = vmatprep.mubr.f32.mxu0 0.0
  %5083 = vmatmul.mubr.f32.gmra.mrb[0].mxu0 %v4755
  %v5084 = vpop.f32.mrb[0].mxu0
  %v5085 = vadd.f32 %v4644, %v5084
  %v5086 = vpop.f32.mrb[0].mxu0
  %5087 = vmatprep.mubr.f32.mxu0 0.0
  %5088 = vmatmul.mubr.f32.gmra.mrb[0].mxu0 %v4758
  %v5089 = vpop.f32.mrb[0].mxu0
  %v5090 = vadd.f32 %v4644, %v5089
  %v5091 = vpop.f32.mrb[0].mxu0
  %5092 = vmatprep.mubr.f32.mxu0 0.0
  %5093 = vmatmul.mubr.f32.gmra.mrb[0].mxu0 %v4761
  %v5094 = vpop.f32.mrb[0].mxu0
  %v5095 = vadd.f32 %v4644, %v5094
  %v5096 = vpop.f32.mrb[0].mxu0
  %5097 = vmatprep.mubr.f32.mxu0 0.0
  %5098 = vmatmul.mubr.f32.gmra.mrb[0].mxu0 %v4764
  %v5099 = vpop.f32.mrb[0].mxu0
  %v5100 = vadd.f32 %v4644, %v5099
  %v5101 = vpop.f32.mrb[0].mxu0
  %5102 = vmatprep.mubr.f32.mxu0 0.0
  %5103 = vmatmul.mubr.f32.gmra.mrb[0].mxu0 %v4767
  %v5104 = vpop.f32.mrb[0].mxu0
  %v5105 = vadd.f32 %v4644, %v5104
  %v5106 = vpop.f32.mrb[0].mxu0
  %5107 = vmatprep.mubr.f32.mxu0 0.0
  %5108 = vmatmul.mubr.f32.gmra.mrb[0].mxu0 %v4770
  %v5109 = vpop.f32.mrb[0].mxu0
  %v5110 = vadd.f32 %v4644, %v5109
  %v5111 = vpop.f32.mrb[0].mxu0
  %5112 = vmatprep.mubr.f32.mxu0 0.0
  %5113 = vmatmul.mubr.f32.gmra.mrb[0].mxu0 %v4773
  %v5114 = vpop.f32.mrb[0].mxu0
  %v5115 = vadd.f32 %v4644, %v5114
  %v5116 = vpop.f32.mrb[0].mxu0
  %5117 = vmatprep.mubr.f32.mxu0 0.0
  %5118 = vmatmul.mubr.f32.gmra.mrb[0].mxu0 %v4776
  %v5119 = vpop.f32.mrb[0].mxu0
  %v5120 = vadd.f32 %v4644, %v5119
  %v5121 = vpop.f32.mrb[0].mxu0
  %5122 = vmatprep.mubr.f32.mxu0 0.0
  %5123 = vmatmul.mubr.f32.gmra.mrb[0].mxu0 %v4779
  %v5124 = vpop.f32.mrb[0].mxu0
  %v5125 = vadd.f32 %v4644, %v5124
  %v5126 = vpop.f32.mrb[0].mxu0
  %5127 = vmatprep.mubr.f32.mxu0 0.0
  %5128 = vmatmul.mubr.f32.gmra.mrb[0].mxu0 %v4782
  %v5129 = vpop.f32.mrb[0].mxu0
  %v5130 = vadd.f32 %v4644, %v5129
  %v5131 = vpop.f32.mrb[0].mxu0
  %5132 = vmatprep.mubr.f32.mxu0 0.0
  %5133 = vmatmul.mubr.f32.gmra.mrb[0].mxu0 %v4785
  %v5134 = vpop.f32.mrb[0].mxu0
  %v5135 = vadd.f32 %v4644, %v5134
  %v5136 = vpop.f32.mrb[0].mxu0
  %5137 = vmatprep.mubr.f32.mxu0 0.0
  %5138 = vmatmul.mubr.f32.gmra.mrb[0].mxu0 %v4788
  %v5139 = vpop.f32.mrb[0].mxu0
  %v5140 = vadd.f32 %v4644, %v5139
  %v5141 = vpop.f32.mrb[0].mxu0
  %5142 = vmatprep.mubr.f32.mxu0 0.0
  %5143 = vmatmul.mubr.f32.gmra.mrb[0].mxu0 %v4791
  %v5144 = vpop.f32.mrb[0].mxu0
  %v5145 = vadd.f32 %v4644, %v5144
  %v5146 = vpop.f32.mrb[0].mxu0
  %5147 = vmatprep.mubr.f32.mxu0 0.0
  %5148 = vmatmul.mubr.f32.gmra.mrb[0].mxu0 %v4794
  %v5149 = vpop.f32.mrb[0].mxu0
  %v5150 = vadd.f32 %v4644, %v5149
  %v5151 = vpop.f32.mrb[0].mxu0
  %5152 = vmatprep.mubr.f32.mxu0 0.0
  %5153 = vmatmul.mubr.f32.gmra.mrb[0].mxu0 %v4797
  %v5154 = vpop.f32.mrb[0].mxu0
  %v5155 = vadd.f32 %v4644, %v5154
  %v5156 = vpop.f32.mrb[0].mxu0
  %5157 = vmatprep.mubr.f32.mxu0 0.0
  %5158 = vmatmul.mubr.f32.gmra.mrb[0].mxu0 %v4800
  %v5159 = vpop.f32.mrb[0].mxu0
  %v5160 = vadd.f32 %v4644, %v5159
  %v5161 = vpop.f32.mrb[0].mxu0
  %5162 = vmatprep.mubr.f32.mxu0 0.0
  %5163 = vmatmul.mubr.f32.gmra.mrb[0].mxu0 %v4803
  %v5164 = vpop.f32.mrb[0].mxu0
  %v5165 = vadd.f32 %v4644, %v5164
  %v5166 = vpop.f32.mrb[0].mxu0
  %5167 = vmatprep.mubr.f32.mxu0 0.0
  %5168 = vmatmul.mubr.f32.gmra.mrb[0].mxu0 %v4806
  %v5169 = vpop.f32.mrb[0].mxu0
  %v5170 = vadd.f32 %v4644, %v5169
  %v5171 = vpop.f32.mrb[0].mxu0
  %5172 = vmatprep.mubr.f32.mxu0 0.0
  %5173 = vmatmul.mubr.f32.gmra.mrb[0].mxu0 %v4809
  %v5174 = vpop.f32.mrb[0].mxu0
  %v5175 = vadd.f32 %v4644, %v5174
  %v5176 = vpop.f32.mrb[0].mxu0
  %5177 = vmatprep.mubr.f32.mxu0 0.0
  %5178 = vmatmul.mubr.f32.gmra.mrb[0].mxu0 %v4812
  %v5179 = vpop.f32.mrb[0].mxu0
  %v5180 = vadd.f32 %v4644, %v5179
  %v5181 = vpop.f32.mrb[0].mxu0
  %5182 = vmatprep.mubr.f32.mxu0 0.0
  %5183 = vmatmul.mubr.f32.gmra.mrb[0].mxu0 %v4815
  %v5184 = vpop.f32.mrb[0].mxu0
  %v5185 = vadd.f32 %v4644, %v5184
  %v5186 = vpop.f32.mrb[0].mxu0
  %5187 = vmatprep.mubr.f32.mxu0 0.0
  %5188 = vmatmul.mubr.f32.gmra.mrb[0].mxu0 %v4818
  %v5189 = vpop.f32.mrb[0].mxu0
  %v5190 = vadd.f32 %v4644, %v5189
  %v5191 = vpop.f32.mrb[0].mxu0
  %5192 = vmatprep.mubr.f32.mxu0 0.0
  %5193 = vmatmul.mubr.f32.gmra.mrb[0].mxu0 %v4821
  %v5194 = vpop.f32.mrb[0].mxu0
  %v5195 = vadd.f32 %v4644, %v5194
  %v5196 = vpop.f32.mrb[0].mxu0
  %5197 = vmatprep.mubr.f32.mxu0 0.0
  %5198 = vmatmul.mubr.f32.gmra.mrb[0].mxu0 %v4824
  %v5199 = vpop.f32.mrb[0].mxu0
  %v5200 = vadd.f32 %v4644, %v5199
  %v5201 = vpop.f32.mrb[0].mxu0
  %5202 = vmatprep.mubr.f32.mxu0 0.0
  %5203 = vmatmul.mubr.f32.gmra.mrb[0].mxu0 %v4827
  %v5204 = vpop.f32.mrb[0].mxu0
  %v5205 = vadd.f32 %v4644, %v5204
  %v5206 = vpop.f32.mrb[0].mxu0
  %5207 = vmatprep.mubr.f32.mxu0 0.0
  %5208 = vmatmul.mubr.f32.gmra.mrb[0].mxu0 %v4830
  %v5209 = vpop.f32.mrb[0].mxu0
  %v5210 = vadd.f32 %v4644, %v5209
  %v5211 = vpop.f32.mrb[0].mxu0
  %5212 = vmatprep.mubr.f32.mxu0 0.0
  %5213 = vmatmul.mubr.f32.gmra.mrb[0].mxu0 %v4833
  %v5214 = vpop.f32.mrb[0].mxu0
  %v5215 = vadd.f32 %v4644, %v5214
  %v5216 = vpop.f32.mrb[0].mxu0
  %5217 = vmatprep.mubr.f32.mxu0 0.0
  %5218 = vmatmul.mubr.f32.gmra.mrb[0].mxu0 %v4836
  %v5219 = vpop.f32.mrb[0].mxu0
  %v5220 = vadd.f32 %v4644, %v5219
  %v5221 = vpop.f32.mrb[0].mxu0
  %5222 = vdwg.mxu0
  %v5223 = vmax.f32 %v4905, 0.0
  %v5224 = vmax.f32 %v4910, 0.0
  %v5225 = vmax.f32 %v4915, 0.0
  %v5226 = vmax.f32 %v4920, 0.0
  %v5227 = vmax.f32 %v4925, 0.0
  %v5228 = vmax.f32 %v4930, 0.0
  %v5229 = vmax.f32 %v4935, 0.0
  %v5230 = vmax.f32 %v4940, 0.0
  %v5231 = vmax.f32 %v4945, 0.0
  %v5232 = vmax.f32 %v4950, 0.0
  %v5233 = vmax.f32 %v4955, 0.0
  %v5234 = vmax.f32 %v4960, 0.0
  %v5235 = vmax.f32 %v4965, 0.0
  %v5236 = vmax.f32 %v4970, 0.0
  %v5237 = vmax.f32 %v4975, 0.0
  %v5238 = vmax.f32 %v4980, 0.0
  %v5239 = vmax.f32 %v4985, 0.0
  %v5240 = vmax.f32 %v4990, 0.0
  %v5241 = vmax.f32 %v4995, 0.0
  %v5242 = vmax.f32 %v5000, 0.0
  %v5243 = vmax.f32 %v5005, 0.0
  %v5244 = vmax.f32 %v5010, 0.0
  %v5245 = vmax.f32 %v5015, 0.0
  %v5246 = vmax.f32 %v5020, 0.0
  %v5247 = vmax.f32 %v5025, 0.0
  %v5248 = vmax.f32 %v5030, 0.0
  %v5249 = vmax.f32 %v5035, 0.0
  %v5250 = vmax.f32 %v5040, 0.0
  %v5251 = vmax.f32 %v5045, 0.0
  %v5252 = vmax.f32 %v5050, 0.0
  %v5253 = vmax.f32 %v5055, 0.0
  %v5254 = vmax.f32 %v5060, 0.0
  %v5255 = vmax.f32 %v5065, 0.0
  %v5256 = vmax.f32 %v5070, 0.0
  %v5257 = vmax.f32 %v5075, 0.0
  %v5258 = vmax.f32 %v5080, 0.0
  %v5259 = vmax.f32 %v5085, 0.0
  %v5260 = vmax.f32 %v5090, 0.0
  %v5261 = vmax.f32 %v5095, 0.0
  %v5262 = vmax.f32 %v5100, 0.0
  %v5263 = vmax.f32 %v5105, 0.0
  %v5264 = vmax.f32 %v5110, 0.0
  %v5265 = vmax.f32 %v5115, 0.0
  %v5266 = vmax.f32 %v5120, 0.0
  %v5267 = vmax.f32 %v5125, 0.0
  %v5268 = vmax.f32 %v5130, 0.0
  %v5269 = vmax.f32 %v5135, 0.0
  %v5270 = vmax.f32 %v5140, 0.0
  %v5271 = vmax.f32 %v5145, 0.0
  %v5272 = vmax.f32 %v5150, 0.0
  %v5273 = vmax.f32 %v5155, 0.0
  %v5274 = vmax.f32 %v5160, 0.0
  %v5275 = vmax.f32 %v5165, 0.0
  %v5276 = vmax.f32 %v5170, 0.0
  %v5277 = vmax.f32 %v5175, 0.0
  %v5278 = vmax.f32 %v5180, 0.0
  %v5279 = vmax.f32 %v5185, 0.0
  %v5280 = vmax.f32 %v5190, 0.0
  %v5281 = vmax.f32 %v5195, 0.0
  %v5282 = vmax.f32 %v5200, 0.0
  %v5283 = vmax.f32 %v5205, 0.0
  %v5284 = vmax.f32 %v5210, 0.0
  %v5285 = vmax.f32 %v5215, 0.0
  %v5286 = vmax.f32 %v5220, 0.0
  %5287 = vst.msk [vmem:[%s7] sm:$0xff] %vm101, %v5223
  %5288 = vst.msk [vmem:[%s7 + $0x8] sm:$0xff] %vm101, %v5224
  %5289 = vst.msk [vmem:[%s7 + $0x10] sm:$0xff] %vm101, %v5225
  %5290 = vst.msk [vmem:[%s7 + $0x18] sm:$0xff] %vm101, %v5226
  %5291 = vst.msk [vmem:[%s7 + $0x20] sm:$0xff] %vm101, %v5227
  %5292 = vst.msk [vmem:[%s7 + $0x28] sm:$0xff] %vm101, %v5228
  %5293 = vst.msk [vmem:[%s7 + $0x30] sm:$0xff] %vm101, %v5229
  %5294 = vst.msk [vmem:[%s7 + $0x38] sm:$0xff] %vm101, %v5230
  %5295 = vst.msk [vmem:[%s7 + $0x40] sm:$0xff] %vm101, %v5231
  %5296 = vst.msk [vmem:[%s7 + $0x48] sm:$0xff] %vm101, %v5232
  %5297 = vst.msk [vmem:[%s7 + $0x50] sm:$0xff] %vm101, %v5233
  %5298 = vst.msk [vmem:[%s7 + $0x58] sm:$0xff] %vm101, %v5234
  %5299 = vst.msk [vmem:[%s7 + $0x60] sm:$0xff] %vm101, %v5235
  %5300 = vst.msk [vmem:[%s7 + $0x68] sm:$0xff] %vm101, %v5236
  %5301 = vst.msk [vmem:[%s7 + $0x70] sm:$0xff] %vm101, %v5237
  %5302 = vst.msk [vmem:[%s7 + $0x78] sm:$0xff] %vm101, %v5238
  %5303 = vst.msk [vmem:[%s7 + $0x80] sm:$0xff] %vm101, %v5239
  %5304 = vst.msk [vmem:[%s7 + $0x88] sm:$0xff] %vm101, %v5240
  %5305 = vst.msk [vmem:[%s7 + $0x90] sm:$0xff] %vm101, %v5241
  %5306 = vst.msk [vmem:[%s7 + $0x98] sm:$0xff] %vm101, %v5242
  %5307 = vst.msk [vmem:[%s7 + $0xa0] sm:$0xff] %vm101, %v5243
  %5308 = vst.msk [vmem:[%s7 + $0xa8] sm:$0xff] %vm101, %v5244
  %5309 = vst.msk [vmem:[%s7 + $0xb0] sm:$0xff] %vm101, %v5245
  %5310 = vst.msk [vmem:[%s7 + $0xb8] sm:$0xff] %vm101, %v5246
  %5311 = vst.msk [vmem:[%s7 + $0xc0] sm:$0xff] %vm101, %v5247
  %5312 = vst.msk [vmem:[%s7 + $0xc8] sm:$0xff] %vm101, %v5248
  %5313 = vst.msk [vmem:[%s7 + $0xd0] sm:$0xff] %vm101, %v5249
  %5314 = vst.msk [vmem:[%s7 + $0xd8] sm:$0xff] %vm101, %v5250
  %5315 = vst.msk [vmem:[%s7 + $0xe0] sm:$0xff] %vm101, %v5251
  %5316 = vst.msk [vmem:[%s7 + $0xe8] sm:$0xff] %vm101, %v5252
  %5317 = vst.msk [vmem:[%s7 + $0xf0] sm:$0xff] %vm101, %v5253
  %5318 = vst.msk [vmem:[%s7 + $0xf8] sm:$0xff] %vm101, %v5254
  %5319 = vst.msk [vmem:[%s7 + $0x100] sm:$0xff] %vm101, %v5255
  %5320 = vst.msk [vmem:[%s7 + $0x108] sm:$0xff] %vm101, %v5256
  %5321 = vst.msk [vmem:[%s7 + $0x110] sm:$0xff] %vm101, %v5257
  %5322 = vst.msk [vmem:[%s7 + $0x118] sm:$0xff] %vm101, %v5258
  %5323 = vst.msk [vmem:[%s7 + $0x120] sm:$0xff] %vm101, %v5259
  %5324 = vst.msk [vmem:[%s7 + $0x128] sm:$0xff] %vm101, %v5260
  %5325 = vst.msk [vmem:[%s7 + $0x130] sm:$0xff] %vm101, %v5261
  %5326 = vst.msk [vmem:[%s7 + $0x138] sm:$0xff] %vm101, %v5262
  %5327 = vst.msk [vmem:[%s7 + $0x140] sm:$0xff] %vm101, %v5263
  %5328 = vst.msk [vmem:[%s7 + $0x148] sm:$0xff] %vm101, %v5264
  %5329 = vst.msk [vmem:[%s7 + $0x150] sm:$0xff] %vm101, %v5265
  %5330 = vst.msk [vmem:[%s7 + $0x158] sm:$0xff] %vm101, %v5266
  %5331 = vst.msk [vmem:[%s7 + $0x160] sm:$0xff] %vm101, %v5267
  %5332 = vst.msk [vmem:[%s7 + $0x168] sm:$0xff] %vm101, %v5268
  %5333 = vst.msk [vmem:[%s7 + $0x170] sm:$0xff] %vm101, %v5269
  %5334 = vst.msk [vmem:[%s7 + $0x178] sm:$0xff] %vm101, %v5270
  %5335 = vst.msk [vmem:[%s7 + $0x180] sm:$0xff] %vm101, %v5271
  %5336 = vst.msk [vmem:[%s7 + $0x188] sm:$0xff] %vm101, %v5272
  %5337 = vst.msk [vmem:[%s7 + $0x190] sm:$0xff] %vm101, %v5273
  %5338 = vst.msk [vmem:[%s7 + $0x198] sm:$0xff] %vm101, %v5274
  %5339 = vst.msk [vmem:[%s7 + $0x1a0] sm:$0xff] %vm101, %v5275
  %5340 = vst.msk [vmem:[%s7 + $0x1a8] sm:$0xff] %vm101, %v5276
  %5341 = vst.msk [vmem:[%s7 + $0x1b0] sm:$0xff] %vm101, %v5277
  %5342 = vst.msk [vmem:[%s7 + $0x1b8] sm:$0xff] %vm101, %v5278
  %5343 = vst.msk [vmem:[%s7 + $0x1c0] sm:$0xff] %vm101, %v5279
  %5344 = vst.msk [vmem:[%s7 + $0x1c8] sm:$0xff] %vm101, %v5280
  %5345 = vst.msk [vmem:[%s7 + $0x1d0] sm:$0xff] %vm101, %v5281
  %5346 = vst.msk [vmem:[%s7 + $0x1d8] sm:$0xff] %vm101, %v5282
  %5347 = vst.msk [vmem:[%s7 + $0x1e0] sm:$0xff] %vm101, %v5283
  %5348 = vst.msk [vmem:[%s7 + $0x1e8] sm:$0xff] %vm101, %v5284
  %5349 = vst.msk [vmem:[%s7 + $0x1f0] sm:$0xff] %vm101, %v5285
  %5350 = vst.msk [vmem:[%s7 + $0x1f8] sm:$0xff] %vm101, %v5286
  // Predicated region
  $region30: #{mlp_forward.1} parent=0 // pred_check
    _
  $region31: #{mlp_forward.1} parent=0 // pred_check_branch
    %5352 = sbr.rel (0) target = $region33
  $region32: #{mlp_forward.1} parent=0 // pred_region
    _
  $region33: #{mlp_forward.1} parent=0 // pred_fallthru
    _
  // Predicated region
  $region34: #{mlp_forward.1} parent=0 // pred_check
    _
  $region35: #{mlp_forward.1} parent=0 // pred_check_branch
    %5354 = sbr.rel (0) target = $region37
  $region36: #{mlp_forward.1} parent=0 // pred_region
    _
  $region37: #{mlp_forward.1} parent=0 // pred_fallthru
    _

</llo_original>
